<compile_context>
chip_gen: v5e
topology: v5e:2x2
jax: 0.10.0
libtpu: 0.0.40
codegen_flags: <defaults>
</compile_context>

<pallas_src>
import functools
import math

import numpy as np
import jax
import jax.numpy as jnp
from jax import lax
from jax.experimental import pallas as pl
from jax.experimental.pallas import tpu as pltpu

_LANE = 128


def _round_up(a, b):
    return (a + b - 1) // b * b


def _vmem_caps():
    """Generation-aware (scoped VMEM limit, tile budget) in bytes."""
    cap = 64 * 1024 * 1024  # conservative fallback (v7x per-TC VMEM)
    try:
        info = pltpu.get_tpu_info()
        cap = int(getattr(info, "vmem_capacity_bytes", cap)) or cap
    except Exception:
        pass
    limit = (cap * 11) // 16   # 128 MiB -> 88 MiB ; 64 MiB -> 44 MiB
    budget = (cap * 7) // 16   # 128 MiB -> 56 MiB ; 64 MiB -> 28 MiB
    return int(limit), int(budget)


def _vmem_bytes(tile, HW, Cpad, Copad, dt_bytes):
    """Approximate per-step VMEM footprint of the kernel for a given HoWo tile."""
    f32 = 4
    fixed = (HW * Cpad * dt_bytes            # x image scratch (single-buffered)
             + tile * Copad * f32            # f32 accumulator scratch
             + 2 * Cpad * Copad * dt_bytes   # per-tap weight block (double-buffered)
             + 2 * 8 * _LANE * f32)          # bias block (lane-padded, double-buffered)
    per_step = (2 * tile * _LANE * f32       # pos tile (2 lanes padded to 128), dbl-buffered
                + 2 * tile * _LANE * f32     # mask tile
                + 2 * tile * Copad * f32)    # out tile
    live = 16 * tile * HW                    # one tap's (tile, HW) iota / select / S temps
    return fixed + per_step + live


def _choose_tile_m(HoWo, HW, Cpad, Copad, dt_bytes, budget):
    """Largest HoWo tile fitting the VMEM budget; prefer 128-aligned tiles / low padding slack."""
    full = _round_up(HoWo, 8)
    t = _round_up(min(full, 2048), 8)
    while t > 8 and _vmem_bytes(t, HW, Cpad, Copad, dt_bytes) > budget:
        t = _round_up(max(t // 2, 8), 8)
    if t < full:
        if t >= 128:
            t = (t // 128) * 128             # MXU/row-block friendly
        align = 128 if t >= 128 else 8
        n_tiles = -(-HoWo // t)
        t2 = _round_up(-(-HoWo // n_tiles), align)
        if 8 <= t2 <= t:                     # same tile count, less fully-padded work
            t = t2
    return max(t, 8)


def _deform_conv_kernel(x_hbm, pos_ref, msk_ref, w_ref, b_ref, out_ref,
                        x_vmem, acc_ref, sem, *, H, W, KK, compute_dtype):
    n = pl.program_id(0)
    m = pl.program_id(1)
    k = pl.program_id(2)
    HW = H * W

    # Fetch this batch element's full (HW, Cpad) image once per n into a single-buffered
    # VMEM scratch (one un-overlapped DMA per batch element; the m axis is "arbitrary" so
    # this first-step guard is valid under megacore sharding of the batch axis).
    @pl.when((m == 0) & (k == 0))
    def _():
        cp = pltpu.make_async_copy(x_hbm.at[n], x_vmem, sem)
        cp.start()
        cp.wait()

    @pl.when(k == 0)
    def _():
        acc_ref[...] = jnp.zeros_like(acc_ref)

    pos = pos_ref[0, 0]                  # (TM, 2) f32: absolute (y, x) for tap k
    mk = msk_ref[0, 0]                   # (TM, 1) f32 modulation
    y = pos[:, 0:1]
    xx = pos[:, 1:2]
    TM = y.shape[0]

    # Coordinate / bilinear-weight math stays in f32 (only the MXU operands drop to bf16).
    y0f = jnp.floor(y)
    x0f = jnp.floor(xx)
    ly = y - y0f
    lx = xx - x0f
    hy = 1.0 - ly
    hx = 1.0 - lx
    y0 = y0f.astype(jnp.int32)
    x0 = x0f.astype(jnp.int32)
    y1 = y0 + 1
    x1 = x0 + 1

    def cw(yi, xi, wgt):
        # Per-corner bilinear weight with modulation and zero-padding validity folded in.
        # Out-of-bounds corners get weight 0, so any flat-index wraparound onto a valid
        # pixel contributes nothing (invariant preserved from the reference semantics).
        valid = (yi >= 0) & (yi < H) & (xi >= 0) & (xi < W)
        return jnp.where(valid, wgt * mk, 0.0).astype(compute_dtype)

    w00 = cw(y0, x0, hy * hx)
    w01 = cw(y0, x1, hy * lx)
    w10 = cw(y1, x0, ly * hx)
    w11 = cw(y1, x1, ly * lx)

    hw_iota = lax.broadcasted_iota(jnp.int32, (TM, HW), 1)
    zero = jnp.zeros((), compute_dtype)
    # Weighted one-hot gather matrix in compute_dtype (bf16 default): the dominant
    # (TM, HW) x (HW, Cpad) MXU matmul runs ~3x faster than f32 and halves VMEM temps.
    S = (jnp.where(hw_iota == y0 * W + x0, w00, zero)
         + jnp.where(hw_iota == y0 * W + x1, w01, zero)
         + jnp.where(hw_iota == y1 * W + x0, w10, zero)
         + jnp.where(hw_iota == y1 * W + x1, w11, zero))

    sampled = jnp.dot(S, x_vmem[...], preferred_element_type=jnp.float32)       # (TM, Cpad)
    acc_ref[...] += jnp.dot(sampled.astype(compute_dtype), w_ref[0],
                            preferred_element_type=jnp.float32)                 # (TM, Copad)

    @pl.when(k == KK - 1)
    def _():
        out_ref[0] = (acc_ref[...] + b_ref[...]).astype(out_ref.dtype)


def deform_conv2d_pallas(x, offset, mask, weight, bias, *, stride, padding, dilation,
                         tile_m=None, compute_dtype=jnp.bfloat16):
    """Modulated deformable conv (torchvision deform_conv2d), NCHW in / NCHW out."""
    N, Cin, H, W = x.shape
    Cout, _, Kh, Kw = weight.shape
    sh, sw = stride
    ph, pw = padding
    dh, dw = dilation
    Ho = (H + 2 * ph - dh * (Kh - 1) - 1) // sh + 1
    Wo = (W + 2 * pw - dw * (Kw - 1) - 1) // sw + 1
    KK = Kh * Kw
    HW = H * W
    HoWo = Ho * Wo

    Cpad = _round_up(Cin, _LANE)
    Copad = _round_up(Cout, _LANE)
    dt_bytes = jnp.dtype(compute_dtype).itemsize

    vmem_limit, vmem_budget = _vmem_caps()
    if tile_m is None:
        tile_m = _choose_tile_m(HoWo, HW, Cpad, Copad, dt_bytes, vmem_budget)
    tile_m = _round_up(max(8, min(int(tile_m), _round_up(HoWo, 8))), 8)
    HoWo_pad = _round_up(HoWo, tile_m)
    n_tiles = HoWo_pad // tile_m

    # x: channels-last, spatially flattened, channel-padded, cast to the MXU dtype.
    x_flat = jnp.transpose(x, (0, 2, 3, 1)).reshape(N, HW, Cin).astype(jnp.float32)
    x_flat = jnp.pad(x_flat, ((0, 0), (0, 0), (0, Cpad - Cin))).astype(compute_dtype)

    # Offsets: (N, 2*KK, Ho, Wo) torchvision order [dy_k, dx_k] -> (N, KK, HoWo, 2),
    # with the integer base sampling grid folded in (drops a whole input stream).
    off = offset.astype(jnp.float32).reshape(N, KK, 2, Ho, Wo)
    off = jnp.transpose(off, (0, 1, 3, 4, 2)).reshape(N, KK, HoWo, 2)
    msk = mask.astype(jnp.float32).reshape(N, KK, HoWo, 1)

    oh_g, ow_g = jnp.meshgrid(jnp.arange(Ho, dtype=jnp.float32),
                              jnp.arange(Wo, dtype=jnp.float32), indexing="ij")
    base_taps = []
    for kh in range(Kh):
        for kw in range(Kw):
            by = oh_g * sh - ph + kh * dh
            bx = ow_g * sw - pw + kw * dw
            base_taps.append(jnp.stack([by, bx], axis=-1).reshape(HoWo, 2))
    base = jnp.stack(base_taps, axis=0)                       # (KK, HoWo, 2)
    pos_flat = off + base[None]                               # absolute sampling coords
    pos_flat = jnp.pad(pos_flat, ((0, 0), (0, 0), (0, HoWo_pad - HoWo), (0, 0)))
    msk_flat = jnp.pad(msk, ((0, 0), (0, 0), (0, HoWo_pad - HoWo), (0, 0)))

    # Weights: (Cout, Cin, Kh, Kw) -> per-tap (KK, Cpad, Copad), MXU dtype.
    w2 = jnp.transpose(weight, (2, 3, 1, 0)).reshape(KK, Cin, Cout).astype(jnp.float32)
    w2 = jnp.pad(w2, ((0, 0), (0, Cpad - Cin), (0, Copad - Cout))).astype(compute_dtype)
    if bias is None:
        b2 = jnp.zeros((1, Copad), jnp.float32)
    else:
        b2 = jnp.pad(bias.reshape(1, Cout).astype(jnp.float32), ((0, 0), (0, Copad - Cout)))

    kernel = functools.partial(_deform_conv_kernel, H=H, W=W, KK=KK,
                               compute_dtype=compute_dtype)

    gather_flops = 2 * N * n_tiles * KK * tile_m * HW * Cpad
    weight_flops = 2 * N * n_tiles * KK * tile_m * Cpad * Copad
    bytes_accessed = int(x_flat.nbytes + pos_flat.nbytes + msk_flat.nbytes
                         + w2.nbytes + b2.nbytes + N * HoWo_pad * Copad * 4)
    cost = pl.CostEstimate(flops=int(gather_flops + weight_flops), transcendentals=0,
                           bytes_accessed=bytes_accessed)

    out = pl.pallas_call(
        kernel,
        out_shape=jax.ShapeDtypeStruct((N, HoWo_pad, Copad), jnp.float32),
        grid=(N, n_tiles, KK),
        in_specs=[
            pl.BlockSpec(memory_space=pl.ANY),                                 # x stays in HBM
            pl.BlockSpec((1, 1, tile_m, 2), lambda n, m, k: (n, k, m, 0)),     # pos (per tap)
            pl.BlockSpec((1, 1, tile_m, 1), lambda n, m, k: (n, k, m, 0)),     # mask (per tap)
            pl.BlockSpec((1, Cpad, Copad), lambda n, m, k: (k, 0, 0)),         # per-tap weights
            pl.BlockSpec((1, Copad), lambda n, m, k: (0, 0)),                  # bias
        ],
        out_specs=pl.BlockSpec((1, tile_m, Copad), lambda n, m, k: (n, m, 0)),
        scratch_shapes=[
            pltpu.VMEM((HW, Cpad), compute_dtype),       # full image, single-buffered
            pltpu.VMEM((tile_m, Copad), jnp.float32),    # f32 output accumulator
            pltpu.SemaphoreType.DMA(()),
        ],
        compiler_params=pltpu.CompilerParams(
            dimension_semantics=("parallel", "arbitrary", "arbitrary"),
            vmem_limit_bytes=vmem_limit),
        cost_estimate=cost,
    )(x_flat, pos_flat, msk_flat, w2, b2)

    out = out[:, :HoWo, :Cout]
    return jnp.transpose(out.reshape(N, Ho, Wo, Cout), (0, 3, 1, 2))


def _conv2d(x, w, b, *, stride, padding, dilation):
    """Plain dilated conv (NCHW / OIHW) for the offset / modulator branches."""
    out = lax.conv_general_dilated(
        x, w, window_strides=stride,
        padding=((padding[0], padding[0]), (padding[1], padding[1])),
        rhs_dilation=dilation,
        dimension_numbers=("NCHW", "OIHW", "NCHW"))
    if b is not None:
        out = out + b.reshape(1, -1, 1, 1)
    return out


def init_params(key, in_channels, out_channels, kernel_size=3):
    """Deterministic init mirroring the PyTorch module's __init__."""
    KK = kernel_size * kernel_size
    offset_w = jnp.zeros((2 * KK, in_channels, kernel_size, kernel_size), jnp.float32)
    offset_b = jnp.zeros((2 * KK,), jnp.float32)
    mod_w = jnp.zeros((KK, in_channels, kernel_size, kernel_size), jnp.float32)
    mod_b = jnp.zeros((KK,), jnp.float32)
    fan_in = in_channels * KK
    bound = 1.0 / math.sqrt(fan_in)
    reg_w = jax.random.uniform(key, (out_channels, in_channels, kernel_size, kernel_size),
                               jnp.float32, minval=-bound, maxval=bound)
    return dict(offset_w=offset_w, offset_b=offset_b, mod_w=mod_w, mod_b=mod_b, reg_w=reg_w)


def deformable_conv2d_forward(params, x, *, angRes, case, kernel_size=3, stride=1, padding=1,
                              compute_dtype=jnp.bfloat16):
    stride = stride if isinstance(stride, tuple) else (stride, stride)
    padding = padding if isinstance(padding, tuple) else (padding, padding)
    if case == 1:
        dilation = 1
    elif case == 2:
        dilation = angRes + 1
    elif case == 3:
        dilation = angRes - 1
    elif case == 4:
        dilation = 2 * (angRes + 1)
    elif case == 5:
        dilation = 2 * (angRes - 1)
    else:
        raise ValueError(f"unsupported case: {case}")
    dilation = dilation if isinstance(dilation, tuple) else (dilation, dilation)

    offset = _conv2d(x, params["offset_w"], params["offset_b"],
                     stride=stride, padding=padding, dilation=dilation)
    modulator = 2.0 * jax.nn.sigmoid(
        _conv2d(x, params["mod_w"], params["mod_b"],
                stride=stride, padding=padding, dilation=dilation))
    return deform_conv2d_pallas(x, offset, modulator, params["reg_w"], None,
                                stride=stride, padding=padding, dilation=dilation,
                                compute_dtype=compute_dtype)


def _deform_conv2d_ref(x, offset, mask, weight, bias, *, stride, padding, dilation):
    """Pure-JAX gather-based reference (torchvision deform_conv2d semantics), NCHW."""
    N, Cin, H, W = x.shape
    Cout, _, Kh, Kw = weight.shape
    sh, sw = stride
    ph, pw = padding
    dh, dw = dilation
    Ho = (H + 2 * ph - dh * (Kh - 1) - 1) // sh + 1
    Wo = (W + 2 * pw - dw * (Kw - 1) - 1) // sw + 1
    KK = Kh * Kw
    x_flat = jnp.transpose(x, (0, 2, 3, 1)).reshape(N, H * W, Cin)
    off = offset.reshape(N, KK, 2, Ho, Wo)
    msk = mask.reshape(N, KK, Ho, Wo)
    oh_g, ow_g = jnp.meshgrid(jnp.arange(Ho, dtype=jnp.float32),
                              jnp.arange(Wo, dtype=jnp.float32), indexing="ij")
    out = jnp.zeros((N, Ho * Wo, Cout), jnp.float32)
    for k in range(KK):
        kh, kw = divmod(k, Kw)
        y = oh_g * sh - ph + kh * dh + off[:, k, 0]
        xx = ow_g * sw - pw + kw * dw + off[:, k, 1]
        y0 = jnp.floor(y)
        x0 = jnp.floor(xx)
        ly = (y - y0).reshape(N, Ho * Wo, 1)
        lx = (xx - x0).reshape(N, Ho * Wo, 1)
        hy = 1.0 - ly
        hx = 1.0 - lx

        def gather(yi, xi):
            valid = (yi >= 0) & (yi < H) & (xi >= 0) & (xi < W)
            idx = (jnp.clip(yi, 0, H - 1) * W + jnp.clip(xi, 0, W - 1)).astype(jnp.int32)
            g = jnp.take_along_axis(x_flat, idx.reshape(N, Ho * Wo, 1), axis=1)
            return jnp.where(valid.reshape(N, Ho * Wo, 1), g, 0.0)

        samp = (gather(y0, x0) * hy * hx + gather(y0, x0 + 1) * hy * lx
                + gather(y0 + 1, x0) * ly * hx + gather(y0 + 1, x0 + 1) * ly * lx)
        samp = samp * msk[:, k].reshape(N, Ho * Wo, 1)
        out = out + jnp.einsum("npc,oc->npo", samp, weight[:, :, kh, kw],
                               precision=lax.Precision.HIGHEST)
    if bias is not None:
        out = out + bias.reshape(1, 1, Cout)
    return jnp.transpose(out.reshape(N, Ho, Wo, Cout), (0, 3, 1, 2))


if __name__ == "__main__":
    key = jax.random.PRNGKey(0)
    kx, kwt, ko, km = jax.random.split(key, 4)

    N, Cin, H, W = 2, 4, 16, 16
    Cout = 8
    angRes, case = 2, 2            # -> dilation = angRes + 1 = 3
    dil = angRes + 1

    x = jax.random.normal(kx, (N, Cin, H, W), dtype=jnp.float32)
    params = init_params(kwt, Cin, Cout, kernel_size=3)

    ref = lax.conv_general_dilated(x, params["reg_w"], window_strides=(1, 1),
                                   padding=((1, 1), (1, 1)), rhs_dilation=(dil, dil),
                                   dimension_numbers=("NCHW", "OIHW", "NCHW"))

    # 1) Full module forward with the module's zero-initialized offset/modulator convs:
    #    exactly a plain dilated conv.  f32 compute path checked tightly, default bf16
    #    MXU path checked at bf16 tolerance.
    fwd_f32 = jax.jit(functools.partial(deformable_conv2d_forward, angRes=angRes, case=case,
                                        compute_dtype=jnp.float32))
    out_f32 = jax.block_until_ready(fwd_f32(params, x))
    assert out_f32.shape == ref.shape, (out_f32.shape, ref.shape)
    np.testing.assert_allclose(np.asarray(out_f32), np.asarray(ref), rtol=1e-4, atol=1e-4)

    fwd_bf16 = jax.jit(functools.partial(deformable_conv2d_forward, angRes=angRes, case=case))
    out_bf16 = jax.block_until_ready(fwd_bf16(params, x))
    np.testing.assert_allclose(np.asarray(out_bf16), np.asarray(ref), rtol=5e-2, atol=5e-2)

    # 2) Deformable path with non-trivial offsets / modulation vs a pure-JAX reference:
    #    f32 compute (tight, incl. the forced multi-tile grid path) and default bf16 (loose).
    Ho = (H + 2 * 1 - dil * 2 - 1) // 1 + 1
    Wo = Ho
    KK = 9
    offset_r = 2.0 * jax.random.normal(ko, (N, 2 * KK, Ho, Wo), dtype=jnp.float32)
    mask_r = jax.random.uniform(km, (N, KK, Ho, Wo), dtype=jnp.float32,
                                minval=0.0, maxval=2.0)
    ref_d = _deform_conv2d_ref(x, offset_r, mask_r, params["reg_w"], None,
                               stride=(1, 1), padding=(1, 1), dilation=(dil, dil))
    for tm in (None, 64):
        out_d = jax.block_until_ready(
            deform_conv2d_pallas(x, offset_r, mask_r, params["reg_w"], None,
                                 stride=(1, 1), padding=(1, 1), dilation=(dil, dil),
                                 tile_m=tm, compute_dtype=jnp.float32))
        np.testing.assert_allclose(np.asarray(out_d), np.asarray(ref_d),
                                   rtol=1e-3, atol=1e-3)
    out_db = jax.block_until_ready(
        deform_conv2d_pallas(x, offset_r, mask_r, params["reg_w"], None,
                             stride=(1, 1), padding=(1, 1), dilation=(dil, dil)))
    np.testing.assert_allclose(np.asarray(out_db), np.asarray(ref_d),
                               rtol=5e-2, atol=5e-2)

    print("KERNEL_OK")
</pallas_src>

<mosaic_0001>
module attributes {stable_mosaic.version = 11 : i64} {
  func.func @_deform_conv_kernel(%arg0: i32, %arg1: i32, %arg2: i32, %arg3: memref<2x256x128xf32, #tpu.memory_space<any>>, %arg4: memref<1x1x144x2xf32, #tpu.memory_space<vmem>>, %arg5: memref<1x1x144x1xf32, #tpu.memory_space<vmem>>, %arg6: memref<1x128x128xf32, #tpu.memory_space<vmem>>, %arg7: memref<1x128xf32, #tpu.memory_space<vmem>>, %arg8: memref<1x144x128xf32, #tpu.memory_space<vmem>>, %arg9: memref<256x128xf32, #tpu.memory_space<vmem>>, %arg10: memref<144x128xf32, #tpu.memory_space<vmem>>, %arg11: memref<!tpu.dma_semaphore, #tpu.memory_space<semaphore_mem>>) attributes {dimension_semantics = [#tpu.dimension_semantics<parallel>, #tpu.dimension_semantics<arbitrary>, #tpu.dimension_semantics<arbitrary>], iteration_bounds = array<i64: 2, 1, 9>, scalar_prefetch = 0 : i64, scratch_operands = 3 : i64, tpu.core_type = #tpu.core_type<tc>, window_params = [{}, {transform_indices = @transform_1, window_bounds = array<i64: 1, 1, 144, 2>}, {transform_indices = @transform_2, window_bounds = array<i64: 1, 1, 144, 1>}, {transform_indices = @transform_3, window_bounds = array<i64: 1, 128, 128>}, {pipeline_mode = #tpu.pipeline_mode<synchronous>, transform_indices = @transform_4, window_bounds = array<i64: 1, 128>}, {transform_indices = @transform_5, window_bounds = array<i64: 1, 144, 128>}]} {
    %c0_i32 = arith.constant 0 : i32
    %0 = arith.cmpi eq, %arg1, %c0_i32 : i32
    %c0_i32_0 = arith.constant 0 : i32
    %1 = arith.cmpi eq, %arg2, %c0_i32_0 : i32
    %2 = arith.andi %0, %1 : i1
    %3 = arith.extui %2 : i1 to i32
    %c0_i32_1 = arith.constant 0 : i32
    %4 = arith.cmpi ne, %3, %c0_i32_1 : i32
    scf.if %4 {
      %c0_i32_52 = arith.constant 0 : i32
      %c0_i32_53 = arith.constant 0 : i32
      %139 = tpu.memref_slice %arg3[%arg0, %c0_i32_52, %c0_i32_53] : memref<2x256x128xf32, #tpu.memory_space<any>> -> memref<1x256x128xf32, #tpu.memory_space<any>>
      %140 = tpu.memref_squeeze %139 : memref<1x256x128xf32, #tpu.memory_space<any>> -> memref<256x128xf32, #tpu.memory_space<any>>
      tpu.enqueue_dma source(%140 : memref<256x128xf32, #tpu.memory_space<any>>) target(%arg9 : memref<256x128xf32, #tpu.memory_space<vmem>>) target_semaphore(%arg11 : memref<!tpu.dma_semaphore, #tpu.memory_space<semaphore_mem>>)
      %c0_i32_54 = arith.constant 0 : i32
      %c0_i32_55 = arith.constant 0 : i32
      %141 = tpu.memref_slice %arg3[%arg0, %c0_i32_54, %c0_i32_55] : memref<2x256x128xf32, #tpu.memory_space<any>> -> memref<1x256x128xf32, #tpu.memory_space<any>>
      %142 = tpu.memref_squeeze %141 : memref<1x256x128xf32, #tpu.memory_space<any>> -> memref<256x128xf32, #tpu.memory_space<any>>
      tpu.wait_dma2 semaphore(%arg11 : memref<!tpu.dma_semaphore, #tpu.memory_space<semaphore_mem>>) src(%142 : memref<256x128xf32, #tpu.memory_space<any>>) dst(%arg9 : memref<256x128xf32, #tpu.memory_space<vmem>>)
    } else {
    }
    %c0_i32_2 = arith.constant 0 : i32
    %5 = arith.cmpi eq, %arg2, %c0_i32_2 : i32
    %6 = arith.extui %5 : i1 to i32
    %c0_i32_3 = arith.constant 0 : i32
    %7 = arith.cmpi ne, %6, %c0_i32_3 : i32
    scf.if %7 {
      %cst_52 = arith.constant 0.000000e+00 : f32
      %139 = vector.broadcast %cst_52 : f32 to vector<144x128xf32>
      %c0_53 = arith.constant 0 : index
      %c0_54 = arith.constant 0 : index
      %140 = vector.load %arg10[%c0_53, %c0_54] : memref<144x128xf32, #tpu.memory_space<vmem>>, vector<144x128xf32>
      tpu.vector_store %arg10[%c0_53, %c0_54], %139 {strides = array<i32>} : memref<144x128xf32, #tpu.memory_space<vmem>>, vector<144x128xf32>,
    } else {
    }
    %c0 = arith.constant 0 : index
    %c0_4 = arith.constant 0 : index
    %c0_5 = arith.constant 0 : index
    %c0_6 = arith.constant 0 : index
    %8 = vector.load %arg4[%c0, %c0_4, %c0_5, %c0_6] : memref<1x1x144x2xf32, #tpu.memory_space<vmem>>, vector<1x1x144x2xf32>
    %9 = vector.shape_cast %8 : vector<1x1x144x2xf32> to vector<144x2xf32>
    %c0_7 = arith.constant 0 : index
    %c0_8 = arith.constant 0 : index
    %c0_9 = arith.constant 0 : index
    %c0_10 = arith.constant 0 : index
    %10 = vector.load %arg5[%c0_7, %c0_8, %c0_9, %c0_10] : memref<1x1x144x1xf32, #tpu.memory_space<vmem>>, vector<1x1x144x1xf32>
    %11 = vector.shape_cast %10 : vector<1x1x144x1xf32> to vector<144x1xf32>
    %12 = vector.extract_strided_slice %9 {offsets = [0, 0], sizes = [144, 1], strides = [1, 1]} : vector<144x2xf32> to vector<144x1xf32>
    %13 = vector.extract_strided_slice %9 {offsets = [0, 1], sizes = [144, 1], strides = [1, 1]} : vector<144x2xf32> to vector<144x1xf32>
    %14 = math.floor %12 : vector<144x1xf32>
    %15 = math.floor %13 : vector<144x1xf32>
    %16 = arith.subf %12, %14 : vector<144x1xf32>
    %17 = arith.subf %13, %15 : vector<144x1xf32>
    %cst = arith.constant 1.000000e+00 : f32
    %18 = vector.broadcast %cst : f32 to vector<144x1xf32>
    %19 = arith.subf %18, %16 : vector<144x1xf32>
    %cst_11 = arith.constant 1.000000e+00 : f32
    %20 = vector.broadcast %cst_11 : f32 to vector<144x1xf32>
    %21 = arith.subf %20, %17 : vector<144x1xf32>
    %22 = arith.fptosi %14 : vector<144x1xf32> to vector<144x1xi32>
    %23 = arith.fptosi %15 : vector<144x1xf32> to vector<144x1xi32>
    %c1_i32 = arith.constant 1 : i32
    %24 = vector.broadcast %c1_i32 : i32 to vector<144x1xi32>
    %25 = arith.addi %22, %24 : vector<144x1xi32>
    %c1_i32_12 = arith.constant 1 : i32
    %26 = vector.broadcast %c1_i32_12 : i32 to vector<144x1xi32>
    %27 = arith.addi %23, %26 : vector<144x1xi32>
    %28 = arith.mulf %19, %21 : vector<144x1xf32>
    %c0_i32_13 = arith.constant 0 : i32
    %29 = vector.broadcast %c0_i32_13 : i32 to vector<144x1xi32>
    %30 = arith.cmpi sge, %22, %29 : vector<144x1xi32>
    %c16_i32 = arith.constant 16 : i32
    %31 = vector.broadcast %c16_i32 : i32 to vector<144x1xi32>
    %32 = arith.cmpi slt, %22, %31 : vector<144x1xi32>
    %33 = arith.andi %30, %32 : vector<144x1xi1>
    %c0_i32_14 = arith.constant 0 : i32
    %34 = vector.broadcast %c0_i32_14 : i32 to vector<144x1xi32>
    %35 = arith.cmpi sge, %23, %34 : vector<144x1xi32>
    %36 = arith.andi %33, %35 : vector<144x1xi1>
    %c16_i32_15 = arith.constant 16 : i32
    %37 = vector.broadcast %c16_i32_15 : i32 to vector<144x1xi32>
    %38 = arith.cmpi slt, %23, %37 : vector<144x1xi32>
    %39 = arith.andi %36, %38 : vector<144x1xi1>
    %40 = arith.mulf %28, %11 : vector<144x1xf32>
    %cst_16 = arith.constant 0.000000e+00 : f32
    %41 = vector.broadcast %cst_16 : f32 to vector<144x1xf32>
    %42 = arith.select %39, %40, %41 : vector<144x1xi1>, vector<144x1xf32>
    %43 = arith.mulf %19, %17 : vector<144x1xf32>
    %c0_i32_17 = arith.constant 0 : i32
    %44 = vector.broadcast %c0_i32_17 : i32 to vector<144x1xi32>
    %45 = arith.cmpi sge, %22, %44 : vector<144x1xi32>
    %c16_i32_18 = arith.constant 16 : i32
    %46 = vector.broadcast %c16_i32_18 : i32 to vector<144x1xi32>
    %47 = arith.cmpi slt, %22, %46 : vector<144x1xi32>
    %48 = arith.andi %45, %47 : vector<144x1xi1>
    %c0_i32_19 = arith.constant 0 : i32
    %49 = vector.broadcast %c0_i32_19 : i32 to vector<144x1xi32>
    %50 = arith.cmpi sge, %27, %49 : vector<144x1xi32>
    %51 = arith.andi %48, %50 : vector<144x1xi1>
    %c16_i32_20 = arith.constant 16 : i32
    %52 = vector.broadcast %c16_i32_20 : i32 to vector<144x1xi32>
    %53 = arith.cmpi slt, %27, %52 : vector<144x1xi32>
    %54 = arith.andi %51, %53 : vector<144x1xi1>
    %55 = arith.mulf %43, %11 : vector<144x1xf32>
    %cst_21 = arith.constant 0.000000e+00 : f32
    %56 = vector.broadcast %cst_21 : f32 to vector<144x1xf32>
    %57 = arith.select %54, %55, %56 : vector<144x1xi1>, vector<144x1xf32>
    %58 = arith.mulf %16, %21 : vector<144x1xf32>
    %c0_i32_22 = arith.constant 0 : i32
    %59 = vector.broadcast %c0_i32_22 : i32 to vector<144x1xi32>
    %60 = arith.cmpi sge, %25, %59 : vector<144x1xi32>
    %c16_i32_23 = arith.constant 16 : i32
    %61 = vector.broadcast %c16_i32_23 : i32 to vector<144x1xi32>
    %62 = arith.cmpi slt, %25, %61 : vector<144x1xi32>
    %63 = arith.andi %60, %62 : vector<144x1xi1>
    %c0_i32_24 = arith.constant 0 : i32
    %64 = vector.broadcast %c0_i32_24 : i32 to vector<144x1xi32>
    %65 = arith.cmpi sge, %23, %64 : vector<144x1xi32>
    %66 = arith.andi %63, %65 : vector<144x1xi1>
    %c16_i32_25 = arith.constant 16 : i32
    %67 = vector.broadcast %c16_i32_25 : i32 to vector<144x1xi32>
    %68 = arith.cmpi slt, %23, %67 : vector<144x1xi32>
    %69 = arith.andi %66, %68 : vector<144x1xi1>
    %70 = arith.mulf %58, %11 : vector<144x1xf32>
    %cst_26 = arith.constant 0.000000e+00 : f32
    %71 = vector.broadcast %cst_26 : f32 to vector<144x1xf32>
    %72 = arith.select %69, %70, %71 : vector<144x1xi1>, vector<144x1xf32>
    %73 = arith.mulf %16, %17 : vector<144x1xf32>
    %c0_i32_27 = arith.constant 0 : i32
    %74 = vector.broadcast %c0_i32_27 : i32 to vector<144x1xi32>
    %75 = arith.cmpi sge, %25, %74 : vector<144x1xi32>
    %c16_i32_28 = arith.constant 16 : i32
    %76 = vector.broadcast %c16_i32_28 : i32 to vector<144x1xi32>
    %77 = arith.cmpi slt, %25, %76 : vector<144x1xi32>
    %78 = arith.andi %75, %77 : vector<144x1xi1>
    %c0_i32_29 = arith.constant 0 : i32
    %79 = vector.broadcast %c0_i32_29 : i32 to vector<144x1xi32>
    %80 = arith.cmpi sge, %27, %79 : vector<144x1xi32>
    %81 = arith.andi %78, %80 : vector<144x1xi1>
    %c16_i32_30 = arith.constant 16 : i32
    %82 = vector.broadcast %c16_i32_30 : i32 to vector<144x1xi32>
    %83 = arith.cmpi slt, %27, %82 : vector<144x1xi32>
    %84 = arith.andi %81, %83 : vector<144x1xi1>
    %85 = arith.mulf %73, %11 : vector<144x1xf32>
    %cst_31 = arith.constant 0.000000e+00 : f32
    %86 = vector.broadcast %cst_31 : f32 to vector<144x1xf32>
    %87 = arith.select %84, %85, %86 : vector<144x1xi1>, vector<144x1xf32>
    %88 = tpu.iota {dimensions = array<i32: 1>} : vector<144x256xi32>
    %c16_i32_32 = arith.constant 16 : i32
    %89 = vector.broadcast %c16_i32_32 : i32 to vector<144x1xi32>
    %90 = arith.muli %22, %89 : vector<144x1xi32>
    %91 = arith.addi %90, %23 : vector<144x1xi32>
    %92 = vector.broadcast %91 : vector<144x1xi32> to vector<144x256xi32>
    %93 = arith.cmpi eq, %88, %92 : vector<144x256xi32>
    %cst_33 = arith.constant 0.000000e+00 : f32
    %94 = vector.shape_cast %42 : vector<144x1xf32> to vector<144x1xf32>
    %95 = vector.broadcast %94 : vector<144x1xf32> to vector<144x256xf32>
    %96 = vector.broadcast %cst_33 : f32 to vector<144x256xf32>
    %97 = arith.select %93, %95, %96 : vector<144x256xi1>, vector<144x256xf32>
    %c16_i32_34 = arith.constant 16 : i32
    %98 = vector.broadcast %c16_i32_34 : i32 to vector<144x1xi32>
    %99 = arith.muli %22, %98 : vector<144x1xi32>
    %100 = arith.addi %99, %27 : vector<144x1xi32>
    %101 = vector.broadcast %100 : vector<144x1xi32> to vector<144x256xi32>
    %102 = arith.cmpi eq, %88, %101 : vector<144x256xi32>
    %cst_35 = arith.constant 0.000000e+00 : f32
    %103 = vector.shape_cast %57 : vector<144x1xf32> to vector<144x1xf32>
    %104 = vector.broadcast %103 : vector<144x1xf32> to vector<144x256xf32>
    %105 = vector.broadcast %cst_35 : f32 to vector<144x256xf32>
    %106 = arith.select %102, %104, %105 : vector<144x256xi1>, vector<144x256xf32>
    %107 = arith.addf %97, %106 : vector<144x256xf32>
    %c16_i32_36 = arith.constant 16 : i32
    %108 = vector.broadcast %c16_i32_36 : i32 to vector<144x1xi32>
    %109 = arith.muli %25, %108 : vector<144x1xi32>
    %110 = arith.addi %109, %23 : vector<144x1xi32>
    %111 = vector.broadcast %110 : vector<144x1xi32> to vector<144x256xi32>
    %112 = arith.cmpi eq, %88, %111 : vector<144x256xi32>
    %cst_37 = arith.constant 0.000000e+00 : f32
    %113 = vector.shape_cast %72 : vector<144x1xf32> to vector<144x1xf32>
    %114 = vector.broadcast %113 : vector<144x1xf32> to vector<144x256xf32>
    %115 = vector.broadcast %cst_37 : f32 to vector<144x256xf32>
    %116 = arith.select %112, %114, %115 : vector<144x256xi1>, vector<144x256xf32>
    %117 = arith.addf %107, %116 : vector<144x256xf32>
    %c16_i32_38 = arith.constant 16 : i32
    %118 = vector.broadcast %c16_i32_38 : i32 to vector<144x1xi32>
    %119 = arith.muli %25, %118 : vector<144x1xi32>
    %120 = arith.addi %119, %27 : vector<144x1xi32>
    %121 = vector.broadcast %120 : vector<144x1xi32> to vector<144x256xi32>
    %122 = arith.cmpi eq, %88, %121 : vector<144x256xi32>
    %cst_39 = arith.constant 0.000000e+00 : f32
    %123 = vector.shape_cast %87 : vector<144x1xf32> to vector<144x1xf32>
    %124 = vector.broadcast %123 : vector<144x1xf32> to vector<144x256xf32>
    %125 = vector.broadcast %cst_39 : f32 to vector<144x256xf32>
    %126 = arith.select %122, %124, %125 : vector<144x256xi1>, vector<144x256xf32>
    %127 = arith.addf %117, %126 : vector<144x256xf32>
    %c0_40 = arith.constant 0 : index
    %c0_41 = arith.constant 0 : index
    %128 = vector.load %arg9[%c0_40, %c0_41] : memref<256x128xf32, #tpu.memory_space<vmem>>, vector<256x128xf32>
    %cst_42 = arith.constant dense<0.000000e+00> : vector<144x128xf32>
    %129 = tpu.matmul %127, %128, %cst_42 {dimension_numbers = #tpu.dot_dimension_numbers<[1], [0], [0], [1], [0, 0, 1, 1], [], []>} : vector<144x256xf32>, vector<256x128xf32>, vector<144x128xf32> -> vector<144x128xf32>
    %c0_43 = arith.constant 0 : index
    %c0_44 = arith.constant 0 : index
    %130 = vector.load %arg10[%c0_43, %c0_44] : memref<144x128xf32, #tpu.memory_space<vmem>>, vector<144x128xf32>
    %c0_45 = arith.constant 0 : index
    %c0_46 = arith.constant 0 : index
    %c0_47 = arith.constant 0 : index
    %131 = vector.load %arg6[%c0_45, %c0_46, %c0_47] : memref<1x128x128xf32, #tpu.memory_space<vmem>>, vector<1x128x128xf32>
    %132 = vector.shape_cast %131 : vector<1x128x128xf32> to vector<128x128xf32>
    %cst_48 = arith.constant dense<0.000000e+00> : vector<144x128xf32>
    %133 = tpu.matmul %129, %132, %cst_48 {dimension_numbers = #tpu.dot_dimension_numbers<[1], [0], [0], [1], [0, 0, 1, 1], [], []>} : vector<144x128xf32>, vector<128x128xf32>, vector<144x128xf32> -> vector<144x128xf32>
    %134 = arith.addf %130, %133 : vector<144x128xf32>
    %c0_49 = arith.constant 0 : index
    %c0_50 = arith.constant 0 : index
    %135 = vector.load %arg10[%c0_49, %c0_50] : memref<144x128xf32, #tpu.memory_space<vmem>>, vector<144x128xf32>
    tpu.vector_store %arg10[%c0_49, %c0_50], %134 {strides = array<i32>} : memref<144x128xf32, #tpu.memory_space<vmem>>, vector<144x128xf32>,
    %c8_i32 = arith.constant 8 : i32
    %136 = arith.cmpi eq, %arg2, %c8_i32 : i32
    %137 = arith.extui %136 : i1 to i32
    %c0_i32_51 = arith.constant 0 : i32
    %138 = arith.cmpi ne, %137, %c0_i32_51 : i32
    scf.if %138 {
      %c0_52 = arith.constant 0 : index
      %c0_53 = arith.constant 0 : index
      %139 = vector.load %arg10[%c0_52, %c0_53] : memref<144x128xf32, #tpu.memory_space<vmem>>, vector<144x128xf32>
      %c0_54 = arith.constant 0 : index
      %c0_55 = arith.constant 0 : index
      %140 = vector.load %arg7[%c0_54, %c0_55] : memref<1x128xf32, #tpu.memory_space<vmem>>, vector<1x128xf32>
      %141 = vector.broadcast %140 : vector<1x128xf32> to vector<144x128xf32>
      %142 = arith.addf %139, %141 : vector<144x128xf32>
      %c0_56 = arith.constant 0 : index
      %c0_57 = arith.constant 0 : index
      %c0_58 = arith.constant 0 : index
      %143 = vector.load %arg8[%c0_56, %c0_57, %c0_58] : memref<1x144x128xf32, #tpu.memory_space<vmem>>, vector<1x144x128xf32>
      %144 = vector.shape_cast %143 : vector<1x144x128xf32> to vector<144x128xf32>
      %145 = vector.shape_cast %142 : vector<144x128xf32> to vector<1x144x128xf32>
      tpu.vector_store %arg8[%c0_56, %c0_57, %c0_58], %145 {strides = array<i32>} : memref<1x144x128xf32, #tpu.memory_space<vmem>>, vector<1x144x128xf32>,
    } else {
    }
    return
  }
  func.func @transform_1(%arg0: i32, %arg1: i32, %arg2: i32) -> (i32, i32, i32, i32) {
    %c0_i32 = arith.constant 0 : i32
    %c0_i32_0 = arith.constant 0 : i32
    return %arg0, %arg2, %arg1, %c0_i32 : i32, i32, i32, i32
  }
  func.func @transform_2(%arg0: i32, %arg1: i32, %arg2: i32) -> (i32, i32, i32, i32) {
    %c0_i32 = arith.constant 0 : i32
    %c0_i32_0 = arith.constant 0 : i32
    return %arg0, %arg2, %arg1, %c0_i32 : i32, i32, i32, i32
  }
  func.func @transform_3(%arg0: i32, %arg1: i32, %arg2: i32) -> (i32, i32, i32) {
    %c0_i32 = arith.constant 0 : i32
    %c0_i32_0 = arith.constant 0 : i32
    %c0_i32_1 = arith.constant 0 : i32
    return %arg2, %c0_i32, %c0_i32_0 : i32, i32, i32
  }
  func.func @transform_4(%arg0: i32, %arg1: i32, %arg2: i32) -> (i32, i32) {
    %c0_i32 = arith.constant 0 : i32
    %c0_i32_0 = arith.constant 0 : i32
    %c0_i32_1 = arith.constant 0 : i32
    return %c0_i32, %c0_i32_0 : i32, i32
  }
  func.func @transform_5(%arg0: i32, %arg1: i32, %arg2: i32) -> (i32, i32, i32) {
    %c0_i32 = arith.constant 0 : i32
    %c0_i32_0 = arith.constant 0 : i32
    return %arg0, %arg1, %c0_i32 : i32, i32, i32
  }
}

</mosaic_0001>

<llo_original>
// kernel: deformable_conv2d_forward.1
$region0: #{deformable_conv2d_forward.1}
  #allocation0 [shape = 'u32[]', space=smem, size = 0x4, offset = 0x4, fixed_abs, tag = 'smem constant byte address 0x4 - core index']
  #allocation1 [shape = 'u32[72,128]{1,0:T(1,128)}', space=vmem, size = 0x9000, scoped, tag = 'internal scratch']
  #allocation2 [shape = 'f32[256,128]{1,0:T(8,128)}', space=vmem, size = 0x20000, scoped, tag = 'scratch operand']
  #allocation3 [shape = 'f32[144,128]{1,0:T(8,128)}', space=vmem, size = 0x12000, scoped, tag = 'scratch operand']
  #allocation4 [shape = 's32[1]{0}', space=sflag, size = 0x4, scoped, tag = 'scratch operand']
  #allocation5 [shape = 's32[]', space=sflag, size = 0x4, offset = 0, fixed_abs, tag = 'sflag constant byte address 0x0 - dummy sync flag']
  %s0 = inlined_call_operand.vmem [shape: f32[2,256,128], index: 0, kind: input, shape index: {}]
  %s1 = inlined_call_operand.vmem [shape: f32[2,9,144,2], index: 1, kind: input, shape index: {}]
  %s2 = inlined_call_operand.vmem [shape: f32[2,9,144,1], index: 2, kind: input, shape index: {}]
  %s3 = inlined_call_operand.vmem [shape: f32[9,128,128], index: 3, kind: input, shape index: {}]
  %s4 = inlined_call_operand.vmem [shape: f32[1,128], index: 4, kind: input, shape index: {}]
  %s5 = inlined_call_operand.vmem [shape: f32[2,144,128], index: 5, kind: output, shape index: {}]
  %s6 = sld [smem:[#allocation0]]
  $region80: #{deformable_conv2d_forward.1} parent=0
    _
  %s8 = ssub.s32 1, %s6
  %s9 = scalar_select 0, %s8, %s6
  loop: start=0, step=1, limit=20
  $region2: #{deformable_conv2d_forward.1} parent=0 // loop_pre_header
    _
  $region3: #{deformable_conv2d_forward.1} parent=0 // loop_header
    %s11 = sphi 0, %s15
    %p12 = scmp.ge.s32.totalorder %s11, 20
    %s18 = sphi 0, %s37
    %s19 = sphi 0, %s33
    %s20 = sphi 0, %s29
    %s21 = sphi 0, %s18
    %s22 = sphi 0, %s19
    %s23 = sphi 0, %s20
    %s24 = sphi 0, %s21
    %s25 = sphi 0, %s22
    %s26 = sphi 0, %s23
    %s44 = sphi 0, %s46
    %s47 = sphi 0, %s44
    %s48 = sphi 0, %s47
    %s64 = sphi 0, %s48
    %s74 = sphi 0, %s76
    %s77 = sphi 0, %s74
    %s78 = sphi 0, %s77
    %s94 = sphi 0, %s78
    %s100 = sphi 0, %s102
    %s103 = sphi 0, %s100
    %s104 = sphi 0, %s103
    %s120 = sphi 0, %s104
    %s124 = sphi 0, %s124
    %s126 = sphi 0, %s124
    %s127 = sphi 0, %s126
    %s141 = sphi 0, %s127
    %s149 = sphi 0, %s151
    %s152 = sphi 0, %s149
    %s153 = sphi 0, %s152
    %s169 = sphi 0, %s153
  $region4: #{deformable_conv2d_forward.1} parent=0 // loop_header_branch
    %14 = sbr.rel (%p12) target = $region8
  $region5: #{deformable_conv2d_forward.1} parent=0 // loop_body
    %s16 = ssub.s32 %s11, 1
    %s17 = ssub.s32 %s11, 2
    %s27 = sadd.s32 1, %s20
    %p28 = scmp.ge.s32.totalorder %s27, 9
    %s29 = scalar_select %p28, 0, %s27
    %s30 = sadd.s32 1, %s19
    %s31 = scalar_select %p28, %s30, %s19
    %p32 = scmp.ge.s32.totalorder %s31, 1
    %s33 = scalar_select %p32, 0, %s31
    %s34 = sadd.s32 1, %s18
    %s35 = scalar_select %p32, %s34, %s18
    %p36 = scmp.ge.s32.totalorder %s35, 2
    %s37 = scalar_select %p36, 0, %s35
    %s38 = ssub.s32 %s18, %s37
    %s39 = ssub.s32 %s20, %s29
    %s40 = sor.u32 %s38, %s39
    %s41 = ssub.s32 %s19, %s33
    %s42 = sor.u32 %s40, %s41
    %p43 = scmp.eq.s32.totalorder %s42, 0
    %s45 = sadd.s32 %s44, 1
    %s46 = scalar_select %p43, %s44, %s45
    %p49 = pneg %p43
    %p50 = scmp.eq.s32.totalorder %s11, 17
    %p51 = por %p49, %p50
    %p52 = scmp.ne.s32.totalorder %s44, %s47
    %p53 = scmp.eq.s32.totalorder %s11, 0
    %p54 = por %p52, %p53
    %p55 = scmp.ne.s32.totalorder %s44, %s47
    %p56 = scmp.eq.s32.totalorder %s16, 17
    %p57 = por %p55, %p56
    %p58 = scmp.ne.s32.totalorder %s47, %s48
    %p59 = scmp.eq.s32.totalorder %s16, 0
    %p60 = por %p58, %p59
    %p61 = scmp.ne.s32.totalorder %s47, %s48
    %p62 = scmp.eq.s32.totalorder %s17, 17
    %p63 = por %p61, %p62
    %p65 = scmp.ne.s32.totalorder %s48, %s64
    %p66 = scmp.eq.s32.totalorder %s17, 0
    %p67 = por %p65, %p66
    %s68 = ssub.s32 %s18, %s37
    %s69 = ssub.s32 %s20, %s29
    %s70 = sor.u32 %s68, %s69
    %s71 = ssub.s32 %s19, %s33
    %s72 = sor.u32 %s70, %s71
    %p73 = scmp.eq.s32.totalorder %s72, 0
    %s75 = sadd.s32 %s74, 1
    %s76 = scalar_select %p73, %s74, %s75
    %p79 = pneg %p73
    %p80 = scmp.eq.s32.totalorder %s11, 17
    %p81 = por %p79, %p80
    %p82 = scmp.ne.s32.totalorder %s74, %s77
    %p83 = scmp.eq.s32.totalorder %s11, 0
    %p84 = por %p82, %p83
    %p85 = scmp.ne.s32.totalorder %s74, %s77
    %p86 = scmp.eq.s32.totalorder %s16, 17
    %p87 = por %p85, %p86
    %p88 = scmp.ne.s32.totalorder %s77, %s78
    %p89 = scmp.eq.s32.totalorder %s16, 0
    %p90 = por %p88, %p89
    %p91 = scmp.ne.s32.totalorder %s77, %s78
    %p92 = scmp.eq.s32.totalorder %s17, 17
    %p93 = por %p91, %p92
    %p95 = scmp.ne.s32.totalorder %s78, %s94
    %p96 = scmp.eq.s32.totalorder %s17, 0
    %p97 = por %p95, %p96
    %s98 = ssub.s32 %s20, %s29
    %p99 = scmp.eq.s32.totalorder %s98, 0
    %s101 = sadd.s32 %s100, 1
    %s102 = scalar_select %p99, %s100, %s101
    %p105 = pneg %p99
    %p106 = scmp.eq.s32.totalorder %s11, 17
    %p107 = por %p105, %p106
    %p108 = scmp.ne.s32.totalorder %s100, %s103
    %p109 = scmp.eq.s32.totalorder %s11, 0
    %p110 = por %p108, %p109
    %p111 = scmp.ne.s32.totalorder %s100, %s103
    %p112 = scmp.eq.s32.totalorder %s16, 17
    %p113 = por %p111, %p112
    %p114 = scmp.ne.s32.totalorder %s103, %s104
    %p115 = scmp.eq.s32.totalorder %s16, 0
    %p116 = por %p114, %p115
    %p117 = scmp.ne.s32.totalorder %s103, %s104
    %p118 = scmp.eq.s32.totalorder %s17, 17
    %p119 = por %p117, %p118
    %p121 = scmp.ne.s32.totalorder %s104, %s120
    %p122 = scmp.eq.s32.totalorder %s17, 0
    %p123 = por %p121, %p122
    %s125 = sadd.s32 %s124, 1
    %p128 = scmp.eq.s32.totalorder %s11, 17
    %p129 = scmp.ne.s32.totalorder %s124, %s126
    %p130 = scmp.eq.s32.totalorder %s11, 0
    %p131 = por %p129, %p130
    %p132 = scmp.ne.s32.totalorder %s124, %s126
    %p133 = scmp.eq.s32.totalorder %s16, 17
    %p134 = por %p132, %p133
    %p135 = scmp.ne.s32.totalorder %s126, %s127
    %p136 = scmp.eq.s32.totalorder %s16, 0
    %p137 = por %p135, %p136
    %p138 = scmp.ne.s32.totalorder %s126, %s127
    %p139 = scmp.eq.s32.totalorder %s17, 17
    %p140 = por %p138, %p139
    %p142 = scmp.ne.s32.totalorder %s127, %s141
    %p143 = scmp.eq.s32.totalorder %s17, 0
    %p144 = por %p142, %p143
    %s145 = ssub.s32 %s18, %s37
    %s146 = ssub.s32 %s19, %s33
    %s147 = sor.u32 %s145, %s146
    %p148 = scmp.eq.s32.totalorder %s147, 0
    %s150 = sadd.s32 %s149, 1
    %s151 = scalar_select %p148, %s149, %s150
    %p154 = pneg %p148
    %p155 = scmp.eq.s32.totalorder %s11, 17
    %p156 = por %p154, %p155
    %p157 = scmp.ne.s32.totalorder %s149, %s152
    %p158 = scmp.eq.s32.totalorder %s11, 0
    %p159 = por %p157, %p158
    %p160 = scmp.ne.s32.totalorder %s149, %s152
    %p161 = scmp.eq.s32.totalorder %s16, 17
    %p162 = por %p160, %p161
    %p163 = scmp.ne.s32.totalorder %s152, %s153
    %p164 = scmp.eq.s32.totalorder %s16, 0
    %p165 = por %p163, %p164
    %p166 = scmp.ne.s32.totalorder %s152, %s153
    %p167 = scmp.eq.s32.totalorder %s17, 17
    %p168 = por %p166, %p167
    %p170 = scmp.ne.s32.totalorder %s153, %s169
    %p171 = scmp.eq.s32.totalorder %s17, 0
    %p172 = por %p170, %p171
    %p173 = scmp.le.s32.totalorder 1, %s11
    %p174 = scmp.lt.s32.totalorder %s11, 19
    %p175 = pnand %p173, %p174
    %p176 = pneg %p175
    // Predicated region
    $region9: #{deformable_conv2d_forward.1} parent=5 // pred_check
      _
    $region10: #{deformable_conv2d_forward.1} parent=5 // pred_check_branch
      %178 = sbr.rel (%p175) target = $region12
    $region11: #{deformable_conv2d_forward.1} parent=5 // pred_region
      %s179 = ssub.s32 %s11, 1
      // Predicated region
      $region13: #{deformable_conv2d_forward.1} parent=11 // pred_check
        %p180 = pneg %p137
      $region14: #{deformable_conv2d_forward.1} parent=11 // pred_check_branch
        %182 = sbr.rel (%p180) target = $region16
      $region15: #{deformable_conv2d_forward.1} parent=11 // pred_region
        _
      $region16: #{deformable_conv2d_forward.1} parent=11 // pred_fallthru
        _
    $region12: #{deformable_conv2d_forward.1} parent=5 // pred_fallthru
      _
    %p183 = scmp.lt.s32.totalorder %s11, 18
    // Predicated region
    $region17: #{deformable_conv2d_forward.1} parent=5 // pred_check
      %p184 = pneg %p183
    $region18: #{deformable_conv2d_forward.1} parent=5 // pred_check_branch
      %186 = sbr.rel (%p184) target = $region20
    $region19: #{deformable_conv2d_forward.1} parent=5 // pred_region
      // Predicated region
      $region21: #{deformable_conv2d_forward.1} parent=19 // pred_check
        %p187 = pneg %p54
      $region22: #{deformable_conv2d_forward.1} parent=19 // pred_check_branch
        %189 = sbr.rel (%p187) target = $region24
      $region23: #{deformable_conv2d_forward.1} parent=19 // pred_region
        %s190 = smul.u32 18, %s19
        %p191 = scmp.lt.s32.totalorder %s18, 1
        %s192 = scalar_select %p191, %s18, 1
        %p193 = scmp.lt.s32.totalorder %s20, 8
        %s194 = scalar_select %p193, %s20, 8
        %p195 = scmp.lt.s32.totalorder %s190, 17
        %s196 = scalar_select %p195, %s190, 17
        %s197 = smul.addr %s194, 18
        %s198 = sadd.s32 %s196, %s197
        %s199 = smul.addr %s192, 162
        %s200 = sadd.s32 %s198, %s199
        %s201 = smul.addr %s200, 8
        %s202 = scalar_lea.vmem %s1, %s201
        %s203 = smul.u32 18, %s19
      $region24: #{deformable_conv2d_forward.1} parent=19 // pred_fallthru
        _
      // Predicated region
      $region25: #{deformable_conv2d_forward.1} parent=19 // pred_check
        %p204 = pneg %p84
      $region26: #{deformable_conv2d_forward.1} parent=19 // pred_check_branch
        %206 = sbr.rel (%p204) target = $region28
      $region27: #{deformable_conv2d_forward.1} parent=19 // pred_region
        %s207 = smul.u32 18, %s19
        %p208 = scmp.lt.s32.totalorder %s18, 1
        %s209 = scalar_select %p208, %s18, 1
        %p210 = scmp.lt.s32.totalorder %s20, 8
        %s211 = scalar_select %p210, %s20, 8
        %p212 = scmp.lt.s32.totalorder %s207, 17
        %s213 = scalar_select %p212, %s207, 17
        %s214 = smul.addr %s211, 18
        %s215 = sadd.s32 %s213, %s214
        %s216 = smul.addr %s209, 162
        %s217 = sadd.s32 %s215, %s216
        %s218 = smul.addr %s217, 8
        %s219 = scalar_lea.vmem %s2, %s218
        %s220 = smul.u32 18, %s19
      $region28: #{deformable_conv2d_forward.1} parent=19 // pred_fallthru
        _
      // Predicated region
      $region29: #{deformable_conv2d_forward.1} parent=19 // pred_check
        %p221 = pneg %p110
      $region30: #{deformable_conv2d_forward.1} parent=19 // pred_check_branch
        %223 = sbr.rel (%p221) target = $region32
      $region31: #{deformable_conv2d_forward.1} parent=19 // pred_region
        %p224 = scmp.lt.s32.totalorder %s20, 8
        %s225 = scalar_select %p224, %s20, 8
        %s226 = smul.addr %s225, 16
        %s227 = smul.addr %s226, 8
        %s228 = scalar_lea.vmem %s3, %s227
      $region32: #{deformable_conv2d_forward.1} parent=19 // pred_fallthru
        _
    $region20: #{deformable_conv2d_forward.1} parent=5 // pred_fallthru
      _
    %p229 = scmp.le.s32.totalorder 1, %s11
    %p230 = scmp.lt.s32.totalorder %s11, 19
    %p231 = pnand %p229, %p230
    %p232 = pneg %p231
    // Predicated region
    $region33: #{deformable_conv2d_forward.1} parent=5 // pred_check
      _
    $region34: #{deformable_conv2d_forward.1} parent=5 // pred_check_branch
      %234 = sbr.rel (%p231) target = $region36
    $region35: #{deformable_conv2d_forward.1} parent=5 // pred_region
      %s235 = ssub.s32 %s11, 1
      %s236 = smul.u32 18, %s22
      %p237 = scmp.lt.s32.totalorder %s21, 1
      %s238 = scalar_select %p237, %s21, 1
      %p239 = scmp.lt.s32.totalorder %s23, 8
      %s240 = scalar_select %p239, %s23, 8
      %p241 = scmp.lt.s32.totalorder %s236, 17
      %s242 = scalar_select %p241, %s236, 17
      %s243 = smul.addr %s240, 18
      %s244 = sadd.s32 %s242, %s243
      %s245 = smul.addr %s238, 162
      %s246 = sadd.s32 %s244, %s245
      %s247 = smul.addr %s246, 8
      %s248 = scalar_lea.vmem %s1, %s247
      %p249 = pneg %p60
      %p250 = pneg %p57
      %s251 = smul.u32 18, %s22
      %p252 = scmp.lt.s32.totalorder %s21, 1
      %s253 = scalar_select %p252, %s21, 1
      %p254 = scmp.lt.s32.totalorder %s23, 8
      %s255 = scalar_select %p254, %s23, 8
      %p256 = scmp.lt.s32.totalorder %s251, 17
      %s257 = scalar_select %p256, %s251, 17
      %s258 = smul.addr %s255, 18
      %s259 = sadd.s32 %s257, %s258
      %s260 = smul.addr %s253, 162
      %s261 = sadd.s32 %s259, %s260
      %s262 = smul.addr %s261, 8
      %s263 = scalar_lea.vmem %s2, %s262
      %p264 = pneg %p90
      %p265 = pneg %p87
      %p266 = scmp.lt.s32.totalorder %s23, 8
      %s267 = scalar_select %p266, %s23, 8
      %s268 = smul.addr %s267, 16
      %s269 = smul.addr %s268, 8
      %s270 = scalar_lea.vmem %s3, %s269
      %p271 = pneg %p116
      %p272 = pneg %p113
      %p273 = pneg %p137
      %p274 = pneg %p134
      %p275 = pneg %p165
      %p276 = pneg %p162
      %s277 = smul.u32 18, %s22
      %p278 = scmp.lt.s32.totalorder %s21, 1
      %s279 = scalar_select %p278, %s21, 1
      %p280 = scmp.lt.s32.totalorder %s277, 17
      %s281 = scalar_select %p280, %s277, 17
      %s282 = smul.addr %s279, 18
      %s283 = sadd.s32 %s281, %s282
      %s284 = smul.addr %s283, 8
      %s285 = scalar_lea.vmem %s5, %s284
      %s286 = smul.u32 18, %s22
      %p287 = scmp.lt.s32.totalorder %s21, 1
      %s288 = scalar_select %p287, %s21, 1
      %p289 = scmp.lt.s32.totalorder %s23, 8
      %s290 = scalar_select %p289, %s23, 8
      %p291 = scmp.lt.s32.totalorder %s286, 17
      %s292 = scalar_select %p291, %s286, 17
      %s293 = smul.addr %s290, 18
      %s294 = sadd.s32 %s292, %s293
      %s295 = smul.addr %s288, 162
      %s296 = sadd.s32 %s294, %s295
      %s297 = smul.addr %s296, 8
      %s298 = scalar_lea.vmem %s1, %s297
      %s299 = smul.u32 18, %s22
      %s300 = smul.u32 18, %s22
      %p301 = scmp.lt.s32.totalorder %s21, 1
      %s302 = scalar_select %p301, %s21, 1
      %p303 = scmp.lt.s32.totalorder %s23, 8
      %s304 = scalar_select %p303, %s23, 8
      %p305 = scmp.lt.s32.totalorder %s300, 17
      %s306 = scalar_select %p305, %s300, 17
      %s307 = smul.addr %s304, 18
      %s308 = sadd.s32 %s306, %s307
      %s309 = smul.addr %s302, 162
      %s310 = sadd.s32 %s308, %s309
      %s311 = smul.addr %s310, 8
      %s312 = scalar_lea.vmem %s2, %s311
      %s313 = smul.u32 18, %s22
      %p314 = scmp.lt.s32.totalorder %s23, 8
      %s315 = scalar_select %p314, %s23, 8
      %s316 = smul.addr %s315, 16
      %s317 = smul.addr %s316, 8
      %s318 = scalar_lea.vmem %s3, %s317
      %s319 = smul.u32 18, %s22
      %p320 = scmp.lt.s32.totalorder %s21, 1
      %s321 = scalar_select %p320, %s21, 1
      %p322 = scmp.lt.s32.totalorder %s319, 17
      %s323 = scalar_select %p322, %s319, 17
      %s324 = smul.addr %s321, 18
      %s325 = sadd.s32 %s323, %s324
      %s326 = smul.addr %s325, 8
      %s327 = scalar_lea.vmem %s5, %s326
      %s328 = smul.u32 18, %s22
      %p329 = scmp.eq.s32.totalorder %s22, 0
      %p330 = scmp.eq.s32.totalorder %s23, 0
      %p331 = pnand %p329, %p330
      %p332 = pneg %p331
      // Predicated region
      $region37: #{deformable_conv2d_forward.1} parent=35 // pred_check
        _
      $region38: #{deformable_conv2d_forward.1} parent=35 // pred_check_branch
        %334 = sbr.rel (%p331) target = $region40
      $region39: #{deformable_conv2d_forward.1} parent=35 // pred_region
        %s335 = smul.u32 %s21, 256
        %s336 = scalar_lea.vmem %s0, %s335
        // Predicated region
        $region41: #{deformable_conv2d_forward.1} parent=39 // pred_check
          _
        $region42: #{deformable_conv2d_forward.1} parent=39 // pred_check_branch
          %338 = sbr.rel (0) target = $region44
        $region43: #{deformable_conv2d_forward.1} parent=39 // pred_region
          loop: start=0, step=1, limit=1
          $region45: #{deformable_conv2d_forward.1} parent=43 // loop_pre_header
            _
          $region46: #{deformable_conv2d_forward.1} parent=43 // loop_header
            %s340 = sphi 0, %s344
            %p341 = scmp.ge.s32.totalorder %s340, 1
            %s345 = sphi %s336, %s336
            %s346 = sphi [#allocation2], [#allocation2]
          $region47: #{deformable_conv2d_forward.1} parent=43 // loop_header_branch
            %343 = sbr.rel (%p341) target = $region51
          $region48: #{deformable_conv2d_forward.1} parent=43 // loop_body
            %v347 = vld [vmem:[%s345] sm:$0xff]
            %348 = vst [vmem:[%s346] sm:$0xff] %v347
            %v349 = vld [vmem:[%s345 + $0x8] sm:$0xff]
            %350 = vst [vmem:[%s346 + $0x8] sm:$0xff] %v349
            %v351 = vld [vmem:[%s345 + $0x10] sm:$0xff]
            %352 = vst [vmem:[%s346 + $0x10] sm:$0xff] %v351
            %v353 = vld [vmem:[%s345 + $0x18] sm:$0xff]
            %354 = vst [vmem:[%s346 + $0x18] sm:$0xff] %v353
            %v355 = vld [vmem:[%s345 + $0x20] sm:$0xff]
            %356 = vst [vmem:[%s346 + $0x20] sm:$0xff] %v355
            %v357 = vld [vmem:[%s345 + $0x28] sm:$0xff]
            %358 = vst [vmem:[%s346 + $0x28] sm:$0xff] %v357
            %v359 = vld [vmem:[%s345 + $0x30] sm:$0xff]
            %360 = vst [vmem:[%s346 + $0x30] sm:$0xff] %v359
            %v361 = vld [vmem:[%s345 + $0x38] sm:$0xff]
            %362 = vst [vmem:[%s346 + $0x38] sm:$0xff] %v361
            %v363 = vld [vmem:[%s345 + $0x40] sm:$0xff]
            %364 = vst [vmem:[%s346 + $0x40] sm:$0xff] %v363
            %v365 = vld [vmem:[%s345 + $0x48] sm:$0xff]
            %366 = vst [vmem:[%s346 + $0x48] sm:$0xff] %v365
            %v367 = vld [vmem:[%s345 + $0x50] sm:$0xff]
            %368 = vst [vmem:[%s346 + $0x50] sm:$0xff] %v367
            %v369 = vld [vmem:[%s345 + $0x58] sm:$0xff]
            %370 = vst [vmem:[%s346 + $0x58] sm:$0xff] %v369
            %v371 = vld [vmem:[%s345 + $0x60] sm:$0xff]
            %372 = vst [vmem:[%s346 + $0x60] sm:$0xff] %v371
            %v373 = vld [vmem:[%s345 + $0x68] sm:$0xff]
            %374 = vst [vmem:[%s346 + $0x68] sm:$0xff] %v373
            %v375 = vld [vmem:[%s345 + $0x70] sm:$0xff]
            %376 = vst [vmem:[%s346 + $0x70] sm:$0xff] %v375
            %v377 = vld [vmem:[%s345 + $0x78] sm:$0xff]
            %378 = vst [vmem:[%s346 + $0x78] sm:$0xff] %v377
            %v379 = vld [vmem:[%s345 + $0x80] sm:$0xff]
            %380 = vst [vmem:[%s346 + $0x80] sm:$0xff] %v379
            %v381 = vld [vmem:[%s345 + $0x88] sm:$0xff]
            %382 = vst [vmem:[%s346 + $0x88] sm:$0xff] %v381
            %v383 = vld [vmem:[%s345 + $0x90] sm:$0xff]
            %384 = vst [vmem:[%s346 + $0x90] sm:$0xff] %v383
            %v385 = vld [vmem:[%s345 + $0x98] sm:$0xff]
            %386 = vst [vmem:[%s346 + $0x98] sm:$0xff] %v385
            %v387 = vld [vmem:[%s345 + $0xa0] sm:$0xff]
            %388 = vst [vmem:[%s346 + $0xa0] sm:$0xff] %v387
            %v389 = vld [vmem:[%s345 + $0xa8] sm:$0xff]
            %390 = vst [vmem:[%s346 + $0xa8] sm:$0xff] %v389
            %v391 = vld [vmem:[%s345 + $0xb0] sm:$0xff]
            %392 = vst [vmem:[%s346 + $0xb0] sm:$0xff] %v391
            %v393 = vld [vmem:[%s345 + $0xb8] sm:$0xff]
            %394 = vst [vmem:[%s346 + $0xb8] sm:$0xff] %v393
            %v395 = vld [vmem:[%s345 + $0xc0] sm:$0xff]
            %396 = vst [vmem:[%s346 + $0xc0] sm:$0xff] %v395
            %v397 = vld [vmem:[%s345 + $0xc8] sm:$0xff]
            %398 = vst [vmem:[%s346 + $0xc8] sm:$0xff] %v397
            %v399 = vld [vmem:[%s345 + $0xd0] sm:$0xff]
            %400 = vst [vmem:[%s346 + $0xd0] sm:$0xff] %v399
            %v401 = vld [vmem:[%s345 + $0xd8] sm:$0xff]
            %402 = vst [vmem:[%s346 + $0xd8] sm:$0xff] %v401
            %v403 = vld [vmem:[%s345 + $0xe0] sm:$0xff]
            %404 = vst [vmem:[%s346 + $0xe0] sm:$0xff] %v403
            %v405 = vld [vmem:[%s345 + $0xe8] sm:$0xff]
            %406 = vst [vmem:[%s346 + $0xe8] sm:$0xff] %v405
            %v407 = vld [vmem:[%s345 + $0xf0] sm:$0xff]
            %408 = vst [vmem:[%s346 + $0xf0] sm:$0xff] %v407
            %v409 = vld [vmem:[%s345 + $0xf8] sm:$0xff]
            %410 = vst [vmem:[%s346 + $0xf8] sm:$0xff] %v409
          $region49: #{deformable_conv2d_forward.1} parent=43 // loop_footer
            %s344 = sadd.s32 1, %s340
          $region50: #{deformable_conv2d_forward.1} parent=43 // loop_footer_branch
            %339 = sbr.rel target = $region46
          $region51: #{deformable_conv2d_forward.1} parent=43 // loop_exit
            _
        $region44: #{deformable_conv2d_forward.1} parent=39 // pred_fallthru
          _
        // Predicated region
        $region52: #{deformable_conv2d_forward.1} parent=39 // pred_check
          _
        $region53: #{deformable_conv2d_forward.1} parent=39 // pred_check_branch
          %412 = sbr.rel target = $region55
        $region54: #{deformable_conv2d_forward.1} parent=39 // pred_region
          _
        $region55: #{deformable_conv2d_forward.1} parent=39 // pred_fallthru
          _
        // Predicated region
        $region56: #{deformable_conv2d_forward.1} parent=39 // pred_check
          _
        $region57: #{deformable_conv2d_forward.1} parent=39 // pred_check_branch
          %415 = sbr.rel (0) target = $region59
        $region58: #{deformable_conv2d_forward.1} parent=39 // pred_region
          %416 = vsyncadd [#allocation4], 4096
        $region59: #{deformable_conv2d_forward.1} parent=39 // pred_fallthru
          _
        %s417 = smul.u32 256, 1
        %s418 = sshll.u32 %s417, 4
        %419 = dma.done [#allocation4], %s418
      $region40: #{deformable_conv2d_forward.1} parent=35 // pred_fallthru
        _
      // Predicated region
      $region60: #{deformable_conv2d_forward.1} parent=35 // pred_check
        %p420 = pneg %p330
      $region61: #{deformable_conv2d_forward.1} parent=35 // pred_check_branch
        %422 = sbr.rel (%p420) target = $region63
      $region62: #{deformable_conv2d_forward.1} parent=35 // pred_region
        %423 = vst [vmem:[#allocation3] sm:$0xff] 0.0
        %424 = vst [vmem:[#allocation3 + $0x8] sm:$0xff] 0.0
        %425 = vst [vmem:[#allocation3 + $0x10] sm:$0xff] 0.0
        %426 = vst [vmem:[#allocation3 + $0x18] sm:$0xff] 0.0
        %427 = vst [vmem:[#allocation3 + $0x20] sm:$0xff] 0.0
        %428 = vst [vmem:[#allocation3 + $0x28] sm:$0xff] 0.0
        %429 = vst [vmem:[#allocation3 + $0x30] sm:$0xff] 0.0
        %430 = vst [vmem:[#allocation3 + $0x38] sm:$0xff] 0.0
        %431 = vst [vmem:[#allocation3 + $0x40] sm:$0xff] 0.0
        %432 = vst [vmem:[#allocation3 + $0x48] sm:$0xff] 0.0
        %433 = vst [vmem:[#allocation3 + $0x50] sm:$0xff] 0.0
        %434 = vst [vmem:[#allocation3 + $0x58] sm:$0xff] 0.0
        %435 = vst [vmem:[#allocation3 + $0x60] sm:$0xff] 0.0
        %436 = vst [vmem:[#allocation3 + $0x68] sm:$0xff] 0.0
        %437 = vst [vmem:[#allocation3 + $0x70] sm:$0xff] 0.0
        %438 = vst [vmem:[#allocation3 + $0x78] sm:$0xff] 0.0
        %439 = vst [vmem:[#allocation3 + $0x80] sm:$0xff] 0.0
        %440 = vst [vmem:[#allocation3 + $0x88] sm:$0xff] 0.0
      $region63: #{deformable_conv2d_forward.1} parent=35 // pred_fallthru
        _
      %v441 = vld [vmem:[%s298] sm:$0xff]
      %v442 = vld [vmem:[%s298 + $0x8] sm:$0xff]
      %v443 = vld [vmem:[%s298 + $0x10] sm:$0xff]
      %v444 = vld [vmem:[%s298 + $0x18] sm:$0xff]
      %v445 = vld [vmem:[%s298 + $0x20] sm:$0xff]
      %v446 = vld [vmem:[%s298 + $0x28] sm:$0xff]
      %v447 = vld [vmem:[%s298 + $0x30] sm:$0xff]
      %v448 = vld [vmem:[%s298 + $0x38] sm:$0xff]
      %v449 = vld [vmem:[%s298 + $0x40] sm:$0xff]
      %v450 = vld [vmem:[%s298 + $0x48] sm:$0xff]
      %v451 = vld [vmem:[%s298 + $0x50] sm:$0xff]
      %v452 = vld [vmem:[%s298 + $0x58] sm:$0xff]
      %v453 = vld [vmem:[%s298 + $0x60] sm:$0xff]
      %v454 = vld [vmem:[%s298 + $0x68] sm:$0xff]
      %v455 = vld [vmem:[%s298 + $0x70] sm:$0xff]
      %v456 = vld [vmem:[%s298 + $0x78] sm:$0xff]
      %v457 = vld [vmem:[%s298 + $0x80] sm:$0xff]
      %v458 = vld [vmem:[%s298 + $0x88] sm:$0xff]
      %v459 = vld [vmem:[%s312] sm:$0xff]
      %v460 = vld [vmem:[%s312 + $0x8] sm:$0xff]
      %v461 = vld [vmem:[%s312 + $0x10] sm:$0xff]
      %v462 = vld [vmem:[%s312 + $0x18] sm:$0xff]
      %v463 = vld [vmem:[%s312 + $0x20] sm:$0xff]
      %v464 = vld [vmem:[%s312 + $0x28] sm:$0xff]
      %v465 = vld [vmem:[%s312 + $0x30] sm:$0xff]
      %v466 = vld [vmem:[%s312 + $0x38] sm:$0xff]
      %v467 = vld [vmem:[%s312 + $0x40] sm:$0xff]
      %v468 = vld [vmem:[%s312 + $0x48] sm:$0xff]
      %v469 = vld [vmem:[%s312 + $0x50] sm:$0xff]
      %v470 = vld [vmem:[%s312 + $0x58] sm:$0xff]
      %v471 = vld [vmem:[%s312 + $0x60] sm:$0xff]
      %v472 = vld [vmem:[%s312 + $0x68] sm:$0xff]
      %v473 = vld [vmem:[%s312 + $0x70] sm:$0xff]
      %v474 = vld [vmem:[%s312 + $0x78] sm:$0xff]
      %v475 = vld [vmem:[%s312 + $0x80] sm:$0xff]
      %v476 = vld [vmem:[%s312 + $0x88] sm:$0xff]
      %v477 = vfloor.f32 %v441
      %v478 = vfloor.f32 %v442
      %v479 = vfloor.f32 %v443
      %v480 = vfloor.f32 %v444
      %v481 = vfloor.f32 %v445
      %v482 = vfloor.f32 %v446
      %v483 = vfloor.f32 %v447
      %v484 = vfloor.f32 %v448
      %v485 = vfloor.f32 %v449
      %v486 = vfloor.f32 %v450
      %v487 = vfloor.f32 %v451
      %v488 = vfloor.f32 %v452
      %v489 = vfloor.f32 %v453
      %v490 = vfloor.f32 %v454
      %v491 = vfloor.f32 %v455
      %v492 = vfloor.f32 %v456
      %v493 = vfloor.f32 %v457
      %v494 = vfloor.f32 %v458
      %v495 = vsub.f32 %v441, %v477
      %v496 = vsub.f32 %v442, %v478
      %v497 = vsub.f32 %v443, %v479
      %v498 = vsub.f32 %v444, %v480
      %v499 = vsub.f32 %v445, %v481
      %v500 = vsub.f32 %v446, %v482
      %v501 = vsub.f32 %v447, %v483
      %v502 = vsub.f32 %v448, %v484
      %v503 = vsub.f32 %v449, %v485
      %v504 = vsub.f32 %v450, %v486
      %v505 = vsub.f32 %v451, %v487
      %v506 = vsub.f32 %v452, %v488
      %v507 = vsub.f32 %v453, %v489
      %v508 = vsub.f32 %v454, %v490
      %v509 = vsub.f32 %v455, %v491
      %v510 = vsub.f32 %v456, %v492
      %v511 = vsub.f32 %v457, %v493
      %v512 = vsub.f32 %v458, %v494
      %v513 = vsub.f32 1.0, %v495
      %v514 = vsub.f32 1.0, %v496
      %v515 = vsub.f32 1.0, %v497
      %v516 = vsub.f32 1.0, %v498
      %v517 = vsub.f32 1.0, %v499
      %v518 = vsub.f32 1.0, %v500
      %v519 = vsub.f32 1.0, %v501
      %v520 = vsub.f32 1.0, %v502
      %v521 = vsub.f32 1.0, %v503
      %v522 = vsub.f32 1.0, %v504
      %v523 = vsub.f32 1.0, %v505
      %v524 = vsub.f32 1.0, %v506
      %v525 = vsub.f32 1.0, %v507
      %v526 = vsub.f32 1.0, %v508
      %v527 = vsub.f32 1.0, %v509
      %v528 = vsub.f32 1.0, %v510
      %v529 = vsub.f32 1.0, %v511
      %v530 = vsub.f32 1.0, %v512
      %v531 = vcvt.f32.s32.to.zero.pseudo %v477
      %v532 = vcvt.f32.s32.to.zero.pseudo %v478
      %v533 = vcvt.f32.s32.to.zero.pseudo %v479
      %v534 = vcvt.f32.s32.to.zero.pseudo %v480
      %v535 = vcvt.f32.s32.to.zero.pseudo %v481
      %v536 = vcvt.f32.s32.to.zero.pseudo %v482
      %v537 = vcvt.f32.s32.to.zero.pseudo %v483
      %v538 = vcvt.f32.s32.to.zero.pseudo %v484
      %v539 = vcvt.f32.s32.to.zero.pseudo %v485
      %v540 = vcvt.f32.s32.to.zero.pseudo %v486
      %v541 = vcvt.f32.s32.to.zero.pseudo %v487
      %v542 = vcvt.f32.s32.to.zero.pseudo %v488
      %v543 = vcvt.f32.s32.to.zero.pseudo %v489
      %v544 = vcvt.f32.s32.to.zero.pseudo %v490
      %v545 = vcvt.f32.s32.to.zero.pseudo %v491
      %v546 = vcvt.f32.s32.to.zero.pseudo %v492
      %v547 = vcvt.f32.s32.to.zero.pseudo %v493
      %v548 = vcvt.f32.s32.to.zero.pseudo %v494
      %v549 = vadd.s32 %v531, 1
      %v550 = vadd.s32 %v532, 1
      %v551 = vadd.s32 %v533, 1
      %v552 = vadd.s32 %v534, 1
      %v553 = vadd.s32 %v535, 1
      %v554 = vadd.s32 %v536, 1
      %v555 = vadd.s32 %v537, 1
      %v556 = vadd.s32 %v538, 1
      %v557 = vadd.s32 %v539, 1
      %v558 = vadd.s32 %v540, 1
      %v559 = vadd.s32 %v541, 1
      %v560 = vadd.s32 %v542, 1
      %v561 = vadd.s32 %v543, 1
      %v562 = vadd.s32 %v544, 1
      %v563 = vadd.s32 %v545, 1
      %v564 = vadd.s32 %v546, 1
      %v565 = vadd.s32 %v547, 1
      %v566 = vadd.s32 %v548, 1
      %585 = vrot.lane.b32.xlu0 %v513, 127
      %v586 = vpop.permute.xlu0 %585
      %587 = vrot.lane.b32.xlu0 %v514, 127
      %v588 = vpop.permute.xlu0 %587
      %589 = vrot.lane.b32.xlu0 %v515, 127
      %v590 = vpop.permute.xlu0 %589
      %591 = vrot.lane.b32.xlu0 %v516, 127
      %v592 = vpop.permute.xlu0 %591
      %593 = vrot.lane.b32.xlu0 %v517, 127
      %v594 = vpop.permute.xlu0 %593
      %595 = vrot.lane.b32.xlu0 %v518, 127
      %v596 = vpop.permute.xlu0 %595
      %597 = vrot.lane.b32.xlu0 %v519, 127
      %v598 = vpop.permute.xlu0 %597
      %599 = vrot.lane.b32.xlu0 %v520, 127
      %v600 = vpop.permute.xlu0 %599
      %601 = vrot.lane.b32.xlu0 %v521, 127
      %v602 = vpop.permute.xlu0 %601
      %603 = vrot.lane.b32.xlu0 %v522, 127
      %v604 = vpop.permute.xlu0 %603
      %605 = vrot.lane.b32.xlu0 %v523, 127
      %v606 = vpop.permute.xlu0 %605
      %607 = vrot.lane.b32.xlu0 %v524, 127
      %v608 = vpop.permute.xlu0 %607
      %609 = vrot.lane.b32.xlu0 %v525, 127
      %v610 = vpop.permute.xlu0 %609
      %611 = vrot.lane.b32.xlu0 %v526, 127
      %v612 = vpop.permute.xlu0 %611
      %613 = vrot.lane.b32.xlu0 %v527, 127
      %v614 = vpop.permute.xlu0 %613
      %615 = vrot.lane.b32.xlu0 %v528, 127
      %v616 = vpop.permute.xlu0 %615
      %617 = vrot.lane.b32.xlu0 %v529, 127
      %v618 = vpop.permute.xlu0 %617
      %619 = vrot.lane.b32.xlu0 %v530, 127
      %v620 = vpop.permute.xlu0 %619
      %v639 = vmul.f32 %v513, %v586
      %v640 = vmul.f32 %v514, %v588
      %v641 = vmul.f32 %v515, %v590
      %v642 = vmul.f32 %v516, %v592
      %v643 = vmul.f32 %v517, %v594
      %v644 = vmul.f32 %v518, %v596
      %v645 = vmul.f32 %v519, %v598
      %v646 = vmul.f32 %v520, %v600
      %v647 = vmul.f32 %v521, %v602
      %v648 = vmul.f32 %v522, %v604
      %v649 = vmul.f32 %v523, %v606
      %v650 = vmul.f32 %v524, %v608
      %v651 = vmul.f32 %v525, %v610
      %v652 = vmul.f32 %v526, %v612
      %v653 = vmul.f32 %v527, %v614
      %v654 = vmul.f32 %v528, %v616
      %v655 = vmul.f32 %v529, %v618
      %v656 = vmul.f32 %v530, %v620
      %vm657 = vcmp.ge.s32.totalorder %v531, 0
      %vm658 = vcmp.ge.s32.totalorder %v532, 0
      %vm659 = vcmp.ge.s32.totalorder %v533, 0
      %vm660 = vcmp.ge.s32.totalorder %v534, 0
      %vm661 = vcmp.ge.s32.totalorder %v535, 0
      %vm662 = vcmp.ge.s32.totalorder %v536, 0
      %vm663 = vcmp.ge.s32.totalorder %v537, 0
      %vm664 = vcmp.ge.s32.totalorder %v538, 0
      %vm665 = vcmp.ge.s32.totalorder %v539, 0
      %vm666 = vcmp.ge.s32.totalorder %v540, 0
      %vm667 = vcmp.ge.s32.totalorder %v541, 0
      %vm668 = vcmp.ge.s32.totalorder %v542, 0
      %vm669 = vcmp.ge.s32.totalorder %v543, 0
      %vm670 = vcmp.ge.s32.totalorder %v544, 0
      %vm671 = vcmp.ge.s32.totalorder %v545, 0
      %vm672 = vcmp.ge.s32.totalorder %v546, 0
      %vm673 = vcmp.ge.s32.totalorder %v547, 0
      %vm674 = vcmp.ge.s32.totalorder %v548, 0
      %vm675 = vcmp.lt.s32.totalorder %v531, 16
      %vm676 = vcmp.lt.s32.totalorder %v532, 16
      %vm677 = vcmp.lt.s32.totalorder %v533, 16
      %vm678 = vcmp.lt.s32.totalorder %v534, 16
      %vm679 = vcmp.lt.s32.totalorder %v535, 16
      %vm680 = vcmp.lt.s32.totalorder %v536, 16
      %vm681 = vcmp.lt.s32.totalorder %v537, 16
      %vm682 = vcmp.lt.s32.totalorder %v538, 16
      %vm683 = vcmp.lt.s32.totalorder %v539, 16
      %vm684 = vcmp.lt.s32.totalorder %v540, 16
      %vm685 = vcmp.lt.s32.totalorder %v541, 16
      %vm686 = vcmp.lt.s32.totalorder %v542, 16
      %vm687 = vcmp.lt.s32.totalorder %v543, 16
      %vm688 = vcmp.lt.s32.totalorder %v544, 16
      %vm689 = vcmp.lt.s32.totalorder %v545, 16
      %vm690 = vcmp.lt.s32.totalorder %v546, 16
      %vm691 = vcmp.lt.s32.totalorder %v547, 16
      %vm692 = vcmp.lt.s32.totalorder %v548, 16
      %vm693 = vmand %vm657, %vm675
      %vm694 = vmand %vm658, %vm676
      %vm695 = vmand %vm659, %vm677
      %vm696 = vmand %vm660, %vm678
      %vm697 = vmand %vm661, %vm679
      %vm698 = vmand %vm662, %vm680
      %vm699 = vmand %vm663, %vm681
      %vm700 = vmand %vm664, %vm682
      %vm701 = vmand %vm665, %vm683
      %vm702 = vmand %vm666, %vm684
      %vm703 = vmand %vm667, %vm685
      %vm704 = vmand %vm668, %vm686
      %vm705 = vmand %vm669, %vm687
      %vm706 = vmand %vm670, %vm688
      %vm707 = vmand %vm671, %vm689
      %vm708 = vmand %vm672, %vm690
      %vm709 = vmand %vm673, %vm691
      %vm710 = vmand %vm674, %vm692
      %v711 = vsel %vm657, 1, 0
      %v712 = vsel %vm658, 1, 0
      %v713 = vsel %vm659, 1, 0
      %v714 = vsel %vm660, 1, 0
      %v715 = vsel %vm661, 1, 0
      %v716 = vsel %vm662, 1, 0
      %v717 = vsel %vm663, 1, 0
      %v718 = vsel %vm664, 1, 0
      %v719 = vsel %vm665, 1, 0
      %v720 = vsel %vm666, 1, 0
      %v721 = vsel %vm667, 1, 0
      %v722 = vsel %vm668, 1, 0
      %v723 = vsel %vm669, 1, 0
      %v724 = vsel %vm670, 1, 0
      %v725 = vsel %vm671, 1, 0
      %v726 = vsel %vm672, 1, 0
      %v727 = vsel %vm673, 1, 0
      %v728 = vsel %vm674, 1, 0
      %729 = vrot.lane.b32.xlu0 %v711, 127
      %v730 = vpop.permute.xlu0 %729
      %731 = vrot.lane.b32.xlu0 %v712, 127
      %v732 = vpop.permute.xlu0 %731
      %733 = vrot.lane.b32.xlu0 %v713, 127
      %v734 = vpop.permute.xlu0 %733
      %735 = vrot.lane.b32.xlu0 %v714, 127
      %v736 = vpop.permute.xlu0 %735
      %737 = vrot.lane.b32.xlu0 %v715, 127
      %v738 = vpop.permute.xlu0 %737
      %739 = vrot.lane.b32.xlu0 %v716, 127
      %v740 = vpop.permute.xlu0 %739
      %741 = vrot.lane.b32.xlu0 %v717, 127
      %v742 = vpop.permute.xlu0 %741
      %743 = vrot.lane.b32.xlu0 %v718, 127
      %v744 = vpop.permute.xlu0 %743
      %745 = vrot.lane.b32.xlu0 %v719, 127
      %v746 = vpop.permute.xlu0 %745
      %747 = vrot.lane.b32.xlu0 %v720, 127
      %v748 = vpop.permute.xlu0 %747
      %749 = vrot.lane.b32.xlu0 %v721, 127
      %v750 = vpop.permute.xlu0 %749
      %751 = vrot.lane.b32.xlu0 %v722, 127
      %v752 = vpop.permute.xlu0 %751
      %753 = vrot.lane.b32.xlu0 %v723, 127
      %v754 = vpop.permute.xlu0 %753
      %755 = vrot.lane.b32.xlu0 %v724, 127
      %v756 = vpop.permute.xlu0 %755
      %757 = vrot.lane.b32.xlu0 %v725, 127
      %v758 = vpop.permute.xlu0 %757
      %759 = vrot.lane.b32.xlu0 %v726, 127
      %v760 = vpop.permute.xlu0 %759
      %761 = vrot.lane.b32.xlu0 %v727, 127
      %v762 = vpop.permute.xlu0 %761
      %763 = vrot.lane.b32.xlu0 %v728, 127
      %v764 = vpop.permute.xlu0 %763
      %vm765 = vcmp.ne.s32.totalorder %v730, 0
      %vm766 = vcmp.ne.s32.totalorder %v732, 0
      %vm767 = vcmp.ne.s32.totalorder %v734, 0
      %vm768 = vcmp.ne.s32.totalorder %v736, 0
      %vm769 = vcmp.ne.s32.totalorder %v738, 0
      %vm770 = vcmp.ne.s32.totalorder %v740, 0
      %vm771 = vcmp.ne.s32.totalorder %v742, 0
      %vm772 = vcmp.ne.s32.totalorder %v744, 0
      %vm773 = vcmp.ne.s32.totalorder %v746, 0
      %vm774 = vcmp.ne.s32.totalorder %v748, 0
      %vm775 = vcmp.ne.s32.totalorder %v750, 0
      %vm776 = vcmp.ne.s32.totalorder %v752, 0
      %vm777 = vcmp.ne.s32.totalorder %v754, 0
      %vm778 = vcmp.ne.s32.totalorder %v756, 0
      %vm779 = vcmp.ne.s32.totalorder %v758, 0
      %vm780 = vcmp.ne.s32.totalorder %v760, 0
      %vm781 = vcmp.ne.s32.totalorder %v762, 0
      %vm782 = vcmp.ne.s32.totalorder %v764, 0
      %vm783 = vmand %vm693, %vm765
      %vm784 = vmand %vm694, %vm766
      %vm785 = vmand %vm695, %vm767
      %vm786 = vmand %vm696, %vm768
      %vm787 = vmand %vm697, %vm769
      %vm788 = vmand %vm698, %vm770
      %vm789 = vmand %vm699, %vm771
      %vm790 = vmand %vm700, %vm772
      %vm791 = vmand %vm701, %vm773
      %vm792 = vmand %vm702, %vm774
      %vm793 = vmand %vm703, %vm775
      %vm794 = vmand %vm704, %vm776
      %vm795 = vmand %vm705, %vm777
      %vm796 = vmand %vm706, %vm778
      %vm797 = vmand %vm707, %vm779
      %vm798 = vmand %vm708, %vm780
      %vm799 = vmand %vm709, %vm781
      %vm800 = vmand %vm710, %vm782
      %v801 = vsel %vm675, 1, 0
      %v802 = vsel %vm676, 1, 0
      %v803 = vsel %vm677, 1, 0
      %v804 = vsel %vm678, 1, 0
      %v805 = vsel %vm679, 1, 0
      %v806 = vsel %vm680, 1, 0
      %v807 = vsel %vm681, 1, 0
      %v808 = vsel %vm682, 1, 0
      %v809 = vsel %vm683, 1, 0
      %v810 = vsel %vm684, 1, 0
      %v811 = vsel %vm685, 1, 0
      %v812 = vsel %vm686, 1, 0
      %v813 = vsel %vm687, 1, 0
      %v814 = vsel %vm688, 1, 0
      %v815 = vsel %vm689, 1, 0
      %v816 = vsel %vm690, 1, 0
      %v817 = vsel %vm691, 1, 0
      %v818 = vsel %vm692, 1, 0
      %819 = vrot.lane.b32.xlu0 %v801, 127
      %v820 = vpop.permute.xlu0 %819
      %821 = vrot.lane.b32.xlu0 %v802, 127
      %v822 = vpop.permute.xlu0 %821
      %823 = vrot.lane.b32.xlu0 %v803, 127
      %v824 = vpop.permute.xlu0 %823
      %825 = vrot.lane.b32.xlu0 %v804, 127
      %v826 = vpop.permute.xlu0 %825
      %827 = vrot.lane.b32.xlu0 %v805, 127
      %v828 = vpop.permute.xlu0 %827
      %829 = vrot.lane.b32.xlu0 %v806, 127
      %v830 = vpop.permute.xlu0 %829
      %831 = vrot.lane.b32.xlu0 %v807, 127
      %v832 = vpop.permute.xlu0 %831
      %833 = vrot.lane.b32.xlu0 %v808, 127
      %v834 = vpop.permute.xlu0 %833
      %835 = vrot.lane.b32.xlu0 %v809, 127
      %v836 = vpop.permute.xlu0 %835
      %837 = vrot.lane.b32.xlu0 %v810, 127
      %v838 = vpop.permute.xlu0 %837
      %839 = vrot.lane.b32.xlu0 %v811, 127
      %v840 = vpop.permute.xlu0 %839
      %841 = vrot.lane.b32.xlu0 %v812, 127
      %v842 = vpop.permute.xlu0 %841
      %843 = vrot.lane.b32.xlu0 %v813, 127
      %v844 = vpop.permute.xlu0 %843
      %845 = vrot.lane.b32.xlu0 %v814, 127
      %v846 = vpop.permute.xlu0 %845
      %847 = vrot.lane.b32.xlu0 %v815, 127
      %v848 = vpop.permute.xlu0 %847
      %849 = vrot.lane.b32.xlu0 %v816, 127
      %v850 = vpop.permute.xlu0 %849
      %851 = vrot.lane.b32.xlu0 %v817, 127
      %v852 = vpop.permute.xlu0 %851
      %853 = vrot.lane.b32.xlu0 %v818, 127
      %v854 = vpop.permute.xlu0 %853
      %vm855 = vcmp.ne.s32.totalorder %v820, 0
      %vm856 = vcmp.ne.s32.totalorder %v822, 0
      %vm857 = vcmp.ne.s32.totalorder %v824, 0
      %vm858 = vcmp.ne.s32.totalorder %v826, 0
      %vm859 = vcmp.ne.s32.totalorder %v828, 0
      %vm860 = vcmp.ne.s32.totalorder %v830, 0
      %vm861 = vcmp.ne.s32.totalorder %v832, 0
      %vm862 = vcmp.ne.s32.totalorder %v834, 0
      %vm863 = vcmp.ne.s32.totalorder %v836, 0
      %vm864 = vcmp.ne.s32.totalorder %v838, 0
      %vm865 = vcmp.ne.s32.totalorder %v840, 0
      %vm866 = vcmp.ne.s32.totalorder %v842, 0
      %vm867 = vcmp.ne.s32.totalorder %v844, 0
      %vm868 = vcmp.ne.s32.totalorder %v846, 0
      %vm869 = vcmp.ne.s32.totalorder %v848, 0
      %vm870 = vcmp.ne.s32.totalorder %v850, 0
      %vm871 = vcmp.ne.s32.totalorder %v852, 0
      %vm872 = vcmp.ne.s32.totalorder %v854, 0
      %vm873 = vmand %vm783, %vm855
      %vm874 = vmand %vm784, %vm856
      %vm875 = vmand %vm785, %vm857
      %vm876 = vmand %vm786, %vm858
      %vm877 = vmand %vm787, %vm859
      %vm878 = vmand %vm788, %vm860
      %vm879 = vmand %vm789, %vm861
      %vm880 = vmand %vm790, %vm862
      %vm881 = vmand %vm791, %vm863
      %vm882 = vmand %vm792, %vm864
      %vm883 = vmand %vm793, %vm865
      %vm884 = vmand %vm794, %vm866
      %vm885 = vmand %vm795, %vm867
      %vm886 = vmand %vm796, %vm868
      %vm887 = vmand %vm797, %vm869
      %vm888 = vmand %vm798, %vm870
      %vm889 = vmand %vm799, %vm871
      %vm890 = vmand %vm800, %vm872
      %v891 = vmul.f32 %v639, %v459
      %v892 = vmul.f32 %v640, %v460
      %v893 = vmul.f32 %v641, %v461
      %v894 = vmul.f32 %v642, %v462
      %v895 = vmul.f32 %v643, %v463
      %v896 = vmul.f32 %v644, %v464
      %v897 = vmul.f32 %v645, %v465
      %v898 = vmul.f32 %v646, %v466
      %v899 = vmul.f32 %v647, %v467
      %v900 = vmul.f32 %v648, %v468
      %v901 = vmul.f32 %v649, %v469
      %v902 = vmul.f32 %v650, %v470
      %v903 = vmul.f32 %v651, %v471
      %v904 = vmul.f32 %v652, %v472
      %v905 = vmul.f32 %v653, %v473
      %v906 = vmul.f32 %v654, %v474
      %v907 = vmul.f32 %v655, %v475
      %v908 = vmul.f32 %v656, %v476
      %v909 = vsel %vm873, %v891, 0.0
      %v910 = vsel %vm874, %v892, 0.0
      %v911 = vsel %vm875, %v893, 0.0
      %v912 = vsel %vm876, %v894, 0.0
      %v913 = vsel %vm877, %v895, 0.0
      %v914 = vsel %vm878, %v896, 0.0
      %v915 = vsel %vm879, %v897, 0.0
      %v916 = vsel %vm880, %v898, 0.0
      %v917 = vsel %vm881, %v899, 0.0
      %v918 = vsel %vm882, %v900, 0.0
      %v919 = vsel %vm883, %v901, 0.0
      %v920 = vsel %vm884, %v902, 0.0
      %v921 = vsel %vm885, %v903, 0.0
      %v922 = vsel %vm886, %v904, 0.0
      %v923 = vsel %vm887, %v905, 0.0
      %v924 = vsel %vm888, %v906, 0.0
      %v925 = vsel %vm889, %v907, 0.0
      %v926 = vsel %vm890, %v908, 0.0
      %945 = vrot.lane.b32.xlu0 %v495, 127
      %v946 = vpop.permute.xlu0 %945
      %947 = vrot.lane.b32.xlu0 %v496, 127
      %v948 = vpop.permute.xlu0 %947
      %949 = vrot.lane.b32.xlu0 %v497, 127
      %v950 = vpop.permute.xlu0 %949
      %951 = vrot.lane.b32.xlu0 %v498, 127
      %v952 = vpop.permute.xlu0 %951
      %953 = vrot.lane.b32.xlu0 %v499, 127
      %v954 = vpop.permute.xlu0 %953
      %955 = vrot.lane.b32.xlu0 %v500, 127
      %v956 = vpop.permute.xlu0 %955
      %957 = vrot.lane.b32.xlu0 %v501, 127
      %v958 = vpop.permute.xlu0 %957
      %959 = vrot.lane.b32.xlu0 %v502, 127
      %v960 = vpop.permute.xlu0 %959
      %961 = vrot.lane.b32.xlu0 %v503, 127
      %v962 = vpop.permute.xlu0 %961
      %963 = vrot.lane.b32.xlu0 %v504, 127
      %v964 = vpop.permute.xlu0 %963
      %965 = vrot.lane.b32.xlu0 %v505, 127
      %v966 = vpop.permute.xlu0 %965
      %967 = vrot.lane.b32.xlu0 %v506, 127
      %v968 = vpop.permute.xlu0 %967
      %969 = vrot.lane.b32.xlu0 %v507, 127
      %v970 = vpop.permute.xlu0 %969
      %971 = vrot.lane.b32.xlu0 %v508, 127
      %v972 = vpop.permute.xlu0 %971
      %973 = vrot.lane.b32.xlu0 %v509, 127
      %v974 = vpop.permute.xlu0 %973
      %975 = vrot.lane.b32.xlu0 %v510, 127
      %v976 = vpop.permute.xlu0 %975
      %977 = vrot.lane.b32.xlu0 %v511, 127
      %v978 = vpop.permute.xlu0 %977
      %979 = vrot.lane.b32.xlu0 %v512, 127
      %v980 = vpop.permute.xlu0 %979
      %v999 = vmul.f32 %v513, %v946
      %v1000 = vmul.f32 %v514, %v948
      %v1001 = vmul.f32 %v515, %v950
      %v1002 = vmul.f32 %v516, %v952
      %v1003 = vmul.f32 %v517, %v954
      %v1004 = vmul.f32 %v518, %v956
      %v1005 = vmul.f32 %v519, %v958
      %v1006 = vmul.f32 %v520, %v960
      %v1007 = vmul.f32 %v521, %v962
      %v1008 = vmul.f32 %v522, %v964
      %v1009 = vmul.f32 %v523, %v966
      %v1010 = vmul.f32 %v524, %v968
      %v1011 = vmul.f32 %v525, %v970
      %v1012 = vmul.f32 %v526, %v972
      %v1013 = vmul.f32 %v527, %v974
      %v1014 = vmul.f32 %v528, %v976
      %v1015 = vmul.f32 %v529, %v978
      %v1016 = vmul.f32 %v530, %v980
      %vm1017 = vcmp.ge.s32.totalorder %v549, 0
      %vm1018 = vcmp.ge.s32.totalorder %v550, 0
      %vm1019 = vcmp.ge.s32.totalorder %v551, 0
      %vm1020 = vcmp.ge.s32.totalorder %v552, 0
      %vm1021 = vcmp.ge.s32.totalorder %v553, 0
      %vm1022 = vcmp.ge.s32.totalorder %v554, 0
      %vm1023 = vcmp.ge.s32.totalorder %v555, 0
      %vm1024 = vcmp.ge.s32.totalorder %v556, 0
      %vm1025 = vcmp.ge.s32.totalorder %v557, 0
      %vm1026 = vcmp.ge.s32.totalorder %v558, 0
      %vm1027 = vcmp.ge.s32.totalorder %v559, 0
      %vm1028 = vcmp.ge.s32.totalorder %v560, 0
      %vm1029 = vcmp.ge.s32.totalorder %v561, 0
      %vm1030 = vcmp.ge.s32.totalorder %v562, 0
      %vm1031 = vcmp.ge.s32.totalorder %v563, 0
      %vm1032 = vcmp.ge.s32.totalorder %v564, 0
      %vm1033 = vcmp.ge.s32.totalorder %v565, 0
      %vm1034 = vcmp.ge.s32.totalorder %v566, 0
      %v1035 = vsel %vm1017, 1, 0
      %v1036 = vsel %vm1018, 1, 0
      %v1037 = vsel %vm1019, 1, 0
      %v1038 = vsel %vm1020, 1, 0
      %v1039 = vsel %vm1021, 1, 0
      %v1040 = vsel %vm1022, 1, 0
      %v1041 = vsel %vm1023, 1, 0
      %v1042 = vsel %vm1024, 1, 0
      %v1043 = vsel %vm1025, 1, 0
      %v1044 = vsel %vm1026, 1, 0
      %v1045 = vsel %vm1027, 1, 0
      %v1046 = vsel %vm1028, 1, 0
      %v1047 = vsel %vm1029, 1, 0
      %v1048 = vsel %vm1030, 1, 0
      %v1049 = vsel %vm1031, 1, 0
      %v1050 = vsel %vm1032, 1, 0
      %v1051 = vsel %vm1033, 1, 0
      %v1052 = vsel %vm1034, 1, 0
      %1053 = vrot.lane.b32.xlu0 %v1035, 127
      %v1054 = vpop.permute.xlu0 %1053
      %1055 = vrot.lane.b32.xlu0 %v1036, 127
      %v1056 = vpop.permute.xlu0 %1055
      %1057 = vrot.lane.b32.xlu0 %v1037, 127
      %v1058 = vpop.permute.xlu0 %1057
      %1059 = vrot.lane.b32.xlu0 %v1038, 127
      %v1060 = vpop.permute.xlu0 %1059
      %1061 = vrot.lane.b32.xlu0 %v1039, 127
      %v1062 = vpop.permute.xlu0 %1061
      %1063 = vrot.lane.b32.xlu0 %v1040, 127
      %v1064 = vpop.permute.xlu0 %1063
      %1065 = vrot.lane.b32.xlu0 %v1041, 127
      %v1066 = vpop.permute.xlu0 %1065
      %1067 = vrot.lane.b32.xlu0 %v1042, 127
      %v1068 = vpop.permute.xlu0 %1067
      %1069 = vrot.lane.b32.xlu0 %v1043, 127
      %v1070 = vpop.permute.xlu0 %1069
      %1071 = vrot.lane.b32.xlu0 %v1044, 127
      %v1072 = vpop.permute.xlu0 %1071
      %1073 = vrot.lane.b32.xlu0 %v1045, 127
      %v1074 = vpop.permute.xlu0 %1073
      %1075 = vrot.lane.b32.xlu0 %v1046, 127
      %v1076 = vpop.permute.xlu0 %1075
      %1077 = vrot.lane.b32.xlu0 %v1047, 127
      %v1078 = vpop.permute.xlu0 %1077
      %1079 = vrot.lane.b32.xlu0 %v1048, 127
      %v1080 = vpop.permute.xlu0 %1079
      %1081 = vrot.lane.b32.xlu0 %v1049, 127
      %v1082 = vpop.permute.xlu0 %1081
      %1083 = vrot.lane.b32.xlu0 %v1050, 127
      %v1084 = vpop.permute.xlu0 %1083
      %1085 = vrot.lane.b32.xlu0 %v1051, 127
      %v1086 = vpop.permute.xlu0 %1085
      %1087 = vrot.lane.b32.xlu0 %v1052, 127
      %v1088 = vpop.permute.xlu0 %1087
      %vm1089 = vcmp.ne.s32.totalorder %v1054, 0
      %vm1090 = vcmp.ne.s32.totalorder %v1056, 0
      %vm1091 = vcmp.ne.s32.totalorder %v1058, 0
      %vm1092 = vcmp.ne.s32.totalorder %v1060, 0
      %vm1093 = vcmp.ne.s32.totalorder %v1062, 0
      %vm1094 = vcmp.ne.s32.totalorder %v1064, 0
      %vm1095 = vcmp.ne.s32.totalorder %v1066, 0
      %vm1096 = vcmp.ne.s32.totalorder %v1068, 0
      %vm1097 = vcmp.ne.s32.totalorder %v1070, 0
      %vm1098 = vcmp.ne.s32.totalorder %v1072, 0
      %vm1099 = vcmp.ne.s32.totalorder %v1074, 0
      %vm1100 = vcmp.ne.s32.totalorder %v1076, 0
      %vm1101 = vcmp.ne.s32.totalorder %v1078, 0
      %vm1102 = vcmp.ne.s32.totalorder %v1080, 0
      %vm1103 = vcmp.ne.s32.totalorder %v1082, 0
      %vm1104 = vcmp.ne.s32.totalorder %v1084, 0
      %vm1105 = vcmp.ne.s32.totalorder %v1086, 0
      %vm1106 = vcmp.ne.s32.totalorder %v1088, 0
      %vm1107 = vmand %vm693, %vm1089
      %vm1108 = vmand %vm694, %vm1090
      %vm1109 = vmand %vm695, %vm1091
      %vm1110 = vmand %vm696, %vm1092
      %vm1111 = vmand %vm697, %vm1093
      %vm1112 = vmand %vm698, %vm1094
      %vm1113 = vmand %vm699, %vm1095
      %vm1114 = vmand %vm700, %vm1096
      %vm1115 = vmand %vm701, %vm1097
      %vm1116 = vmand %vm702, %vm1098
      %vm1117 = vmand %vm703, %vm1099
      %vm1118 = vmand %vm704, %vm1100
      %vm1119 = vmand %vm705, %vm1101
      %vm1120 = vmand %vm706, %vm1102
      %vm1121 = vmand %vm707, %vm1103
      %vm1122 = vmand %vm708, %vm1104
      %vm1123 = vmand %vm709, %vm1105
      %vm1124 = vmand %vm710, %vm1106
      %vm1125 = vcmp.lt.s32.totalorder %v549, 16
      %vm1126 = vcmp.lt.s32.totalorder %v550, 16
      %vm1127 = vcmp.lt.s32.totalorder %v551, 16
      %vm1128 = vcmp.lt.s32.totalorder %v552, 16
      %vm1129 = vcmp.lt.s32.totalorder %v553, 16
      %vm1130 = vcmp.lt.s32.totalorder %v554, 16
      %vm1131 = vcmp.lt.s32.totalorder %v555, 16
      %vm1132 = vcmp.lt.s32.totalorder %v556, 16
      %vm1133 = vcmp.lt.s32.totalorder %v557, 16
      %vm1134 = vcmp.lt.s32.totalorder %v558, 16
      %vm1135 = vcmp.lt.s32.totalorder %v559, 16
      %vm1136 = vcmp.lt.s32.totalorder %v560, 16
      %vm1137 = vcmp.lt.s32.totalorder %v561, 16
      %vm1138 = vcmp.lt.s32.totalorder %v562, 16
      %vm1139 = vcmp.lt.s32.totalorder %v563, 16
      %vm1140 = vcmp.lt.s32.totalorder %v564, 16
      %vm1141 = vcmp.lt.s32.totalorder %v565, 16
      %vm1142 = vcmp.lt.s32.totalorder %v566, 16
      %v1143 = vsel %vm1125, 1, 0
      %v1144 = vsel %vm1126, 1, 0
      %v1145 = vsel %vm1127, 1, 0
      %v1146 = vsel %vm1128, 1, 0
      %v1147 = vsel %vm1129, 1, 0
      %v1148 = vsel %vm1130, 1, 0
      %v1149 = vsel %vm1131, 1, 0
      %v1150 = vsel %vm1132, 1, 0
      %v1151 = vsel %vm1133, 1, 0
      %v1152 = vsel %vm1134, 1, 0
      %v1153 = vsel %vm1135, 1, 0
      %v1154 = vsel %vm1136, 1, 0
      %v1155 = vsel %vm1137, 1, 0
      %v1156 = vsel %vm1138, 1, 0
      %v1157 = vsel %vm1139, 1, 0
      %v1158 = vsel %vm1140, 1, 0
      %v1159 = vsel %vm1141, 1, 0
      %v1160 = vsel %vm1142, 1, 0
      %1161 = vrot.lane.b32.xlu0 %v1143, 127
      %v1162 = vpop.permute.xlu0 %1161
      %1163 = vrot.lane.b32.xlu0 %v1144, 127
      %v1164 = vpop.permute.xlu0 %1163
      %1165 = vrot.lane.b32.xlu0 %v1145, 127
      %v1166 = vpop.permute.xlu0 %1165
      %1167 = vrot.lane.b32.xlu0 %v1146, 127
      %v1168 = vpop.permute.xlu0 %1167
      %1169 = vrot.lane.b32.xlu0 %v1147, 127
      %v1170 = vpop.permute.xlu0 %1169
      %1171 = vrot.lane.b32.xlu0 %v1148, 127
      %v1172 = vpop.permute.xlu0 %1171
      %1173 = vrot.lane.b32.xlu0 %v1149, 127
      %v1174 = vpop.permute.xlu0 %1173
      %1175 = vrot.lane.b32.xlu0 %v1150, 127
      %v1176 = vpop.permute.xlu0 %1175
      %1177 = vrot.lane.b32.xlu0 %v1151, 127
      %v1178 = vpop.permute.xlu0 %1177
      %1179 = vrot.lane.b32.xlu0 %v1152, 127
      %v1180 = vpop.permute.xlu0 %1179
      %1181 = vrot.lane.b32.xlu0 %v1153, 127
      %v1182 = vpop.permute.xlu0 %1181
      %1183 = vrot.lane.b32.xlu0 %v1154, 127
      %v1184 = vpop.permute.xlu0 %1183
      %1185 = vrot.lane.b32.xlu0 %v1155, 127
      %v1186 = vpop.permute.xlu0 %1185
      %1187 = vrot.lane.b32.xlu0 %v1156, 127
      %v1188 = vpop.permute.xlu0 %1187
      %1189 = vrot.lane.b32.xlu0 %v1157, 127
      %v1190 = vpop.permute.xlu0 %1189
      %1191 = vrot.lane.b32.xlu0 %v1158, 127
      %v1192 = vpop.permute.xlu0 %1191
      %1193 = vrot.lane.b32.xlu0 %v1159, 127
      %v1194 = vpop.permute.xlu0 %1193
      %1195 = vrot.lane.b32.xlu0 %v1160, 127
      %v1196 = vpop.permute.xlu0 %1195
      %vm1197 = vcmp.ne.s32.totalorder %v1162, 0
      %vm1198 = vcmp.ne.s32.totalorder %v1164, 0
      %vm1199 = vcmp.ne.s32.totalorder %v1166, 0
      %vm1200 = vcmp.ne.s32.totalorder %v1168, 0
      %vm1201 = vcmp.ne.s32.totalorder %v1170, 0
      %vm1202 = vcmp.ne.s32.totalorder %v1172, 0
      %vm1203 = vcmp.ne.s32.totalorder %v1174, 0
      %vm1204 = vcmp.ne.s32.totalorder %v1176, 0
      %vm1205 = vcmp.ne.s32.totalorder %v1178, 0
      %vm1206 = vcmp.ne.s32.totalorder %v1180, 0
      %vm1207 = vcmp.ne.s32.totalorder %v1182, 0
      %vm1208 = vcmp.ne.s32.totalorder %v1184, 0
      %vm1209 = vcmp.ne.s32.totalorder %v1186, 0
      %vm1210 = vcmp.ne.s32.totalorder %v1188, 0
      %vm1211 = vcmp.ne.s32.totalorder %v1190, 0
      %vm1212 = vcmp.ne.s32.totalorder %v1192, 0
      %vm1213 = vcmp.ne.s32.totalorder %v1194, 0
      %vm1214 = vcmp.ne.s32.totalorder %v1196, 0
      %vm1215 = vmand %vm1107, %vm1197
      %vm1216 = vmand %vm1108, %vm1198
      %vm1217 = vmand %vm1109, %vm1199
      %vm1218 = vmand %vm1110, %vm1200
      %vm1219 = vmand %vm1111, %vm1201
      %vm1220 = vmand %vm1112, %vm1202
      %vm1221 = vmand %vm1113, %vm1203
      %vm1222 = vmand %vm1114, %vm1204
      %vm1223 = vmand %vm1115, %vm1205
      %vm1224 = vmand %vm1116, %vm1206
      %vm1225 = vmand %vm1117, %vm1207
      %vm1226 = vmand %vm1118, %vm1208
      %vm1227 = vmand %vm1119, %vm1209
      %vm1228 = vmand %vm1120, %vm1210
      %vm1229 = vmand %vm1121, %vm1211
      %vm1230 = vmand %vm1122, %vm1212
      %vm1231 = vmand %vm1123, %vm1213
      %vm1232 = vmand %vm1124, %vm1214
      %v1233 = vmul.f32 %v999, %v459
      %v1234 = vmul.f32 %v1000, %v460
      %v1235 = vmul.f32 %v1001, %v461
      %v1236 = vmul.f32 %v1002, %v462
      %v1237 = vmul.f32 %v1003, %v463
      %v1238 = vmul.f32 %v1004, %v464
      %v1239 = vmul.f32 %v1005, %v465
      %v1240 = vmul.f32 %v1006, %v466
      %v1241 = vmul.f32 %v1007, %v467
      %v1242 = vmul.f32 %v1008, %v468
      %v1243 = vmul.f32 %v1009, %v469
      %v1244 = vmul.f32 %v1010, %v470
      %v1245 = vmul.f32 %v1011, %v471
      %v1246 = vmul.f32 %v1012, %v472
      %v1247 = vmul.f32 %v1013, %v473
      %v1248 = vmul.f32 %v1014, %v474
      %v1249 = vmul.f32 %v1015, %v475
      %v1250 = vmul.f32 %v1016, %v476
      %v1251 = vsel %vm1215, %v1233, 0.0
      %v1252 = vsel %vm1216, %v1234, 0.0
      %v1253 = vsel %vm1217, %v1235, 0.0
      %v1254 = vsel %vm1218, %v1236, 0.0
      %v1255 = vsel %vm1219, %v1237, 0.0
      %v1256 = vsel %vm1220, %v1238, 0.0
      %v1257 = vsel %vm1221, %v1239, 0.0
      %v1258 = vsel %vm1222, %v1240, 0.0
      %v1259 = vsel %vm1223, %v1241, 0.0
      %v1260 = vsel %vm1224, %v1242, 0.0
      %v1261 = vsel %vm1225, %v1243, 0.0
      %v1262 = vsel %vm1226, %v1244, 0.0
      %v1263 = vsel %vm1227, %v1245, 0.0
      %v1264 = vsel %vm1228, %v1246, 0.0
      %v1265 = vsel %vm1229, %v1247, 0.0
      %v1266 = vsel %vm1230, %v1248, 0.0
      %v1267 = vsel %vm1231, %v1249, 0.0
      %v1268 = vsel %vm1232, %v1250, 0.0
      %v1269 = vmul.f32 %v495, %v586
      %v1270 = vmul.f32 %v496, %v588
      %v1271 = vmul.f32 %v497, %v590
      %v1272 = vmul.f32 %v498, %v592
      %v1273 = vmul.f32 %v499, %v594
      %v1274 = vmul.f32 %v500, %v596
      %v1275 = vmul.f32 %v501, %v598
      %v1276 = vmul.f32 %v502, %v600
      %v1277 = vmul.f32 %v503, %v602
      %v1278 = vmul.f32 %v504, %v604
      %v1279 = vmul.f32 %v505, %v606
      %v1280 = vmul.f32 %v506, %v608
      %v1281 = vmul.f32 %v507, %v610
      %v1282 = vmul.f32 %v508, %v612
      %v1283 = vmul.f32 %v509, %v614
      %v1284 = vmul.f32 %v510, %v616
      %v1285 = vmul.f32 %v511, %v618
      %v1286 = vmul.f32 %v512, %v620
      %vm1287 = vmand %vm1017, %vm1125
      %vm1288 = vmand %vm1018, %vm1126
      %vm1289 = vmand %vm1019, %vm1127
      %vm1290 = vmand %vm1020, %vm1128
      %vm1291 = vmand %vm1021, %vm1129
      %vm1292 = vmand %vm1022, %vm1130
      %vm1293 = vmand %vm1023, %vm1131
      %vm1294 = vmand %vm1024, %vm1132
      %vm1295 = vmand %vm1025, %vm1133
      %vm1296 = vmand %vm1026, %vm1134
      %vm1297 = vmand %vm1027, %vm1135
      %vm1298 = vmand %vm1028, %vm1136
      %vm1299 = vmand %vm1029, %vm1137
      %vm1300 = vmand %vm1030, %vm1138
      %vm1301 = vmand %vm1031, %vm1139
      %vm1302 = vmand %vm1032, %vm1140
      %vm1303 = vmand %vm1033, %vm1141
      %vm1304 = vmand %vm1034, %vm1142
      %vm1305 = vmand %vm1287, %vm765
      %vm1306 = vmand %vm1288, %vm766
      %vm1307 = vmand %vm1289, %vm767
      %vm1308 = vmand %vm1290, %vm768
      %vm1309 = vmand %vm1291, %vm769
      %vm1310 = vmand %vm1292, %vm770
      %vm1311 = vmand %vm1293, %vm771
      %vm1312 = vmand %vm1294, %vm772
      %vm1313 = vmand %vm1295, %vm773
      %vm1314 = vmand %vm1296, %vm774
      %vm1315 = vmand %vm1297, %vm775
      %vm1316 = vmand %vm1298, %vm776
      %vm1317 = vmand %vm1299, %vm777
      %vm1318 = vmand %vm1300, %vm778
      %vm1319 = vmand %vm1301, %vm779
      %vm1320 = vmand %vm1302, %vm780
      %vm1321 = vmand %vm1303, %vm781
      %vm1322 = vmand %vm1304, %vm782
      %vm1323 = vmand %vm1305, %vm855
      %vm1324 = vmand %vm1306, %vm856
      %vm1325 = vmand %vm1307, %vm857
      %vm1326 = vmand %vm1308, %vm858
      %vm1327 = vmand %vm1309, %vm859
      %vm1328 = vmand %vm1310, %vm860
      %vm1329 = vmand %vm1311, %vm861
      %vm1330 = vmand %vm1312, %vm862
      %vm1331 = vmand %vm1313, %vm863
      %vm1332 = vmand %vm1314, %vm864
      %vm1333 = vmand %vm1315, %vm865
      %vm1334 = vmand %vm1316, %vm866
      %vm1335 = vmand %vm1317, %vm867
      %vm1336 = vmand %vm1318, %vm868
      %vm1337 = vmand %vm1319, %vm869
      %vm1338 = vmand %vm1320, %vm870
      %vm1339 = vmand %vm1321, %vm871
      %vm1340 = vmand %vm1322, %vm872
      %v1341 = vmul.f32 %v1269, %v459
      %v1342 = vmul.f32 %v1270, %v460
      %v1343 = vmul.f32 %v1271, %v461
      %v1344 = vmul.f32 %v1272, %v462
      %v1345 = vmul.f32 %v1273, %v463
      %v1346 = vmul.f32 %v1274, %v464
      %v1347 = vmul.f32 %v1275, %v465
      %v1348 = vmul.f32 %v1276, %v466
      %v1349 = vmul.f32 %v1277, %v467
      %v1350 = vmul.f32 %v1278, %v468
      %v1351 = vmul.f32 %v1279, %v469
      %v1352 = vmul.f32 %v1280, %v470
      %v1353 = vmul.f32 %v1281, %v471
      %v1354 = vmul.f32 %v1282, %v472
      %v1355 = vmul.f32 %v1283, %v473
      %v1356 = vmul.f32 %v1284, %v474
      %v1357 = vmul.f32 %v1285, %v475
      %v1358 = vmul.f32 %v1286, %v476
      %v1359 = vsel %vm1323, %v1341, 0.0
      %v1360 = vsel %vm1324, %v1342, 0.0
      %v1361 = vsel %vm1325, %v1343, 0.0
      %v1362 = vsel %vm1326, %v1344, 0.0
      %v1363 = vsel %vm1327, %v1345, 0.0
      %v1364 = vsel %vm1328, %v1346, 0.0
      %v1365 = vsel %vm1329, %v1347, 0.0
      %v1366 = vsel %vm1330, %v1348, 0.0
      %v1367 = vsel %vm1331, %v1349, 0.0
      %v1368 = vsel %vm1332, %v1350, 0.0
      %v1369 = vsel %vm1333, %v1351, 0.0
      %v1370 = vsel %vm1334, %v1352, 0.0
      %v1371 = vsel %vm1335, %v1353, 0.0
      %v1372 = vsel %vm1336, %v1354, 0.0
      %v1373 = vsel %vm1337, %v1355, 0.0
      %v1374 = vsel %vm1338, %v1356, 0.0
      %v1375 = vsel %vm1339, %v1357, 0.0
      %v1376 = vsel %vm1340, %v1358, 0.0
      %v1377 = vmul.f32 %v495, %v946
      %v1378 = vmul.f32 %v496, %v948
      %v1379 = vmul.f32 %v497, %v950
      %v1380 = vmul.f32 %v498, %v952
      %v1381 = vmul.f32 %v499, %v954
      %v1382 = vmul.f32 %v500, %v956
      %v1383 = vmul.f32 %v501, %v958
      %v1384 = vmul.f32 %v502, %v960
      %v1385 = vmul.f32 %v503, %v962
      %v1386 = vmul.f32 %v504, %v964
      %v1387 = vmul.f32 %v505, %v966
      %v1388 = vmul.f32 %v506, %v968
      %v1389 = vmul.f32 %v507, %v970
      %v1390 = vmul.f32 %v508, %v972
      %v1391 = vmul.f32 %v509, %v974
      %v1392 = vmul.f32 %v510, %v976
      %v1393 = vmul.f32 %v511, %v978
      %v1394 = vmul.f32 %v512, %v980
      %vm1395 = vmand %vm1287, %vm1089
      %vm1396 = vmand %vm1288, %vm1090
      %vm1397 = vmand %vm1289, %vm1091
      %vm1398 = vmand %vm1290, %vm1092
      %vm1399 = vmand %vm1291, %vm1093
      %vm1400 = vmand %vm1292, %vm1094
      %vm1401 = vmand %vm1293, %vm1095
      %vm1402 = vmand %vm1294, %vm1096
      %vm1403 = vmand %vm1295, %vm1097
      %vm1404 = vmand %vm1296, %vm1098
      %vm1405 = vmand %vm1297, %vm1099
      %vm1406 = vmand %vm1298, %vm1100
      %vm1407 = vmand %vm1299, %vm1101
      %vm1408 = vmand %vm1300, %vm1102
      %vm1409 = vmand %vm1301, %vm1103
      %vm1410 = vmand %vm1302, %vm1104
      %vm1411 = vmand %vm1303, %vm1105
      %vm1412 = vmand %vm1304, %vm1106
      %vm1413 = vmand %vm1395, %vm1197
      %vm1414 = vmand %vm1396, %vm1198
      %vm1415 = vmand %vm1397, %vm1199
      %vm1416 = vmand %vm1398, %vm1200
      %vm1417 = vmand %vm1399, %vm1201
      %vm1418 = vmand %vm1400, %vm1202
      %vm1419 = vmand %vm1401, %vm1203
      %vm1420 = vmand %vm1402, %vm1204
      %vm1421 = vmand %vm1403, %vm1205
      %vm1422 = vmand %vm1404, %vm1206
      %vm1423 = vmand %vm1405, %vm1207
      %vm1424 = vmand %vm1406, %vm1208
      %vm1425 = vmand %vm1407, %vm1209
      %vm1426 = vmand %vm1408, %vm1210
      %vm1427 = vmand %vm1409, %vm1211
      %vm1428 = vmand %vm1410, %vm1212
      %vm1429 = vmand %vm1411, %vm1213
      %vm1430 = vmand %vm1412, %vm1214
      %v1431 = vmul.f32 %v1377, %v459
      %v1432 = vmul.f32 %v1378, %v460
      %v1433 = vmul.f32 %v1379, %v461
      %v1434 = vmul.f32 %v1380, %v462
      %v1435 = vmul.f32 %v1381, %v463
      %v1436 = vmul.f32 %v1382, %v464
      %v1437 = vmul.f32 %v1383, %v465
      %v1438 = vmul.f32 %v1384, %v466
      %v1439 = vmul.f32 %v1385, %v467
      %v1440 = vmul.f32 %v1386, %v468
      %v1441 = vmul.f32 %v1387, %v469
      %v1442 = vmul.f32 %v1388, %v470
      %v1443 = vmul.f32 %v1389, %v471
      %v1444 = vmul.f32 %v1390, %v472
      %v1445 = vmul.f32 %v1391, %v473
      %v1446 = vmul.f32 %v1392, %v474
      %v1447 = vmul.f32 %v1393, %v475
      %v1448 = vmul.f32 %v1394, %v476
      %v1449 = vsel %vm1413, %v1431, 0.0
      %v1450 = vsel %vm1414, %v1432, 0.0
      %v1451 = vsel %vm1415, %v1433, 0.0
      %v1452 = vsel %vm1416, %v1434, 0.0
      %v1453 = vsel %vm1417, %v1435, 0.0
      %v1454 = vsel %vm1418, %v1436, 0.0
      %v1455 = vsel %vm1419, %v1437, 0.0
      %v1456 = vsel %vm1420, %v1438, 0.0
      %v1457 = vsel %vm1421, %v1439, 0.0
      %v1458 = vsel %vm1422, %v1440, 0.0
      %v1459 = vsel %vm1423, %v1441, 0.0
      %v1460 = vsel %vm1424, %v1442, 0.0
      %v1461 = vsel %vm1425, %v1443, 0.0
      %v1462 = vsel %vm1426, %v1444, 0.0
      %v1463 = vsel %vm1427, %v1445, 0.0
      %v1464 = vsel %vm1428, %v1446, 0.0
      %v1465 = vsel %vm1429, %v1447, 0.0
      %v1466 = vsel %vm1430, %v1448, 0.0
      %v1467 = vlaneseq
      %v1468 = vand.u32 %v1467, 127
      %v1469 = vadd.s32 %v1468, 128
      %v1470 = vmul.u32 %v531, 16
      %v1471 = vmul.u32 %v532, 16
      %v1472 = vmul.u32 %v533, 16
      %v1473 = vmul.u32 %v534, 16
      %v1474 = vmul.u32 %v535, 16
      %v1475 = vmul.u32 %v536, 16
      %v1476 = vmul.u32 %v537, 16
      %v1477 = vmul.u32 %v538, 16
      %v1478 = vmul.u32 %v539, 16
      %v1479 = vmul.u32 %v540, 16
      %v1480 = vmul.u32 %v541, 16
      %v1481 = vmul.u32 %v542, 16
      %v1482 = vmul.u32 %v543, 16
      %v1483 = vmul.u32 %v544, 16
      %v1484 = vmul.u32 %v545, 16
      %v1485 = vmul.u32 %v546, 16
      %v1486 = vmul.u32 %v547, 16
      %v1487 = vmul.u32 %v548, 16
      %1488 = vrot.lane.b32.xlu0 %v531, 127
      %v1489 = vpop.permute.xlu0 %1488
      %1490 = vrot.lane.b32.xlu0 %v532, 127
      %v1491 = vpop.permute.xlu0 %1490
      %1492 = vrot.lane.b32.xlu0 %v533, 127
      %v1493 = vpop.permute.xlu0 %1492
      %1494 = vrot.lane.b32.xlu0 %v534, 127
      %v1495 = vpop.permute.xlu0 %1494
      %1496 = vrot.lane.b32.xlu0 %v535, 127
      %v1497 = vpop.permute.xlu0 %1496
      %1498 = vrot.lane.b32.xlu0 %v536, 127
      %v1499 = vpop.permute.xlu0 %1498
      %1500 = vrot.lane.b32.xlu0 %v537, 127
      %v1501 = vpop.permute.xlu0 %1500
      %1502 = vrot.lane.b32.xlu0 %v538, 127
      %v1503 = vpop.permute.xlu0 %1502
      %1504 = vrot.lane.b32.xlu0 %v539, 127
      %v1505 = vpop.permute.xlu0 %1504
      %1506 = vrot.lane.b32.xlu0 %v540, 127
      %v1507 = vpop.permute.xlu0 %1506
      %1508 = vrot.lane.b32.xlu0 %v541, 127
      %v1509 = vpop.permute.xlu0 %1508
      %1510 = vrot.lane.b32.xlu0 %v542, 127
      %v1511 = vpop.permute.xlu0 %1510
      %1512 = vrot.lane.b32.xlu0 %v543, 127
      %v1513 = vpop.permute.xlu0 %1512
      %1514 = vrot.lane.b32.xlu0 %v544, 127
      %v1515 = vpop.permute.xlu0 %1514
      %1516 = vrot.lane.b32.xlu0 %v545, 127
      %v1517 = vpop.permute.xlu0 %1516
      %1518 = vrot.lane.b32.xlu0 %v546, 127
      %v1519 = vpop.permute.xlu0 %1518
      %1520 = vrot.lane.b32.xlu0 %v547, 127
      %v1521 = vpop.permute.xlu0 %1520
      %1522 = vrot.lane.b32.xlu0 %v548, 127
      %v1523 = vpop.permute.xlu0 %1522
      %v1524 = vadd.s32 %v1470, %v1489
      %v1525 = vadd.s32 %v1471, %v1491
      %v1526 = vadd.s32 %v1472, %v1493
      %v1527 = vadd.s32 %v1473, %v1495
      %v1528 = vadd.s32 %v1474, %v1497
      %v1529 = vadd.s32 %v1475, %v1499
      %v1530 = vadd.s32 %v1476, %v1501
      %v1531 = vadd.s32 %v1477, %v1503
      %v1532 = vadd.s32 %v1478, %v1505
      %v1533 = vadd.s32 %v1479, %v1507
      %v1534 = vadd.s32 %v1480, %v1509
      %v1535 = vadd.s32 %v1481, %v1511
      %v1536 = vadd.s32 %v1482, %v1513
      %v1537 = vadd.s32 %v1483, %v1515
      %v1538 = vadd.s32 %v1484, %v1517
      %v1539 = vadd.s32 %v1485, %v1519
      %v1540 = vadd.s32 %v1486, %v1521
      %v1541 = vadd.s32 %v1487, %v1523
      %1542 = vset.pattern.permute.xlu0 0
      %1543 = vperm.xlu0 %1542, %v1524
      %v1544 = vpop.permute.xlu0 %1543
      %1545 = vset.pattern.permute.xlu0 0
      %1546 = vperm.xlu0 %1545, %v1525
      %v1547 = vpop.permute.xlu0 %1546
      %1548 = vset.pattern.permute.xlu0 0
      %1549 = vperm.xlu0 %1548, %v1526
      %v1550 = vpop.permute.xlu0 %1549
      %1551 = vset.pattern.permute.xlu0 0
      %1552 = vperm.xlu0 %1551, %v1527
      %v1553 = vpop.permute.xlu0 %1552
      %1554 = vset.pattern.permute.xlu0 0
      %1555 = vperm.xlu0 %1554, %v1528
      %v1556 = vpop.permute.xlu0 %1555
      %1557 = vset.pattern.permute.xlu0 0
      %1558 = vperm.xlu0 %1557, %v1529
      %v1559 = vpop.permute.xlu0 %1558
      %1560 = vset.pattern.permute.xlu0 0
      %1561 = vperm.xlu0 %1560, %v1530
      %v1562 = vpop.permute.xlu0 %1561
      %1563 = vset.pattern.permute.xlu0 0
      %1564 = vperm.xlu0 %1563, %v1531
      %v1565 = vpop.permute.xlu0 %1564
      %1566 = vset.pattern.permute.xlu0 0
      %1567 = vperm.xlu0 %1566, %v1532
      %v1568 = vpop.permute.xlu0 %1567
      %1569 = vset.pattern.permute.xlu0 0
      %1570 = vperm.xlu0 %1569, %v1533
      %v1571 = vpop.permute.xlu0 %1570
      %1572 = vset.pattern.permute.xlu0 0
      %1573 = vperm.xlu0 %1572, %v1534
      %v1574 = vpop.permute.xlu0 %1573
      %1575 = vset.pattern.permute.xlu0 0
      %1576 = vperm.xlu0 %1575, %v1535
      %v1577 = vpop.permute.xlu0 %1576
      %1578 = vset.pattern.permute.xlu0 0
      %1579 = vperm.xlu0 %1578, %v1536
      %v1580 = vpop.permute.xlu0 %1579
      %1581 = vset.pattern.permute.xlu0 0
      %1582 = vperm.xlu0 %1581, %v1537
      %v1583 = vpop.permute.xlu0 %1582
      %1584 = vset.pattern.permute.xlu0 0
      %1585 = vperm.xlu0 %1584, %v1538
      %v1586 = vpop.permute.xlu0 %1585
      %1587 = vset.pattern.permute.xlu0 0
      %1588 = vperm.xlu0 %1587, %v1539
      %v1589 = vpop.permute.xlu0 %1588
      %1590 = vset.pattern.permute.xlu0 0
      %1591 = vperm.xlu0 %1590, %v1540
      %v1592 = vpop.permute.xlu0 %1591
      %1593 = vset.pattern.permute.xlu0 0
      %1594 = vperm.xlu0 %1593, %v1541
      %v1595 = vpop.permute.xlu0 %1594
      %vm1596 = vcmp.eq.s32.totalorder %v1468, %v1544
      %vm1597 = vcmp.eq.s32.totalorder %v1469, %v1544
      %vm1598 = vcmp.eq.s32.totalorder %v1468, %v1547
      %vm1599 = vcmp.eq.s32.totalorder %v1469, %v1547
      %vm1600 = vcmp.eq.s32.totalorder %v1468, %v1550
      %vm1601 = vcmp.eq.s32.totalorder %v1469, %v1550
      %vm1602 = vcmp.eq.s32.totalorder %v1468, %v1553
      %vm1603 = vcmp.eq.s32.totalorder %v1469, %v1553
      %vm1604 = vcmp.eq.s32.totalorder %v1468, %v1556
      %vm1605 = vcmp.eq.s32.totalorder %v1469, %v1556
      %vm1606 = vcmp.eq.s32.totalorder %v1468, %v1559
      %vm1607 = vcmp.eq.s32.totalorder %v1469, %v1559
      %vm1608 = vcmp.eq.s32.totalorder %v1468, %v1562
      %vm1609 = vcmp.eq.s32.totalorder %v1469, %v1562
      %vm1610 = vcmp.eq.s32.totalorder %v1468, %v1565
      %vm1611 = vcmp.eq.s32.totalorder %v1469, %v1565
      %vm1612 = vcmp.eq.s32.totalorder %v1468, %v1568
      %vm1613 = vcmp.eq.s32.totalorder %v1469, %v1568
      %vm1614 = vcmp.eq.s32.totalorder %v1468, %v1571
      %vm1615 = vcmp.eq.s32.totalorder %v1469, %v1571
      %vm1616 = vcmp.eq.s32.totalorder %v1468, %v1574
      %vm1617 = vcmp.eq.s32.totalorder %v1469, %v1574
      %vm1618 = vcmp.eq.s32.totalorder %v1468, %v1577
      %vm1619 = vcmp.eq.s32.totalorder %v1469, %v1577
      %vm1620 = vcmp.eq.s32.totalorder %v1468, %v1580
      %vm1621 = vcmp.eq.s32.totalorder %v1469, %v1580
      %vm1622 = vcmp.eq.s32.totalorder %v1468, %v1583
      %vm1623 = vcmp.eq.s32.totalorder %v1469, %v1583
      %vm1624 = vcmp.eq.s32.totalorder %v1468, %v1586
      %vm1625 = vcmp.eq.s32.totalorder %v1469, %v1586
      %vm1626 = vcmp.eq.s32.totalorder %v1468, %v1589
      %vm1627 = vcmp.eq.s32.totalorder %v1469, %v1589
      %vm1628 = vcmp.eq.s32.totalorder %v1468, %v1592
      %vm1629 = vcmp.eq.s32.totalorder %v1469, %v1592
      %vm1630 = vcmp.eq.s32.totalorder %v1468, %v1595
      %vm1631 = vcmp.eq.s32.totalorder %v1469, %v1595
      %1633 = vset.pattern.permute.xlu0 0
      %1634 = vperm.xlu0 %1633, %v909
      %v1635 = vpop.permute.xlu0 %1634
      %1638 = vset.pattern.permute.xlu0 0
      %1639 = vperm.xlu0 %1638, %v910
      %v1640 = vpop.permute.xlu0 %1639
      %1643 = vset.pattern.permute.xlu0 0
      %1644 = vperm.xlu0 %1643, %v911
      %v1645 = vpop.permute.xlu0 %1644
      %1648 = vset.pattern.permute.xlu0 0
      %1649 = vperm.xlu0 %1648, %v912
      %v1650 = vpop.permute.xlu0 %1649
      %1653 = vset.pattern.permute.xlu0 0
      %1654 = vperm.xlu0 %1653, %v913
      %v1655 = vpop.permute.xlu0 %1654
      %1658 = vset.pattern.permute.xlu0 0
      %1659 = vperm.xlu0 %1658, %v914
      %v1660 = vpop.permute.xlu0 %1659
      %1663 = vset.pattern.permute.xlu0 0
      %1664 = vperm.xlu0 %1663, %v915
      %v1665 = vpop.permute.xlu0 %1664
      %1668 = vset.pattern.permute.xlu0 0
      %1669 = vperm.xlu0 %1668, %v916
      %v1670 = vpop.permute.xlu0 %1669
      %1673 = vset.pattern.permute.xlu0 0
      %1674 = vperm.xlu0 %1673, %v917
      %v1675 = vpop.permute.xlu0 %1674
      %1678 = vset.pattern.permute.xlu0 0
      %1679 = vperm.xlu0 %1678, %v918
      %v1680 = vpop.permute.xlu0 %1679
      %1683 = vset.pattern.permute.xlu0 0
      %1684 = vperm.xlu0 %1683, %v919
      %v1685 = vpop.permute.xlu0 %1684
      %1688 = vset.pattern.permute.xlu0 0
      %1689 = vperm.xlu0 %1688, %v920
      %v1690 = vpop.permute.xlu0 %1689
      %1693 = vset.pattern.permute.xlu0 0
      %1694 = vperm.xlu0 %1693, %v921
      %v1695 = vpop.permute.xlu0 %1694
      %1698 = vset.pattern.permute.xlu0 0
      %1699 = vperm.xlu0 %1698, %v922
      %v1700 = vpop.permute.xlu0 %1699
      %1703 = vset.pattern.permute.xlu0 0
      %1704 = vperm.xlu0 %1703, %v923
      %v1705 = vpop.permute.xlu0 %1704
      %1708 = vset.pattern.permute.xlu0 0
      %1709 = vperm.xlu0 %1708, %v924
      %v1710 = vpop.permute.xlu0 %1709
      %1713 = vset.pattern.permute.xlu0 0
      %1714 = vperm.xlu0 %1713, %v925
      %v1715 = vpop.permute.xlu0 %1714
      %1718 = vset.pattern.permute.xlu0 0
      %1719 = vperm.xlu0 %1718, %v926
      %v1720 = vpop.permute.xlu0 %1719
      %v1722 = vsel %vm1596, %v1635, 0.0
      %v1723 = vsel %vm1597, %v1635, 0.0
      %v1724 = vsel %vm1598, %v1640, 0.0
      %v1725 = vsel %vm1599, %v1640, 0.0
      %v1726 = vsel %vm1600, %v1645, 0.0
      %v1727 = vsel %vm1601, %v1645, 0.0
      %v1728 = vsel %vm1602, %v1650, 0.0
      %v1729 = vsel %vm1603, %v1650, 0.0
      %v1730 = vsel %vm1604, %v1655, 0.0
      %v1731 = vsel %vm1605, %v1655, 0.0
      %v1732 = vsel %vm1606, %v1660, 0.0
      %v1733 = vsel %vm1607, %v1660, 0.0
      %v1734 = vsel %vm1608, %v1665, 0.0
      %v1735 = vsel %vm1609, %v1665, 0.0
      %v1736 = vsel %vm1610, %v1670, 0.0
      %v1737 = vsel %vm1611, %v1670, 0.0
      %v1738 = vsel %vm1612, %v1675, 0.0
      %v1739 = vsel %vm1613, %v1675, 0.0
      %v1740 = vsel %vm1614, %v1680, 0.0
      %v1741 = vsel %vm1615, %v1680, 0.0
      %v1742 = vsel %vm1616, %v1685, 0.0
      %v1743 = vsel %vm1617, %v1685, 0.0
      %v1744 = vsel %vm1618, %v1690, 0.0
      %v1745 = vsel %vm1619, %v1690, 0.0
      %v1746 = vsel %vm1620, %v1695, 0.0
      %v1747 = vsel %vm1621, %v1695, 0.0
      %v1748 = vsel %vm1622, %v1700, 0.0
      %v1749 = vsel %vm1623, %v1700, 0.0
      %v1750 = vsel %vm1624, %v1705, 0.0
      %v1751 = vsel %vm1625, %v1705, 0.0
      %v1752 = vsel %vm1626, %v1710, 0.0
      %v1753 = vsel %vm1627, %v1710, 0.0
      %v1754 = vsel %vm1628, %v1715, 0.0
      %v1755 = vsel %vm1629, %v1715, 0.0
      %v1756 = vsel %vm1630, %v1720, 0.0
      %v1757 = vsel %vm1631, %v1720, 0.0
      %1758 = vrot.lane.b32.xlu0 %v549, 127
      %v1759 = vpop.permute.xlu0 %1758
      %1760 = vrot.lane.b32.xlu0 %v550, 127
      %v1761 = vpop.permute.xlu0 %1760
      %1762 = vrot.lane.b32.xlu0 %v551, 127
      %v1763 = vpop.permute.xlu0 %1762
      %1764 = vrot.lane.b32.xlu0 %v552, 127
      %v1765 = vpop.permute.xlu0 %1764
      %1766 = vrot.lane.b32.xlu0 %v553, 127
      %v1767 = vpop.permute.xlu0 %1766
      %1768 = vrot.lane.b32.xlu0 %v554, 127
      %v1769 = vpop.permute.xlu0 %1768
      %1770 = vrot.lane.b32.xlu0 %v555, 127
      %v1771 = vpop.permute.xlu0 %1770
      %1772 = vrot.lane.b32.xlu0 %v556, 127
      %v1773 = vpop.permute.xlu0 %1772
      %1774 = vrot.lane.b32.xlu0 %v557, 127
      %v1775 = vpop.permute.xlu0 %1774
      %1776 = vrot.lane.b32.xlu0 %v558, 127
      %v1777 = vpop.permute.xlu0 %1776
      %1778 = vrot.lane.b32.xlu0 %v559, 127
      %v1779 = vpop.permute.xlu0 %1778
      %1780 = vrot.lane.b32.xlu0 %v560, 127
      %v1781 = vpop.permute.xlu0 %1780
      %1782 = vrot.lane.b32.xlu0 %v561, 127
      %v1783 = vpop.permute.xlu0 %1782
      %1784 = vrot.lane.b32.xlu0 %v562, 127
      %v1785 = vpop.permute.xlu0 %1784
      %1786 = vrot.lane.b32.xlu0 %v563, 127
      %v1787 = vpop.permute.xlu0 %1786
      %1788 = vrot.lane.b32.xlu0 %v564, 127
      %v1789 = vpop.permute.xlu0 %1788
      %1790 = vrot.lane.b32.xlu0 %v565, 127
      %v1791 = vpop.permute.xlu0 %1790
      %1792 = vrot.lane.b32.xlu0 %v566, 127
      %v1793 = vpop.permute.xlu0 %1792
      %v1794 = vadd.s32 %v1470, %v1759
      %v1795 = vadd.s32 %v1471, %v1761
      %v1796 = vadd.s32 %v1472, %v1763
      %v1797 = vadd.s32 %v1473, %v1765
      %v1798 = vadd.s32 %v1474, %v1767
      %v1799 = vadd.s32 %v1475, %v1769
      %v1800 = vadd.s32 %v1476, %v1771
      %v1801 = vadd.s32 %v1477, %v1773
      %v1802 = vadd.s32 %v1478, %v1775
      %v1803 = vadd.s32 %v1479, %v1777
      %v1804 = vadd.s32 %v1480, %v1779
      %v1805 = vadd.s32 %v1481, %v1781
      %v1806 = vadd.s32 %v1482, %v1783
      %v1807 = vadd.s32 %v1483, %v1785
      %v1808 = vadd.s32 %v1484, %v1787
      %v1809 = vadd.s32 %v1485, %v1789
      %v1810 = vadd.s32 %v1486, %v1791
      %v1811 = vadd.s32 %v1487, %v1793
      %1812 = vset.pattern.permute.xlu0 0
      %1813 = vperm.xlu0 %1812, %v1794
      %v1814 = vpop.permute.xlu0 %1813
      %1815 = vset.pattern.permute.xlu0 0
      %1816 = vperm.xlu0 %1815, %v1795
      %v1817 = vpop.permute.xlu0 %1816
      %1818 = vset.pattern.permute.xlu0 0
      %1819 = vperm.xlu0 %1818, %v1796
      %v1820 = vpop.permute.xlu0 %1819
      %1821 = vset.pattern.permute.xlu0 0
      %1822 = vperm.xlu0 %1821, %v1797
      %v1823 = vpop.permute.xlu0 %1822
      %1824 = vset.pattern.permute.xlu0 0
      %1825 = vperm.xlu0 %1824, %v1798
      %v1826 = vpop.permute.xlu0 %1825
      %1827 = vset.pattern.permute.xlu0 0
      %1828 = vperm.xlu0 %1827, %v1799
      %v1829 = vpop.permute.xlu0 %1828
      %1830 = vset.pattern.permute.xlu0 0
      %1831 = vperm.xlu0 %1830, %v1800
      %v1832 = vpop.permute.xlu0 %1831
      %1833 = vset.pattern.permute.xlu0 0
      %1834 = vperm.xlu0 %1833, %v1801
      %v1835 = vpop.permute.xlu0 %1834
      %1836 = vset.pattern.permute.xlu0 0
      %1837 = vperm.xlu0 %1836, %v1802
      %v1838 = vpop.permute.xlu0 %1837
      %1839 = vset.pattern.permute.xlu0 0
      %1840 = vperm.xlu0 %1839, %v1803
      %v1841 = vpop.permute.xlu0 %1840
      %1842 = vset.pattern.permute.xlu0 0
      %1843 = vperm.xlu0 %1842, %v1804
      %v1844 = vpop.permute.xlu0 %1843
      %1845 = vset.pattern.permute.xlu0 0
      %1846 = vperm.xlu0 %1845, %v1805
      %v1847 = vpop.permute.xlu0 %1846
      %1848 = vset.pattern.permute.xlu0 0
      %1849 = vperm.xlu0 %1848, %v1806
      %v1850 = vpop.permute.xlu0 %1849
      %1851 = vset.pattern.permute.xlu0 0
      %1852 = vperm.xlu0 %1851, %v1807
      %v1853 = vpop.permute.xlu0 %1852
      %1854 = vset.pattern.permute.xlu0 0
      %1855 = vperm.xlu0 %1854, %v1808
      %v1856 = vpop.permute.xlu0 %1855
      %1857 = vset.pattern.permute.xlu0 0
      %1858 = vperm.xlu0 %1857, %v1809
      %v1859 = vpop.permute.xlu0 %1858
      %1860 = vset.pattern.permute.xlu0 0
      %1861 = vperm.xlu0 %1860, %v1810
      %v1862 = vpop.permute.xlu0 %1861
      %1863 = vset.pattern.permute.xlu0 0
      %1864 = vperm.xlu0 %1863, %v1811
      %v1865 = vpop.permute.xlu0 %1864
      %vm1866 = vcmp.eq.s32.totalorder %v1468, %v1814
      %vm1867 = vcmp.eq.s32.totalorder %v1469, %v1814
      %vm1868 = vcmp.eq.s32.totalorder %v1468, %v1817
      %vm1869 = vcmp.eq.s32.totalorder %v1469, %v1817
      %vm1870 = vcmp.eq.s32.totalorder %v1468, %v1820
      %vm1871 = vcmp.eq.s32.totalorder %v1469, %v1820
      %vm1872 = vcmp.eq.s32.totalorder %v1468, %v1823
      %vm1873 = vcmp.eq.s32.totalorder %v1469, %v1823
      %vm1874 = vcmp.eq.s32.totalorder %v1468, %v1826
      %vm1875 = vcmp.eq.s32.totalorder %v1469, %v1826
      %vm1876 = vcmp.eq.s32.totalorder %v1468, %v1829
      %vm1877 = vcmp.eq.s32.totalorder %v1469, %v1829
      %vm1878 = vcmp.eq.s32.totalorder %v1468, %v1832
      %vm1879 = vcmp.eq.s32.totalorder %v1469, %v1832
      %vm1880 = vcmp.eq.s32.totalorder %v1468, %v1835
      %vm1881 = vcmp.eq.s32.totalorder %v1469, %v1835
      %vm1882 = vcmp.eq.s32.totalorder %v1468, %v1838
      %vm1883 = vcmp.eq.s32.totalorder %v1469, %v1838
      %vm1884 = vcmp.eq.s32.totalorder %v1468, %v1841
      %vm1885 = vcmp.eq.s32.totalorder %v1469, %v1841
      %vm1886 = vcmp.eq.s32.totalorder %v1468, %v1844
      %vm1887 = vcmp.eq.s32.totalorder %v1469, %v1844
      %vm1888 = vcmp.eq.s32.totalorder %v1468, %v1847
      %vm1889 = vcmp.eq.s32.totalorder %v1469, %v1847
      %vm1890 = vcmp.eq.s32.totalorder %v1468, %v1850
      %vm1891 = vcmp.eq.s32.totalorder %v1469, %v1850
      %vm1892 = vcmp.eq.s32.totalorder %v1468, %v1853
      %vm1893 = vcmp.eq.s32.totalorder %v1469, %v1853
      %vm1894 = vcmp.eq.s32.totalorder %v1468, %v1856
      %vm1895 = vcmp.eq.s32.totalorder %v1469, %v1856
      %vm1896 = vcmp.eq.s32.totalorder %v1468, %v1859
      %vm1897 = vcmp.eq.s32.totalorder %v1469, %v1859
      %vm1898 = vcmp.eq.s32.totalorder %v1468, %v1862
      %vm1899 = vcmp.eq.s32.totalorder %v1469, %v1862
      %vm1900 = vcmp.eq.s32.totalorder %v1468, %v1865
      %vm1901 = vcmp.eq.s32.totalorder %v1469, %v1865
      %1903 = vset.pattern.permute.xlu0 0
      %1904 = vperm.xlu0 %1903, %v1251
      %v1905 = vpop.permute.xlu0 %1904
      %1908 = vset.pattern.permute.xlu0 0
      %1909 = vperm.xlu0 %1908, %v1252
      %v1910 = vpop.permute.xlu0 %1909
      %1913 = vset.pattern.permute.xlu0 0
      %1914 = vperm.xlu0 %1913, %v1253
      %v1915 = vpop.permute.xlu0 %1914
      %1918 = vset.pattern.permute.xlu0 0
      %1919 = vperm.xlu0 %1918, %v1254
      %v1920 = vpop.permute.xlu0 %1919
      %1923 = vset.pattern.permute.xlu0 0
      %1924 = vperm.xlu0 %1923, %v1255
      %v1925 = vpop.permute.xlu0 %1924
      %1928 = vset.pattern.permute.xlu0 0
      %1929 = vperm.xlu0 %1928, %v1256
      %v1930 = vpop.permute.xlu0 %1929
      %1933 = vset.pattern.permute.xlu0 0
      %1934 = vperm.xlu0 %1933, %v1257
      %v1935 = vpop.permute.xlu0 %1934
      %1938 = vset.pattern.permute.xlu0 0
      %1939 = vperm.xlu0 %1938, %v1258
      %v1940 = vpop.permute.xlu0 %1939
      %1943 = vset.pattern.permute.xlu0 0
      %1944 = vperm.xlu0 %1943, %v1259
      %v1945 = vpop.permute.xlu0 %1944
      %1948 = vset.pattern.permute.xlu0 0
      %1949 = vperm.xlu0 %1948, %v1260
      %v1950 = vpop.permute.xlu0 %1949
      %1953 = vset.pattern.permute.xlu0 0
      %1954 = vperm.xlu0 %1953, %v1261
      %v1955 = vpop.permute.xlu0 %1954
      %1958 = vset.pattern.permute.xlu0 0
      %1959 = vperm.xlu0 %1958, %v1262
      %v1960 = vpop.permute.xlu0 %1959
      %1963 = vset.pattern.permute.xlu0 0
      %1964 = vperm.xlu0 %1963, %v1263
      %v1965 = vpop.permute.xlu0 %1964
      %1968 = vset.pattern.permute.xlu0 0
      %1969 = vperm.xlu0 %1968, %v1264
      %v1970 = vpop.permute.xlu0 %1969
      %1973 = vset.pattern.permute.xlu0 0
      %1974 = vperm.xlu0 %1973, %v1265
      %v1975 = vpop.permute.xlu0 %1974
      %1978 = vset.pattern.permute.xlu0 0
      %1979 = vperm.xlu0 %1978, %v1266
      %v1980 = vpop.permute.xlu0 %1979
      %1983 = vset.pattern.permute.xlu0 0
      %1984 = vperm.xlu0 %1983, %v1267
      %v1985 = vpop.permute.xlu0 %1984
      %1988 = vset.pattern.permute.xlu0 0
      %1989 = vperm.xlu0 %1988, %v1268
      %v1990 = vpop.permute.xlu0 %1989
      %v1992 = vsel %vm1866, %v1905, 0.0
      %v1993 = vsel %vm1867, %v1905, 0.0
      %v1994 = vsel %vm1868, %v1910, 0.0
      %v1995 = vsel %vm1869, %v1910, 0.0
      %v1996 = vsel %vm1870, %v1915, 0.0
      %v1997 = vsel %vm1871, %v1915, 0.0
      %v1998 = vsel %vm1872, %v1920, 0.0
      %v1999 = vsel %vm1873, %v1920, 0.0
      %v2000 = vsel %vm1874, %v1925, 0.0
      %v2001 = vsel %vm1875, %v1925, 0.0
      %v2002 = vsel %vm1876, %v1930, 0.0
      %v2003 = vsel %vm1877, %v1930, 0.0
      %v2004 = vsel %vm1878, %v1935, 0.0
      %v2005 = vsel %vm1879, %v1935, 0.0
      %v2006 = vsel %vm1880, %v1940, 0.0
      %v2007 = vsel %vm1881, %v1940, 0.0
      %v2008 = vsel %vm1882, %v1945, 0.0
      %v2009 = vsel %vm1883, %v1945, 0.0
      %v2010 = vsel %vm1884, %v1950, 0.0
      %v2011 = vsel %vm1885, %v1950, 0.0
      %v2012 = vsel %vm1886, %v1955, 0.0
      %v2013 = vsel %vm1887, %v1955, 0.0
      %v2014 = vsel %vm1888, %v1960, 0.0
      %v2015 = vsel %vm1889, %v1960, 0.0
      %v2016 = vsel %vm1890, %v1965, 0.0
      %v2017 = vsel %vm1891, %v1965, 0.0
      %v2018 = vsel %vm1892, %v1970, 0.0
      %v2019 = vsel %vm1893, %v1970, 0.0
      %v2020 = vsel %vm1894, %v1975, 0.0
      %v2021 = vsel %vm1895, %v1975, 0.0
      %v2022 = vsel %vm1896, %v1980, 0.0
      %v2023 = vsel %vm1897, %v1980, 0.0
      %v2024 = vsel %vm1898, %v1985, 0.0
      %v2025 = vsel %vm1899, %v1985, 0.0
      %v2026 = vsel %vm1900, %v1990, 0.0
      %v2027 = vsel %vm1901, %v1990, 0.0
      %v2028 = vadd.f32 %v1722, %v1992
      %v2029 = vadd.f32 %v1723, %v1993
      %v2030 = vadd.f32 %v1724, %v1994
      %v2031 = vadd.f32 %v1725, %v1995
      %v2032 = vadd.f32 %v1726, %v1996
      %v2033 = vadd.f32 %v1727, %v1997
      %v2034 = vadd.f32 %v1728, %v1998
      %v2035 = vadd.f32 %v1729, %v1999
      %v2036 = vadd.f32 %v1730, %v2000
      %v2037 = vadd.f32 %v1731, %v2001
      %v2038 = vadd.f32 %v1732, %v2002
      %v2039 = vadd.f32 %v1733, %v2003
      %v2040 = vadd.f32 %v1734, %v2004
      %v2041 = vadd.f32 %v1735, %v2005
      %v2042 = vadd.f32 %v1736, %v2006
      %v2043 = vadd.f32 %v1737, %v2007
      %v2044 = vadd.f32 %v1738, %v2008
      %v2045 = vadd.f32 %v1739, %v2009
      %v2046 = vadd.f32 %v1740, %v2010
      %v2047 = vadd.f32 %v1741, %v2011
      %v2048 = vadd.f32 %v1742, %v2012
      %v2049 = vadd.f32 %v1743, %v2013
      %v2050 = vadd.f32 %v1744, %v2014
      %v2051 = vadd.f32 %v1745, %v2015
      %v2052 = vadd.f32 %v1746, %v2016
      %v2053 = vadd.f32 %v1747, %v2017
      %v2054 = vadd.f32 %v1748, %v2018
      %v2055 = vadd.f32 %v1749, %v2019
      %v2056 = vadd.f32 %v1750, %v2020
      %v2057 = vadd.f32 %v1751, %v2021
      %v2058 = vadd.f32 %v1752, %v2022
      %v2059 = vadd.f32 %v1753, %v2023
      %v2060 = vadd.f32 %v1754, %v2024
      %v2061 = vadd.f32 %v1755, %v2025
      %v2062 = vadd.f32 %v1756, %v2026
      %v2063 = vadd.f32 %v1757, %v2027
      %v2064 = vmul.u32 %v549, 16
      %v2065 = vmul.u32 %v550, 16
      %v2066 = vmul.u32 %v551, 16
      %v2067 = vmul.u32 %v552, 16
      %v2068 = vmul.u32 %v553, 16
      %v2069 = vmul.u32 %v554, 16
      %v2070 = vmul.u32 %v555, 16
      %v2071 = vmul.u32 %v556, 16
      %v2072 = vmul.u32 %v557, 16
      %v2073 = vmul.u32 %v558, 16
      %v2074 = vmul.u32 %v559, 16
      %v2075 = vmul.u32 %v560, 16
      %v2076 = vmul.u32 %v561, 16
      %v2077 = vmul.u32 %v562, 16
      %v2078 = vmul.u32 %v563, 16
      %v2079 = vmul.u32 %v564, 16
      %v2080 = vmul.u32 %v565, 16
      %v2081 = vmul.u32 %v566, 16
      %v2082 = vadd.s32 %v2064, %v1489
      %v2083 = vadd.s32 %v2065, %v1491
      %v2084 = vadd.s32 %v2066, %v1493
      %v2085 = vadd.s32 %v2067, %v1495
      %v2086 = vadd.s32 %v2068, %v1497
      %v2087 = vadd.s32 %v2069, %v1499
      %v2088 = vadd.s32 %v2070, %v1501
      %v2089 = vadd.s32 %v2071, %v1503
      %v2090 = vadd.s32 %v2072, %v1505
      %v2091 = vadd.s32 %v2073, %v1507
      %v2092 = vadd.s32 %v2074, %v1509
      %v2093 = vadd.s32 %v2075, %v1511
      %v2094 = vadd.s32 %v2076, %v1513
      %v2095 = vadd.s32 %v2077, %v1515
      %v2096 = vadd.s32 %v2078, %v1517
      %v2097 = vadd.s32 %v2079, %v1519
      %v2098 = vadd.s32 %v2080, %v1521
      %v2099 = vadd.s32 %v2081, %v1523
      %2100 = vset.pattern.permute.xlu0 0
      %2101 = vperm.xlu0 %2100, %v2082
      %v2102 = vpop.permute.xlu0 %2101
      %2103 = vset.pattern.permute.xlu0 0
      %2104 = vperm.xlu0 %2103, %v2083
      %v2105 = vpop.permute.xlu0 %2104
      %2106 = vset.pattern.permute.xlu0 0
      %2107 = vperm.xlu0 %2106, %v2084
      %v2108 = vpop.permute.xlu0 %2107
      %2109 = vset.pattern.permute.xlu0 0
      %2110 = vperm.xlu0 %2109, %v2085
      %v2111 = vpop.permute.xlu0 %2110
      %2112 = vset.pattern.permute.xlu0 0
      %2113 = vperm.xlu0 %2112, %v2086
      %v2114 = vpop.permute.xlu0 %2113
      %2115 = vset.pattern.permute.xlu0 0
      %2116 = vperm.xlu0 %2115, %v2087
      %v2117 = vpop.permute.xlu0 %2116
      %2118 = vset.pattern.permute.xlu0 0
      %2119 = vperm.xlu0 %2118, %v2088
      %v2120 = vpop.permute.xlu0 %2119
      %2121 = vset.pattern.permute.xlu0 0
      %2122 = vperm.xlu0 %2121, %v2089
      %v2123 = vpop.permute.xlu0 %2122
      %2124 = vset.pattern.permute.xlu0 0
      %2125 = vperm.xlu0 %2124, %v2090
      %v2126 = vpop.permute.xlu0 %2125
      %2127 = vset.pattern.permute.xlu0 0
      %2128 = vperm.xlu0 %2127, %v2091
      %v2129 = vpop.permute.xlu0 %2128
      %2130 = vset.pattern.permute.xlu0 0
      %2131 = vperm.xlu0 %2130, %v2092
      %v2132 = vpop.permute.xlu0 %2131
      %2133 = vset.pattern.permute.xlu0 0
      %2134 = vperm.xlu0 %2133, %v2093
      %v2135 = vpop.permute.xlu0 %2134
      %2136 = vset.pattern.permute.xlu0 0
      %2137 = vperm.xlu0 %2136, %v2094
      %v2138 = vpop.permute.xlu0 %2137
      %2139 = vset.pattern.permute.xlu0 0
      %2140 = vperm.xlu0 %2139, %v2095
      %v2141 = vpop.permute.xlu0 %2140
      %2142 = vset.pattern.permute.xlu0 0
      %2143 = vperm.xlu0 %2142, %v2096
      %v2144 = vpop.permute.xlu0 %2143
      %2145 = vset.pattern.permute.xlu0 0
      %2146 = vperm.xlu0 %2145, %v2097
      %v2147 = vpop.permute.xlu0 %2146
      %2148 = vset.pattern.permute.xlu0 0
      %2149 = vperm.xlu0 %2148, %v2098
      %v2150 = vpop.permute.xlu0 %2149
      %2151 = vset.pattern.permute.xlu0 0
      %2152 = vperm.xlu0 %2151, %v2099
      %v2153 = vpop.permute.xlu0 %2152
      %vm2154 = vcmp.eq.s32.totalorder %v1468, %v2102
      %vm2155 = vcmp.eq.s32.totalorder %v1469, %v2102
      %vm2156 = vcmp.eq.s32.totalorder %v1468, %v2105
      %vm2157 = vcmp.eq.s32.totalorder %v1469, %v2105
      %vm2158 = vcmp.eq.s32.totalorder %v1468, %v2108
      %vm2159 = vcmp.eq.s32.totalorder %v1469, %v2108
      %vm2160 = vcmp.eq.s32.totalorder %v1468, %v2111
      %vm2161 = vcmp.eq.s32.totalorder %v1469, %v2111
      %vm2162 = vcmp.eq.s32.totalorder %v1468, %v2114
      %vm2163 = vcmp.eq.s32.totalorder %v1469, %v2114
      %vm2164 = vcmp.eq.s32.totalorder %v1468, %v2117
      %vm2165 = vcmp.eq.s32.totalorder %v1469, %v2117
      %vm2166 = vcmp.eq.s32.totalorder %v1468, %v2120
      %vm2167 = vcmp.eq.s32.totalorder %v1469, %v2120
      %vm2168 = vcmp.eq.s32.totalorder %v1468, %v2123
      %vm2169 = vcmp.eq.s32.totalorder %v1469, %v2123
      %vm2170 = vcmp.eq.s32.totalorder %v1468, %v2126
      %vm2171 = vcmp.eq.s32.totalorder %v1469, %v2126
      %vm2172 = vcmp.eq.s32.totalorder %v1468, %v2129
      %vm2173 = vcmp.eq.s32.totalorder %v1469, %v2129
      %vm2174 = vcmp.eq.s32.totalorder %v1468, %v2132
      %vm2175 = vcmp.eq.s32.totalorder %v1469, %v2132
      %vm2176 = vcmp.eq.s32.totalorder %v1468, %v2135
      %vm2177 = vcmp.eq.s32.totalorder %v1469, %v2135
      %vm2178 = vcmp.eq.s32.totalorder %v1468, %v2138
      %vm2179 = vcmp.eq.s32.totalorder %v1469, %v2138
      %vm2180 = vcmp.eq.s32.totalorder %v1468, %v2141
      %vm2181 = vcmp.eq.s32.totalorder %v1469, %v2141
      %vm2182 = vcmp.eq.s32.totalorder %v1468, %v2144
      %vm2183 = vcmp.eq.s32.totalorder %v1469, %v2144
      %vm2184 = vcmp.eq.s32.totalorder %v1468, %v2147
      %vm2185 = vcmp.eq.s32.totalorder %v1469, %v2147
      %vm2186 = vcmp.eq.s32.totalorder %v1468, %v2150
      %vm2187 = vcmp.eq.s32.totalorder %v1469, %v2150
      %vm2188 = vcmp.eq.s32.totalorder %v1468, %v2153
      %vm2189 = vcmp.eq.s32.totalorder %v1469, %v2153
      %2191 = vset.pattern.permute.xlu0 0
      %2192 = vperm.xlu0 %2191, %v1359
      %v2193 = vpop.permute.xlu0 %2192
      %2196 = vset.pattern.permute.xlu0 0
      %2197 = vperm.xlu0 %2196, %v1360
      %v2198 = vpop.permute.xlu0 %2197
      %2201 = vset.pattern.permute.xlu0 0
      %2202 = vperm.xlu0 %2201, %v1361
      %v2203 = vpop.permute.xlu0 %2202
      %2206 = vset.pattern.permute.xlu0 0
      %2207 = vperm.xlu0 %2206, %v1362
      %v2208 = vpop.permute.xlu0 %2207
      %2211 = vset.pattern.permute.xlu0 0
      %2212 = vperm.xlu0 %2211, %v1363
      %v2213 = vpop.permute.xlu0 %2212
      %2216 = vset.pattern.permute.xlu0 0
      %2217 = vperm.xlu0 %2216, %v1364
      %v2218 = vpop.permute.xlu0 %2217
      %2221 = vset.pattern.permute.xlu0 0
      %2222 = vperm.xlu0 %2221, %v1365
      %v2223 = vpop.permute.xlu0 %2222
      %2226 = vset.pattern.permute.xlu0 0
      %2227 = vperm.xlu0 %2226, %v1366
      %v2228 = vpop.permute.xlu0 %2227
      %2231 = vset.pattern.permute.xlu0 0
      %2232 = vperm.xlu0 %2231, %v1367
      %v2233 = vpop.permute.xlu0 %2232
      %2236 = vset.pattern.permute.xlu0 0
      %2237 = vperm.xlu0 %2236, %v1368
      %v2238 = vpop.permute.xlu0 %2237
      %2241 = vset.pattern.permute.xlu0 0
      %2242 = vperm.xlu0 %2241, %v1369
      %v2243 = vpop.permute.xlu0 %2242
      %2246 = vset.pattern.permute.xlu0 0
      %2247 = vperm.xlu0 %2246, %v1370
      %v2248 = vpop.permute.xlu0 %2247
      %2251 = vset.pattern.permute.xlu0 0
      %2252 = vperm.xlu0 %2251, %v1371
      %v2253 = vpop.permute.xlu0 %2252
      %2256 = vset.pattern.permute.xlu0 0
      %2257 = vperm.xlu0 %2256, %v1372
      %v2258 = vpop.permute.xlu0 %2257
      %2261 = vset.pattern.permute.xlu0 0
      %2262 = vperm.xlu0 %2261, %v1373
      %v2263 = vpop.permute.xlu0 %2262
      %2266 = vset.pattern.permute.xlu0 0
      %2267 = vperm.xlu0 %2266, %v1374
      %v2268 = vpop.permute.xlu0 %2267
      %2271 = vset.pattern.permute.xlu0 0
      %2272 = vperm.xlu0 %2271, %v1375
      %v2273 = vpop.permute.xlu0 %2272
      %2276 = vset.pattern.permute.xlu0 0
      %2277 = vperm.xlu0 %2276, %v1376
      %v2278 = vpop.permute.xlu0 %2277
      %v2280 = vsel %vm2154, %v2193, 0.0
      %v2281 = vsel %vm2155, %v2193, 0.0
      %v2282 = vsel %vm2156, %v2198, 0.0
      %v2283 = vsel %vm2157, %v2198, 0.0
      %v2284 = vsel %vm2158, %v2203, 0.0
      %v2285 = vsel %vm2159, %v2203, 0.0
      %v2286 = vsel %vm2160, %v2208, 0.0
      %v2287 = vsel %vm2161, %v2208, 0.0
      %v2288 = vsel %vm2162, %v2213, 0.0
      %v2289 = vsel %vm2163, %v2213, 0.0
      %v2290 = vsel %vm2164, %v2218, 0.0
      %v2291 = vsel %vm2165, %v2218, 0.0
      %v2292 = vsel %vm2166, %v2223, 0.0
      %v2293 = vsel %vm2167, %v2223, 0.0
      %v2294 = vsel %vm2168, %v2228, 0.0
      %v2295 = vsel %vm2169, %v2228, 0.0
      %v2296 = vsel %vm2170, %v2233, 0.0
      %v2297 = vsel %vm2171, %v2233, 0.0
      %v2298 = vsel %vm2172, %v2238, 0.0
      %v2299 = vsel %vm2173, %v2238, 0.0
      %v2300 = vsel %vm2174, %v2243, 0.0
      %v2301 = vsel %vm2175, %v2243, 0.0
      %v2302 = vsel %vm2176, %v2248, 0.0
      %v2303 = vsel %vm2177, %v2248, 0.0
      %v2304 = vsel %vm2178, %v2253, 0.0
      %v2305 = vsel %vm2179, %v2253, 0.0
      %v2306 = vsel %vm2180, %v2258, 0.0
      %v2307 = vsel %vm2181, %v2258, 0.0
      %v2308 = vsel %vm2182, %v2263, 0.0
      %v2309 = vsel %vm2183, %v2263, 0.0
      %v2310 = vsel %vm2184, %v2268, 0.0
      %v2311 = vsel %vm2185, %v2268, 0.0
      %v2312 = vsel %vm2186, %v2273, 0.0
      %v2313 = vsel %vm2187, %v2273, 0.0
      %v2314 = vsel %vm2188, %v2278, 0.0
      %v2315 = vsel %vm2189, %v2278, 0.0
      %v2316 = vadd.f32 %v2028, %v2280
      %v2317 = vadd.f32 %v2029, %v2281
      %v2318 = vadd.f32 %v2030, %v2282
      %v2319 = vadd.f32 %v2031, %v2283
      %v2320 = vadd.f32 %v2032, %v2284
      %v2321 = vadd.f32 %v2033, %v2285
      %v2322 = vadd.f32 %v2034, %v2286
      %v2323 = vadd.f32 %v2035, %v2287
      %v2324 = vadd.f32 %v2036, %v2288
      %v2325 = vadd.f32 %v2037, %v2289
      %v2326 = vadd.f32 %v2038, %v2290
      %v2327 = vadd.f32 %v2039, %v2291
      %v2328 = vadd.f32 %v2040, %v2292
      %v2329 = vadd.f32 %v2041, %v2293
      %v2330 = vadd.f32 %v2042, %v2294
      %v2331 = vadd.f32 %v2043, %v2295
      %v2332 = vadd.f32 %v2044, %v2296
      %v2333 = vadd.f32 %v2045, %v2297
      %v2334 = vadd.f32 %v2046, %v2298
      %v2335 = vadd.f32 %v2047, %v2299
      %v2336 = vadd.f32 %v2048, %v2300
      %v2337 = vadd.f32 %v2049, %v2301
      %v2338 = vadd.f32 %v2050, %v2302
      %v2339 = vadd.f32 %v2051, %v2303
      %v2340 = vadd.f32 %v2052, %v2304
      %v2341 = vadd.f32 %v2053, %v2305
      %v2342 = vadd.f32 %v2054, %v2306
      %v2343 = vadd.f32 %v2055, %v2307
      %v2344 = vadd.f32 %v2056, %v2308
      %v2345 = vadd.f32 %v2057, %v2309
      %v2346 = vadd.f32 %v2058, %v2310
      %v2347 = vadd.f32 %v2059, %v2311
      %v2348 = vadd.f32 %v2060, %v2312
      %v2349 = vadd.f32 %v2061, %v2313
      %v2350 = vadd.f32 %v2062, %v2314
      %v2351 = vadd.f32 %v2063, %v2315
      %v2352 = vadd.s32 %v2064, %v1759
      %v2353 = vadd.s32 %v2065, %v1761
      %v2354 = vadd.s32 %v2066, %v1763
      %v2355 = vadd.s32 %v2067, %v1765
      %v2356 = vadd.s32 %v2068, %v1767
      %v2357 = vadd.s32 %v2069, %v1769
      %v2358 = vadd.s32 %v2070, %v1771
      %v2359 = vadd.s32 %v2071, %v1773
      %v2360 = vadd.s32 %v2072, %v1775
      %v2361 = vadd.s32 %v2073, %v1777
      %v2362 = vadd.s32 %v2074, %v1779
      %v2363 = vadd.s32 %v2075, %v1781
      %v2364 = vadd.s32 %v2076, %v1783
      %v2365 = vadd.s32 %v2077, %v1785
      %v2366 = vadd.s32 %v2078, %v1787
      %v2367 = vadd.s32 %v2079, %v1789
      %v2368 = vadd.s32 %v2080, %v1791
      %v2369 = vadd.s32 %v2081, %v1793
      %2370 = vset.pattern.permute.xlu0 0
      %2371 = vperm.xlu0 %2370, %v2352
      %v2372 = vpop.permute.xlu0 %2371
      %2373 = vset.pattern.permute.xlu0 0
      %2374 = vperm.xlu0 %2373, %v2353
      %v2375 = vpop.permute.xlu0 %2374
      %2376 = vset.pattern.permute.xlu0 0
      %2377 = vperm.xlu0 %2376, %v2354
      %v2378 = vpop.permute.xlu0 %2377
      %2379 = vset.pattern.permute.xlu0 0
      %2380 = vperm.xlu0 %2379, %v2355
      %v2381 = vpop.permute.xlu0 %2380
      %2382 = vset.pattern.permute.xlu0 0
      %2383 = vperm.xlu0 %2382, %v2356
      %v2384 = vpop.permute.xlu0 %2383
      %2385 = vset.pattern.permute.xlu0 0
      %2386 = vperm.xlu0 %2385, %v2357
      %v2387 = vpop.permute.xlu0 %2386
      %2388 = vset.pattern.permute.xlu0 0
      %2389 = vperm.xlu0 %2388, %v2358
      %v2390 = vpop.permute.xlu0 %2389
      %2391 = vset.pattern.permute.xlu0 0
      %2392 = vperm.xlu0 %2391, %v2359
      %v2393 = vpop.permute.xlu0 %2392
      %2394 = vset.pattern.permute.xlu0 0
      %2395 = vperm.xlu0 %2394, %v2360
      %v2396 = vpop.permute.xlu0 %2395
      %2397 = vset.pattern.permute.xlu0 0
      %2398 = vperm.xlu0 %2397, %v2361
      %v2399 = vpop.permute.xlu0 %2398
      %2400 = vset.pattern.permute.xlu0 0
      %2401 = vperm.xlu0 %2400, %v2362
      %v2402 = vpop.permute.xlu0 %2401
      %2403 = vset.pattern.permute.xlu0 0
      %2404 = vperm.xlu0 %2403, %v2363
      %v2405 = vpop.permute.xlu0 %2404
      %2406 = vset.pattern.permute.xlu0 0
      %2407 = vperm.xlu0 %2406, %v2364
      %v2408 = vpop.permute.xlu0 %2407
      %2409 = vset.pattern.permute.xlu0 0
      %2410 = vperm.xlu0 %2409, %v2365
      %v2411 = vpop.permute.xlu0 %2410
      %2412 = vset.pattern.permute.xlu0 0
      %2413 = vperm.xlu0 %2412, %v2366
      %v2414 = vpop.permute.xlu0 %2413
      %2415 = vset.pattern.permute.xlu0 0
      %2416 = vperm.xlu0 %2415, %v2367
      %v2417 = vpop.permute.xlu0 %2416
      %2418 = vset.pattern.permute.xlu0 0
      %2419 = vperm.xlu0 %2418, %v2368
      %v2420 = vpop.permute.xlu0 %2419
      %2421 = vset.pattern.permute.xlu0 0
      %2422 = vperm.xlu0 %2421, %v2369
      %v2423 = vpop.permute.xlu0 %2422
      %vm2424 = vcmp.eq.s32.totalorder %v1468, %v2372
      %vm2425 = vcmp.eq.s32.totalorder %v1469, %v2372
      %vm2426 = vcmp.eq.s32.totalorder %v1468, %v2375
      %vm2427 = vcmp.eq.s32.totalorder %v1469, %v2375
      %vm2428 = vcmp.eq.s32.totalorder %v1468, %v2378
      %vm2429 = vcmp.eq.s32.totalorder %v1469, %v2378
      %vm2430 = vcmp.eq.s32.totalorder %v1468, %v2381
      %vm2431 = vcmp.eq.s32.totalorder %v1469, %v2381
      %vm2432 = vcmp.eq.s32.totalorder %v1468, %v2384
      %vm2433 = vcmp.eq.s32.totalorder %v1469, %v2384
      %vm2434 = vcmp.eq.s32.totalorder %v1468, %v2387
      %vm2435 = vcmp.eq.s32.totalorder %v1469, %v2387
      %vm2436 = vcmp.eq.s32.totalorder %v1468, %v2390
      %vm2437 = vcmp.eq.s32.totalorder %v1469, %v2390
      %vm2438 = vcmp.eq.s32.totalorder %v1468, %v2393
      %vm2439 = vcmp.eq.s32.totalorder %v1469, %v2393
      %vm2440 = vcmp.eq.s32.totalorder %v1468, %v2396
      %vm2441 = vcmp.eq.s32.totalorder %v1469, %v2396
      %vm2442 = vcmp.eq.s32.totalorder %v1468, %v2399
      %vm2443 = vcmp.eq.s32.totalorder %v1469, %v2399
      %vm2444 = vcmp.eq.s32.totalorder %v1468, %v2402
      %vm2445 = vcmp.eq.s32.totalorder %v1469, %v2402
      %vm2446 = vcmp.eq.s32.totalorder %v1468, %v2405
      %vm2447 = vcmp.eq.s32.totalorder %v1469, %v2405
      %vm2448 = vcmp.eq.s32.totalorder %v1468, %v2408
      %vm2449 = vcmp.eq.s32.totalorder %v1469, %v2408
      %vm2450 = vcmp.eq.s32.totalorder %v1468, %v2411
      %vm2451 = vcmp.eq.s32.totalorder %v1469, %v2411
      %vm2452 = vcmp.eq.s32.totalorder %v1468, %v2414
      %vm2453 = vcmp.eq.s32.totalorder %v1469, %v2414
      %vm2454 = vcmp.eq.s32.totalorder %v1468, %v2417
      %vm2455 = vcmp.eq.s32.totalorder %v1469, %v2417
      %vm2456 = vcmp.eq.s32.totalorder %v1468, %v2420
      %vm2457 = vcmp.eq.s32.totalorder %v1469, %v2420
      %vm2458 = vcmp.eq.s32.totalorder %v1468, %v2423
      %vm2459 = vcmp.eq.s32.totalorder %v1469, %v2423
      %2461 = vset.pattern.permute.xlu0 0
      %2462 = vperm.xlu0 %2461, %v1449
      %v2463 = vpop.permute.xlu0 %2462
      %2466 = vset.pattern.permute.xlu0 0
      %2467 = vperm.xlu0 %2466, %v1450
      %v2468 = vpop.permute.xlu0 %2467
      %2471 = vset.pattern.permute.xlu0 0
      %2472 = vperm.xlu0 %2471, %v1451
      %v2473 = vpop.permute.xlu0 %2472
      %2476 = vset.pattern.permute.xlu0 0
      %2477 = vperm.xlu0 %2476, %v1452
      %v2478 = vpop.permute.xlu0 %2477
      %2481 = vset.pattern.permute.xlu0 0
      %2482 = vperm.xlu0 %2481, %v1453
      %v2483 = vpop.permute.xlu0 %2482
      %2486 = vset.pattern.permute.xlu0 0
      %2487 = vperm.xlu0 %2486, %v1454
      %v2488 = vpop.permute.xlu0 %2487
      %2491 = vset.pattern.permute.xlu0 0
      %2492 = vperm.xlu0 %2491, %v1455
      %v2493 = vpop.permute.xlu0 %2492
      %2496 = vset.pattern.permute.xlu0 0
      %2497 = vperm.xlu0 %2496, %v1456
      %v2498 = vpop.permute.xlu0 %2497
      %2501 = vset.pattern.permute.xlu0 0
      %2502 = vperm.xlu0 %2501, %v1457
      %v2503 = vpop.permute.xlu0 %2502
      %2506 = vset.pattern.permute.xlu0 0
      %2507 = vperm.xlu0 %2506, %v1458
      %v2508 = vpop.permute.xlu0 %2507
      %2511 = vset.pattern.permute.xlu0 0
      %2512 = vperm.xlu0 %2511, %v1459
      %v2513 = vpop.permute.xlu0 %2512
      %2516 = vset.pattern.permute.xlu0 0
      %2517 = vperm.xlu0 %2516, %v1460
      %v2518 = vpop.permute.xlu0 %2517
      %2521 = vset.pattern.permute.xlu0 0
      %2522 = vperm.xlu0 %2521, %v1461
      %v2523 = vpop.permute.xlu0 %2522
      %2526 = vset.pattern.permute.xlu0 0
      %2527 = vperm.xlu0 %2526, %v1462
      %v2528 = vpop.permute.xlu0 %2527
      %2531 = vset.pattern.permute.xlu0 0
      %2532 = vperm.xlu0 %2531, %v1463
      %v2533 = vpop.permute.xlu0 %2532
      %2536 = vset.pattern.permute.xlu0 0
      %2537 = vperm.xlu0 %2536, %v1464
      %v2538 = vpop.permute.xlu0 %2537
      %2541 = vset.pattern.permute.xlu0 0
      %2542 = vperm.xlu0 %2541, %v1465
      %v2543 = vpop.permute.xlu0 %2542
      %2546 = vset.pattern.permute.xlu0 0
      %2547 = vperm.xlu0 %2546, %v1466
      %v2548 = vpop.permute.xlu0 %2547
      %v2550 = vsel %vm2424, %v2463, 0.0
      %v2551 = vsel %vm2425, %v2463, 0.0
      %v2552 = vsel %vm2426, %v2468, 0.0
      %v2553 = vsel %vm2427, %v2468, 0.0
      %v2554 = vsel %vm2428, %v2473, 0.0
      %v2555 = vsel %vm2429, %v2473, 0.0
      %v2556 = vsel %vm2430, %v2478, 0.0
      %v2557 = vsel %vm2431, %v2478, 0.0
      %v2558 = vsel %vm2432, %v2483, 0.0
      %v2559 = vsel %vm2433, %v2483, 0.0
      %v2560 = vsel %vm2434, %v2488, 0.0
      %v2561 = vsel %vm2435, %v2488, 0.0
      %v2562 = vsel %vm2436, %v2493, 0.0
      %v2563 = vsel %vm2437, %v2493, 0.0
      %v2564 = vsel %vm2438, %v2498, 0.0
      %v2565 = vsel %vm2439, %v2498, 0.0
      %v2566 = vsel %vm2440, %v2503, 0.0
      %v2567 = vsel %vm2441, %v2503, 0.0
      %v2568 = vsel %vm2442, %v2508, 0.0
      %v2569 = vsel %vm2443, %v2508, 0.0
      %v2570 = vsel %vm2444, %v2513, 0.0
      %v2571 = vsel %vm2445, %v2513, 0.0
      %v2572 = vsel %vm2446, %v2518, 0.0
      %v2573 = vsel %vm2447, %v2518, 0.0
      %v2574 = vsel %vm2448, %v2523, 0.0
      %v2575 = vsel %vm2449, %v2523, 0.0
      %v2576 = vsel %vm2450, %v2528, 0.0
      %v2577 = vsel %vm2451, %v2528, 0.0
      %v2578 = vsel %vm2452, %v2533, 0.0
      %v2579 = vsel %vm2453, %v2533, 0.0
      %v2580 = vsel %vm2454, %v2538, 0.0
      %v2581 = vsel %vm2455, %v2538, 0.0
      %v2582 = vsel %vm2456, %v2543, 0.0
      %v2583 = vsel %vm2457, %v2543, 0.0
      %v2584 = vsel %vm2458, %v2548, 0.0
      %v2585 = vsel %vm2459, %v2548, 0.0
      %v2586 = vadd.f32 %v2316, %v2550
      %v2587 = vadd.f32 %v2317, %v2551
      %v2588 = vadd.f32 %v2318, %v2552
      %v2589 = vadd.f32 %v2319, %v2553
      %v2590 = vadd.f32 %v2320, %v2554
      %v2591 = vadd.f32 %v2321, %v2555
      %v2592 = vadd.f32 %v2322, %v2556
      %v2593 = vadd.f32 %v2323, %v2557
      %v2594 = vadd.f32 %v2324, %v2558
      %v2595 = vadd.f32 %v2325, %v2559
      %v2596 = vadd.f32 %v2326, %v2560
      %v2597 = vadd.f32 %v2327, %v2561
      %v2598 = vadd.f32 %v2328, %v2562
      %v2599 = vadd.f32 %v2329, %v2563
      %v2600 = vadd.f32 %v2330, %v2564
      %v2601 = vadd.f32 %v2331, %v2565
      %v2602 = vadd.f32 %v2332, %v2566
      %v2603 = vadd.f32 %v2333, %v2567
      %v2604 = vadd.f32 %v2334, %v2568
      %v2605 = vadd.f32 %v2335, %v2569
      %v2606 = vadd.f32 %v2336, %v2570
      %v2607 = vadd.f32 %v2337, %v2571
      %v2608 = vadd.f32 %v2338, %v2572
      %v2609 = vadd.f32 %v2339, %v2573
      %v2610 = vadd.f32 %v2340, %v2574
      %v2611 = vadd.f32 %v2341, %v2575
      %v2612 = vadd.f32 %v2342, %v2576
      %v2613 = vadd.f32 %v2343, %v2577
      %v2614 = vadd.f32 %v2344, %v2578
      %v2615 = vadd.f32 %v2345, %v2579
      %v2616 = vadd.f32 %v2346, %v2580
      %v2617 = vadd.f32 %v2347, %v2581
      %v2618 = vadd.f32 %v2348, %v2582
      %v2619 = vadd.f32 %v2349, %v2583
      %v2620 = vadd.f32 %v2350, %v2584
      %v2621 = vadd.f32 %v2351, %v2585
      %v2622 = vld [vmem:[#allocation2] sm:$0xff]
      %v2623 = vld [vmem:[#allocation2 + $0x8] sm:$0xff]
      %v2624 = vld [vmem:[#allocation2 + $0x10] sm:$0xff]
      %v2625 = vld [vmem:[#allocation2 + $0x18] sm:$0xff]
      %v2626 = vld [vmem:[#allocation2 + $0x20] sm:$0xff]
      %v2627 = vld [vmem:[#allocation2 + $0x28] sm:$0xff]
      %v2628 = vld [vmem:[#allocation2 + $0x30] sm:$0xff]
      %v2629 = vld [vmem:[#allocation2 + $0x38] sm:$0xff]
      %v2630 = vld [vmem:[#allocation2 + $0x40] sm:$0xff]
      %v2631 = vld [vmem:[#allocation2 + $0x48] sm:$0xff]
      %v2632 = vld [vmem:[#allocation2 + $0x50] sm:$0xff]
      %v2633 = vld [vmem:[#allocation2 + $0x58] sm:$0xff]
      %v2634 = vld [vmem:[#allocation2 + $0x60] sm:$0xff]
      %v2635 = vld [vmem:[#allocation2 + $0x68] sm:$0xff]
      %v2636 = vld [vmem:[#allocation2 + $0x70] sm:$0xff]
      %v2637 = vld [vmem:[#allocation2 + $0x78] sm:$0xff]
      %v2638 = vld [vmem:[#allocation2 + $0x80] sm:$0xff]
      %v2639 = vld [vmem:[#allocation2 + $0x88] sm:$0xff]
      %v2640 = vld [vmem:[#allocation2 + $0x90] sm:$0xff]
      %v2641 = vld [vmem:[#allocation2 + $0x98] sm:$0xff]
      %v2642 = vld [vmem:[#allocation2 + $0xa0] sm:$0xff]
      %v2643 = vld [vmem:[#allocation2 + $0xa8] sm:$0xff]
      %v2644 = vld [vmem:[#allocation2 + $0xb0] sm:$0xff]
      %v2645 = vld [vmem:[#allocation2 + $0xb8] sm:$0xff]
      %v2646 = vld [vmem:[#allocation2 + $0xc0] sm:$0xff]
      %v2647 = vld [vmem:[#allocation2 + $0xc8] sm:$0xff]
      %v2648 = vld [vmem:[#allocation2 + $0xd0] sm:$0xff]
      %v2649 = vld [vmem:[#allocation2 + $0xd8] sm:$0xff]
      %v2650 = vld [vmem:[#allocation2 + $0xe0] sm:$0xff]
      %v2651 = vld [vmem:[#allocation2 + $0xe8] sm:$0xff]
      %v2652 = vld [vmem:[#allocation2 + $0xf0] sm:$0xff]
      %v2653 = vld [vmem:[#allocation2 + $0xf8] sm:$0xff]
      %2654 = vmatpush.msra.mxu0 %v2637
      %2655 = vmatpush.msra.mxu0 %v2636
      %2656 = vmatpush.msra.mxu0 %v2635
      %2657 = vmatpush.msra.mxu0 %v2634
      %2658 = vmatpush.msra.mxu0 %v2633
      %2659 = vmatpush.msra.mxu0 %v2632
      %2660 = vmatpush.msra.mxu0 %v2631
      %2661 = vmatpush.msra.mxu0 %v2630
      %2662 = vmatpush.msra.mxu0 %v2629
      %2663 = vmatpush.msra.mxu0 %v2628
      %2664 = vmatpush.msra.mxu0 %v2627
      %2665 = vmatpush.msra.mxu0 %v2626
      %2666 = vmatpush.msra.mxu0 %v2625
      %2667 = vmatpush.msra.mxu0 %v2624
      %2668 = vmatpush.msra.mxu0 %v2623
      %2669 = vmatpush.msra.mxu0 %v2622
      %2670 = vmatmul.f32.gmra.mxu0 %v2586
      %v2671 = vpop.f32.mrf.mxu0
      %v2672 = vadd.f32 0.0, %v2671
      %2673 = vmatmul.f32.gmra.mxu0 %v2588
      %v2674 = vpop.f32.mrf.mxu0
      %v2675 = vadd.f32 0.0, %v2674
      %2676 = vmatmul.f32.gmra.mxu0 %v2590
      %v2677 = vpop.f32.mrf.mxu0
      %v2678 = vadd.f32 0.0, %v2677
      %2679 = vmatmul.f32.gmra.mxu0 %v2592
      %v2680 = vpop.f32.mrf.mxu0
      %v2681 = vadd.f32 0.0, %v2680
      %2682 = vmatmul.f32.gmra.mxu0 %v2594
      %v2683 = vpop.f32.mrf.mxu0
      %v2684 = vadd.f32 0.0, %v2683
      %2685 = vmatmul.f32.gmra.mxu0 %v2596
      %v2686 = vpop.f32.mrf.mxu0
      %v2687 = vadd.f32 0.0, %v2686
      %2688 = vmatmul.f32.gmra.mxu0 %v2598
      %v2689 = vpop.f32.mrf.mxu0
      %v2690 = vadd.f32 0.0, %v2689
      %2691 = vmatmul.f32.gmra.mxu0 %v2600
      %v2692 = vpop.f32.mrf.mxu0
      %v2693 = vadd.f32 0.0, %v2692
      %2694 = vmatmul.f32.gmra.mxu0 %v2602
      %v2695 = vpop.f32.mrf.mxu0
      %v2696 = vadd.f32 0.0, %v2695
      %2697 = vmatmul.f32.gmra.mxu0 %v2604
      %v2698 = vpop.f32.mrf.mxu0
      %v2699 = vadd.f32 0.0, %v2698
      %2700 = vmatmul.f32.gmra.mxu0 %v2606
      %v2701 = vpop.f32.mrf.mxu0
      %v2702 = vadd.f32 0.0, %v2701
      %2703 = vmatmul.f32.gmra.mxu0 %v2608
      %v2704 = vpop.f32.mrf.mxu0
      %v2705 = vadd.f32 0.0, %v2704
      %2706 = vmatmul.f32.gmra.mxu0 %v2610
      %v2707 = vpop.f32.mrf.mxu0
      %v2708 = vadd.f32 0.0, %v2707
      %2709 = vmatmul.f32.gmra.mxu0 %v2612
      %v2710 = vpop.f32.mrf.mxu0
      %v2711 = vadd.f32 0.0, %v2710
      %2712 = vmatmul.f32.gmra.mxu0 %v2614
      %v2713 = vpop.f32.mrf.mxu0
      %v2714 = vadd.f32 0.0, %v2713
      %2715 = vmatmul.f32.gmra.mxu0 %v2616
      %v2716 = vpop.f32.mrf.mxu0
      %v2717 = vadd.f32 0.0, %v2716
      %2718 = vmatmul.f32.gmra.mxu0 %v2618
      %v2719 = vpop.f32.mrf.mxu0
      %v2720 = vadd.f32 0.0, %v2719
      %2721 = vmatmul.f32.gmra.mxu0 %v2620
      %v2722 = vpop.f32.mrf.mxu0
      %v2723 = vadd.f32 0.0, %v2722
      %2724 = vdwg.mxu0
      %2725 = vmatpush.msra.mxu0 %v2653
      %2726 = vmatpush.msra.mxu0 %v2652
      %2727 = vmatpush.msra.mxu0 %v2651
      %2728 = vmatpush.msra.mxu0 %v2650
      %2729 = vmatpush.msra.mxu0 %v2649
      %2730 = vmatpush.msra.mxu0 %v2648
      %2731 = vmatpush.msra.mxu0 %v2647
      %2732 = vmatpush.msra.mxu0 %v2646
      %2733 = vmatpush.msra.mxu0 %v2645
      %2734 = vmatpush.msra.mxu0 %v2644
      %2735 = vmatpush.msra.mxu0 %v2643
      %2736 = vmatpush.msra.mxu0 %v2642
      %2737 = vmatpush.msra.mxu0 %v2641
      %2738 = vmatpush.msra.mxu0 %v2640
      %2739 = vmatpush.msra.mxu0 %v2639
      %2740 = vmatpush.msra.mxu0 %v2638
      %2741 = vmatmul.f32.gmra.mxu0 %v2587
      %v2742 = vpop.f32.mrf.mxu0
      %v2743 = vadd.f32 %v2672, %v2742
      %2744 = vmatmul.f32.gmra.mxu0 %v2589
      %v2745 = vpop.f32.mrf.mxu0
      %v2746 = vadd.f32 %v2675, %v2745
      %2747 = vmatmul.f32.gmra.mxu0 %v2591
      %v2748 = vpop.f32.mrf.mxu0
      %v2749 = vadd.f32 %v2678, %v2748
      %2750 = vmatmul.f32.gmra.mxu0 %v2593
      %v2751 = vpop.f32.mrf.mxu0
      %v2752 = vadd.f32 %v2681, %v2751
      %2753 = vmatmul.f32.gmra.mxu0 %v2595
      %v2754 = vpop.f32.mrf.mxu0
      %v2755 = vadd.f32 %v2684, %v2754
      %2756 = vmatmul.f32.gmra.mxu0 %v2597
      %v2757 = vpop.f32.mrf.mxu0
      %v2758 = vadd.f32 %v2687, %v2757
      %2759 = vmatmul.f32.gmra.mxu0 %v2599
      %v2760 = vpop.f32.mrf.mxu0
      %v2761 = vadd.f32 %v2690, %v2760
      %2762 = vmatmul.f32.gmra.mxu0 %v2601
      %v2763 = vpop.f32.mrf.mxu0
      %v2764 = vadd.f32 %v2693, %v2763
      %2765 = vmatmul.f32.gmra.mxu0 %v2603
      %v2766 = vpop.f32.mrf.mxu0
      %v2767 = vadd.f32 %v2696, %v2766
      %2768 = vmatmul.f32.gmra.mxu0 %v2605
      %v2769 = vpop.f32.mrf.mxu0
      %v2770 = vadd.f32 %v2699, %v2769
      %2771 = vmatmul.f32.gmra.mxu0 %v2607
      %v2772 = vpop.f32.mrf.mxu0
      %v2773 = vadd.f32 %v2702, %v2772
      %2774 = vmatmul.f32.gmra.mxu0 %v2609
      %v2775 = vpop.f32.mrf.mxu0
      %v2776 = vadd.f32 %v2705, %v2775
      %2777 = vmatmul.f32.gmra.mxu0 %v2611
      %v2778 = vpop.f32.mrf.mxu0
      %v2779 = vadd.f32 %v2708, %v2778
      %2780 = vmatmul.f32.gmra.mxu0 %v2613
      %v2781 = vpop.f32.mrf.mxu0
      %v2782 = vadd.f32 %v2711, %v2781
      %2783 = vmatmul.f32.gmra.mxu0 %v2615
      %v2784 = vpop.f32.mrf.mxu0
      %v2785 = vadd.f32 %v2714, %v2784
      %2786 = vmatmul.f32.gmra.mxu0 %v2617
      %v2787 = vpop.f32.mrf.mxu0
      %v2788 = vadd.f32 %v2717, %v2787
      %2789 = vmatmul.f32.gmra.mxu0 %v2619
      %v2790 = vpop.f32.mrf.mxu0
      %v2791 = vadd.f32 %v2720, %v2790
      %2792 = vmatmul.f32.gmra.mxu0 %v2621
      %v2793 = vpop.f32.mrf.mxu0
      %v2794 = vadd.f32 %v2723, %v2793
      %2795 = vdwg.mxu0
      %v2796 = vld [vmem:[#allocation3] sm:$0xff]
      %v2797 = vld [vmem:[#allocation3 + $0x8] sm:$0xff]
      %v2798 = vld [vmem:[#allocation3 + $0x10] sm:$0xff]
      %v2799 = vld [vmem:[#allocation3 + $0x18] sm:$0xff]
      %v2800 = vld [vmem:[#allocation3 + $0x20] sm:$0xff]
      %v2801 = vld [vmem:[#allocation3 + $0x28] sm:$0xff]
      %v2802 = vld [vmem:[#allocation3 + $0x30] sm:$0xff]
      %v2803 = vld [vmem:[#allocation3 + $0x38] sm:$0xff]
      %v2804 = vld [vmem:[#allocation3 + $0x40] sm:$0xff]
      %v2805 = vld [vmem:[#allocation3 + $0x48] sm:$0xff]
      %v2806 = vld [vmem:[#allocation3 + $0x50] sm:$0xff]
      %v2807 = vld [vmem:[#allocation3 + $0x58] sm:$0xff]
      %v2808 = vld [vmem:[#allocation3 + $0x60] sm:$0xff]
      %v2809 = vld [vmem:[#allocation3 + $0x68] sm:$0xff]
      %v2810 = vld [vmem:[#allocation3 + $0x70] sm:$0xff]
      %v2811 = vld [vmem:[#allocation3 + $0x78] sm:$0xff]
      %v2812 = vld [vmem:[#allocation3 + $0x80] sm:$0xff]
      %v2813 = vld [vmem:[#allocation3 + $0x88] sm:$0xff]
      %v2814 = vld [vmem:[%s318] sm:$0xff]
      %v2815 = vld [vmem:[%s318 + $0x8] sm:$0xff]
      %v2816 = vld [vmem:[%s318 + $0x10] sm:$0xff]
      %v2817 = vld [vmem:[%s318 + $0x18] sm:$0xff]
      %v2818 = vld [vmem:[%s318 + $0x20] sm:$0xff]
      %v2819 = vld [vmem:[%s318 + $0x28] sm:$0xff]
      %v2820 = vld [vmem:[%s318 + $0x30] sm:$0xff]
      %v2821 = vld [vmem:[%s318 + $0x38] sm:$0xff]
      %v2822 = vld [vmem:[%s318 + $0x40] sm:$0xff]
      %v2823 = vld [vmem:[%s318 + $0x48] sm:$0xff]
      %v2824 = vld [vmem:[%s318 + $0x50] sm:$0xff]
      %v2825 = vld [vmem:[%s318 + $0x58] sm:$0xff]
      %v2826 = vld [vmem:[%s318 + $0x60] sm:$0xff]
      %v2827 = vld [vmem:[%s318 + $0x68] sm:$0xff]
      %v2828 = vld [vmem:[%s318 + $0x70] sm:$0xff]
      %v2829 = vld [vmem:[%s318 + $0x78] sm:$0xff]
      %2830 = vmatpush.msra.mxu0 %v2829
      %2831 = vmatpush.msra.mxu0 %v2828
      %2832 = vmatpush.msra.mxu0 %v2827
      %2833 = vmatpush.msra.mxu0 %v2826
      %2834 = vmatpush.msra.mxu0 %v2825
      %2835 = vmatpush.msra.mxu0 %v2824
      %2836 = vmatpush.msra.mxu0 %v2823
      %2837 = vmatpush.msra.mxu0 %v2822
      %2838 = vmatpush.msra.mxu0 %v2821
      %2839 = vmatpush.msra.mxu0 %v2820
      %2840 = vmatpush.msra.mxu0 %v2819
      %2841 = vmatpush.msra.mxu0 %v2818
      %2842 = vmatpush.msra.mxu0 %v2817
      %2843 = vmatpush.msra.mxu0 %v2816
      %2844 = vmatpush.msra.mxu0 %v2815
      %2845 = vmatpush.msra.mxu0 %v2814
      %2846 = vmatmul.f32.gmra.mxu0 %v2743
      %v2847 = vpop.f32.mrf.mxu0
      %v2848 = vadd.f32 0.0, %v2847
      %2849 = vmatmul.f32.gmra.mxu0 %v2746
      %v2850 = vpop.f32.mrf.mxu0
      %v2851 = vadd.f32 0.0, %v2850
      %2852 = vmatmul.f32.gmra.mxu0 %v2749
      %v2853 = vpop.f32.mrf.mxu0
      %v2854 = vadd.f32 0.0, %v2853
      %2855 = vmatmul.f32.gmra.mxu0 %v2752
      %v2856 = vpop.f32.mrf.mxu0
      %v2857 = vadd.f32 0.0, %v2856
      %2858 = vmatmul.f32.gmra.mxu0 %v2755
      %v2859 = vpop.f32.mrf.mxu0
      %v2860 = vadd.f32 0.0, %v2859
      %2861 = vmatmul.f32.gmra.mxu0 %v2758
      %v2862 = vpop.f32.mrf.mxu0
      %v2863 = vadd.f32 0.0, %v2862
      %2864 = vmatmul.f32.gmra.mxu0 %v2761
      %v2865 = vpop.f32.mrf.mxu0
      %v2866 = vadd.f32 0.0, %v2865
      %2867 = vmatmul.f32.gmra.mxu0 %v2764
      %v2868 = vpop.f32.mrf.mxu0
      %v2869 = vadd.f32 0.0, %v2868
      %2870 = vmatmul.f32.gmra.mxu0 %v2767
      %v2871 = vpop.f32.mrf.mxu0
      %v2872 = vadd.f32 0.0, %v2871
      %2873 = vmatmul.f32.gmra.mxu0 %v2770
      %v2874 = vpop.f32.mrf.mxu0
      %v2875 = vadd.f32 0.0, %v2874
      %2876 = vmatmul.f32.gmra.mxu0 %v2773
      %v2877 = vpop.f32.mrf.mxu0
      %v2878 = vadd.f32 0.0, %v2877
      %2879 = vmatmul.f32.gmra.mxu0 %v2776
      %v2880 = vpop.f32.mrf.mxu0
      %v2881 = vadd.f32 0.0, %v2880
      %2882 = vmatmul.f32.gmra.mxu0 %v2779
      %v2883 = vpop.f32.mrf.mxu0
      %v2884 = vadd.f32 0.0, %v2883
      %2885 = vmatmul.f32.gmra.mxu0 %v2782
      %v2886 = vpop.f32.mrf.mxu0
      %v2887 = vadd.f32 0.0, %v2886
      %2888 = vmatmul.f32.gmra.mxu0 %v2785
      %v2889 = vpop.f32.mrf.mxu0
      %v2890 = vadd.f32 0.0, %v2889
      %2891 = vmatmul.f32.gmra.mxu0 %v2788
      %v2892 = vpop.f32.mrf.mxu0
      %v2893 = vadd.f32 0.0, %v2892
      %2894 = vmatmul.f32.gmra.mxu0 %v2791
      %v2895 = vpop.f32.mrf.mxu0
      %v2896 = vadd.f32 0.0, %v2895
      %2897 = vmatmul.f32.gmra.mxu0 %v2794
      %v2898 = vpop.f32.mrf.mxu0
      %v2899 = vadd.f32 0.0, %v2898
      %2900 = vdwg.mxu0
      %v2901 = vadd.f32 %v2796, %v2848
      %v2902 = vadd.f32 %v2797, %v2851
      %v2903 = vadd.f32 %v2798, %v2854
      %v2904 = vadd.f32 %v2799, %v2857
      %v2905 = vadd.f32 %v2800, %v2860
      %v2906 = vadd.f32 %v2801, %v2863
      %v2907 = vadd.f32 %v2802, %v2866
      %v2908 = vadd.f32 %v2803, %v2869
      %v2909 = vadd.f32 %v2804, %v2872
      %v2910 = vadd.f32 %v2805, %v2875
      %v2911 = vadd.f32 %v2806, %v2878
      %v2912 = vadd.f32 %v2807, %v2881
      %v2913 = vadd.f32 %v2808, %v2884
      %v2914 = vadd.f32 %v2809, %v2887
      %v2915 = vadd.f32 %v2810, %v2890
      %v2916 = vadd.f32 %v2811, %v2893
      %v2917 = vadd.f32 %v2812, %v2896
      %v2918 = vadd.f32 %v2813, %v2899
      %2919 = vst [vmem:[#allocation3] sm:$0xff] %v2901
      %2920 = vst [vmem:[#allocation3 + $0x8] sm:$0xff] %v2902
      %2921 = vst [vmem:[#allocation3 + $0x10] sm:$0xff] %v2903
      %2922 = vst [vmem:[#allocation3 + $0x18] sm:$0xff] %v2904
      %2923 = vst [vmem:[#allocation3 + $0x20] sm:$0xff] %v2905
      %2924 = vst [vmem:[#allocation3 + $0x28] sm:$0xff] %v2906
      %2925 = vst [vmem:[#allocation3 + $0x30] sm:$0xff] %v2907
      %2926 = vst [vmem:[#allocation3 + $0x38] sm:$0xff] %v2908
      %2927 = vst [vmem:[#allocation3 + $0x40] sm:$0xff] %v2909
      %2928 = vst [vmem:[#allocation3 + $0x48] sm:$0xff] %v2910
      %2929 = vst [vmem:[#allocation3 + $0x50] sm:$0xff] %v2911
      %2930 = vst [vmem:[#allocation3 + $0x58] sm:$0xff] %v2912
      %2931 = vst [vmem:[#allocation3 + $0x60] sm:$0xff] %v2913
      %2932 = vst [vmem:[#allocation3 + $0x68] sm:$0xff] %v2914
      %2933 = vst [vmem:[#allocation3 + $0x70] sm:$0xff] %v2915
      %2934 = vst [vmem:[#allocation3 + $0x78] sm:$0xff] %v2916
      %2935 = vst [vmem:[#allocation3 + $0x80] sm:$0xff] %v2917
      %2936 = vst [vmem:[#allocation3 + $0x88] sm:$0xff] %v2918
      %p2937 = scmp.eq.s32.totalorder %s23, 8
      // Predicated region
      $region64: #{deformable_conv2d_forward.1} parent=35 // pred_check
        %p2938 = pneg %p2937
      $region65: #{deformable_conv2d_forward.1} parent=35 // pred_check_branch
        %2940 = sbr.rel (%p2938) target = $region67
      $region66: #{deformable_conv2d_forward.1} parent=35 // pred_region
        %v2941 = vld [vmem:[#allocation3] sm:$0xff]
        %v2942 = vld [vmem:[#allocation3 + $0x8] sm:$0xff]
        %v2943 = vld [vmem:[#allocation3 + $0x10] sm:$0xff]
        %v2944 = vld [vmem:[#allocation3 + $0x18] sm:$0xff]
        %v2945 = vld [vmem:[#allocation3 + $0x20] sm:$0xff]
        %v2946 = vld [vmem:[#allocation3 + $0x28] sm:$0xff]
        %v2947 = vld [vmem:[#allocation3 + $0x30] sm:$0xff]
        %v2948 = vld [vmem:[#allocation3 + $0x38] sm:$0xff]
        %v2949 = vld [vmem:[#allocation3 + $0x40] sm:$0xff]
        %v2950 = vld [vmem:[#allocation3 + $0x48] sm:$0xff]
        %v2951 = vld [vmem:[#allocation3 + $0x50] sm:$0xff]
        %v2952 = vld [vmem:[#allocation3 + $0x58] sm:$0xff]
        %v2953 = vld [vmem:[#allocation3 + $0x60] sm:$0xff]
        %v2954 = vld [vmem:[#allocation3 + $0x68] sm:$0xff]
        %v2955 = vld [vmem:[#allocation3 + $0x70] sm:$0xff]
        %v2956 = vld [vmem:[#allocation3 + $0x78] sm:$0xff]
        %v2957 = vld [vmem:[#allocation3 + $0x80] sm:$0xff]
        %v2958 = vld [vmem:[#allocation3 + $0x88] sm:$0xff]
        %v2959 = vld [vmem:[%s4] sm:$0x1]
        %v2961 = vperm.slane %v2959, 0
        %v2963 = vadd.f32 %v2941, %v2961
        %v2964 = vadd.f32 %v2942, %v2961
        %v2965 = vadd.f32 %v2943, %v2961
        %v2966 = vadd.f32 %v2944, %v2961
        %v2967 = vadd.f32 %v2945, %v2961
        %v2968 = vadd.f32 %v2946, %v2961
        %v2969 = vadd.f32 %v2947, %v2961
        %v2970 = vadd.f32 %v2948, %v2961
        %v2971 = vadd.f32 %v2949, %v2961
        %v2972 = vadd.f32 %v2950, %v2961
        %v2973 = vadd.f32 %v2951, %v2961
        %v2974 = vadd.f32 %v2952, %v2961
        %v2975 = vadd.f32 %v2953, %v2961
        %v2976 = vadd.f32 %v2954, %v2961
        %v2977 = vadd.f32 %v2955, %v2961
        %v2978 = vadd.f32 %v2956, %v2961
        %v2979 = vadd.f32 %v2957, %v2961
        %v2980 = vadd.f32 %v2958, %v2961
        %2981 = vst [vmem:[%s327] sm:$0xff] %v2963
        %2982 = vst [vmem:[%s327 + $0x8] sm:$0xff] %v2964
        %2983 = vst [vmem:[%s327 + $0x10] sm:$0xff] %v2965
        %2984 = vst [vmem:[%s327 + $0x18] sm:$0xff] %v2966
        %2985 = vst [vmem:[%s327 + $0x20] sm:$0xff] %v2967
        %2986 = vst [vmem:[%s327 + $0x28] sm:$0xff] %v2968
        %2987 = vst [vmem:[%s327 + $0x30] sm:$0xff] %v2969
        %2988 = vst [vmem:[%s327 + $0x38] sm:$0xff] %v2970
        %2989 = vst [vmem:[%s327 + $0x40] sm:$0xff] %v2971
        %2990 = vst [vmem:[%s327 + $0x48] sm:$0xff] %v2972
        %2991 = vst [vmem:[%s327 + $0x50] sm:$0xff] %v2973
        %2992 = vst [vmem:[%s327 + $0x58] sm:$0xff] %v2974
        %2993 = vst [vmem:[%s327 + $0x60] sm:$0xff] %v2975
        %2994 = vst [vmem:[%s327 + $0x68] sm:$0xff] %v2976
        %2995 = vst [vmem:[%s327 + $0x70] sm:$0xff] %v2977
        %2996 = vst [vmem:[%s327 + $0x78] sm:$0xff] %v2978
        %2997 = vst [vmem:[%s327 + $0x80] sm:$0xff] %v2979
        %2998 = vst [vmem:[%s327 + $0x88] sm:$0xff] %v2980
      $region67: #{deformable_conv2d_forward.1} parent=35 // pred_fallthru
        _
      %s2999 = smul.u32 18, %s22
      %p3000 = scmp.lt.s32.totalorder %s21, 1
      %s3001 = scalar_select %p3000, %s21, 1
      %p3002 = scmp.lt.s32.totalorder %s2999, 17
      %s3003 = scalar_select %p3002, %s2999, 17
      %s3004 = smul.addr %s3001, 18
      %s3005 = sadd.s32 %s3003, %s3004
      %s3006 = smul.addr %s3005, 8
      %s3007 = scalar_lea.vmem %s5, %s3006
      // Predicated region
      $region68: #{deformable_conv2d_forward.1} parent=35 // pred_check
        %p3008 = pneg %p162
      $region69: #{deformable_conv2d_forward.1} parent=35 // pred_check_branch
        %3010 = sbr.rel (%p3008) target = $region71
      $region70: #{deformable_conv2d_forward.1} parent=35 // pred_region
        %s3011 = smul.u32 18, %s22
      $region71: #{deformable_conv2d_forward.1} parent=35 // pred_fallthru
        _
    $region36: #{deformable_conv2d_forward.1} parent=5 // pred_fallthru
      _
    %p3012 = scmp.le.s32.totalorder 2, %s11
    // Predicated region
    $region72: #{deformable_conv2d_forward.1} parent=5 // pred_check
      %p3013 = pneg %p3012
    $region73: #{deformable_conv2d_forward.1} parent=5 // pred_check_branch
      %3015 = sbr.rel (%p3013) target = $region75
    $region74: #{deformable_conv2d_forward.1} parent=5 // pred_region
      %s3016 = ssub.s32 %s11, 2
      // Predicated region
      $region76: #{deformable_conv2d_forward.1} parent=74 // pred_check
        %p3017 = pneg %p168
      $region77: #{deformable_conv2d_forward.1} parent=74 // pred_check_branch
        %3019 = sbr.rel (%p3017) target = $region79
      $region78: #{deformable_conv2d_forward.1} parent=74 // pred_region
        %s3020 = smul.u32 18, %s25
        %p3021 = scmp.lt.s32.totalorder %s24, 1
        %s3022 = scalar_select %p3021, %s24, 1
        %p3023 = scmp.lt.s32.totalorder %s3020, 17
        %s3024 = scalar_select %p3023, %s3020, 17
        %s3025 = smul.addr %s3022, 18
        %s3026 = sadd.s32 %s3024, %s3025
        %s3027 = smul.addr %s3026, 8
        %s3028 = scalar_lea.vmem %s5, %s3027
      $region79: #{deformable_conv2d_forward.1} parent=74 // pred_fallthru
        _
    $region75: #{deformable_conv2d_forward.1} parent=5 // pred_fallthru
      _
  $region6: #{deformable_conv2d_forward.1} parent=0 // loop_footer
    %s15 = sadd.s32 1, %s11
  $region7: #{deformable_conv2d_forward.1} parent=0 // loop_footer_branch
    %10 = sbr.rel target = $region3
  $region8: #{deformable_conv2d_forward.1} parent=0 // loop_exit
    _
  %3029 = vsyncmov [#allocation4]
  %s3030 = vpop.sfrf %3029
  %p3031 = scmp.eq.s32.totalorder %s3030, 0
  %p3032 = pneg %p3031
  %3034 = shalt.err (%p3032)

</llo_original>
